<compile_context>
chip_gen: v6e
topology: v6e:2x2x1
jax: 0.10.0
libtpu: 0.0.40
codegen_flags: <defaults>
</compile_context>

<pallas_src>
import jax
import jax.numpy as jnp
from jax import lax
from jax.experimental import pallas as pl
from jax.experimental.pallas import tpu as pltpu


def _transit_mask_fused_kernel(xpad_ref, w1_ref, b1_ref, w2_ref, b2_ref,
                               wm1_ref, wm2_ref, o_ref, ypad_ref):
    # xpad_ref : (NB, H+2, W+2, Cin)  bf16  reflection-padded input images
    # w1_ref   : (9*Cin,  Cmid)       bf16  packed 3x3 weights (dy, dx, cin)
    # b1_ref   : (1, Cmid)            f32
    # w2_ref   : (9*Cmid, Cmid)       bf16
    # b2_ref   : (1, Cmid)            f32
    # wm1_ref  : (Cmid, Chid)         f32   1x1 conv, no bias
    # wm2_ref  : (1, Chid)            f32   1x1 conv (Chid -> 1), no bias
    # o_ref    : (NB, H, W)           f32   mask (W on the lane axis)
    # ypad_ref : (NB, H+2, W+2, Cmid) bf16  VMEM scratch: padded intermediate
    NB, Hp, Wp, _ = xpad_ref.shape
    H, W = Hp - 2, Wp - 2
    Chid = wm1_ref.shape[1]

    def conv3x3_relu(window, wp_ref, b_ref):
        # window(dy, dx) -> (NB, H, W, C) shifted slice of the padded source.
        taps = [window(dy, dx) for dy in range(3) for dx in range(3)]
        patch = jnp.concatenate(taps, axis=-1)                # (NB, H, W, 9*C)
        patch = patch.reshape(NB * H * W, patch.shape[-1])    # im2col matrix
        acc = jnp.dot(patch, wp_ref[...],                     # MXU, K = 9*C
                      preferred_element_type=jnp.float32)
        return jnp.maximum(acc + b_ref[...], 0.0)             # (NB*H*W, Cout)

    # ---- conv1 + ReLU ------------------------------------------------------
    y1 = conv3x3_relu(lambda dy, dx: xpad_ref[:, dy:dy + H, dx:dx + W, :],
                      w1_ref, b1_ref)
    y1 = y1.reshape(NB, H, W, -1).astype(ypad_ref.dtype)

    # ---- in-kernel ReflectionPad2d((1,1,1,1)) of the intermediate ----------
    # padded[0] = original[1], padded[H+1] = original[H-2] (same along W);
    # columns are reflected last so the corners come out correctly.
    ypad_ref[:, 1:H + 1, 1:W + 1, :] = y1
    ypad_ref[:, 0:1,     1:W + 1, :] = y1[:, 1:2, :, :]            # top
    ypad_ref[:, H + 1:,  1:W + 1, :] = y1[:, H - 2:H - 1, :, :]    # bottom
    ypad_ref[:, :, 0:1,    :] = ypad_ref[:, :, 2:3, :]             # left (+corners)
    ypad_ref[:, :, W + 1:, :] = ypad_ref[:, :, W - 1:W, :]         # right (+corners)

    # ---- conv2 + ReLU ------------------------------------------------------
    y2 = conv3x3_relu(lambda dy, dx: ypad_ref[:, dy:dy + H, dx:dx + W, :],
                      w2_ref, b2_ref)                          # (NB*H*W, Cmid)

    # ---- mask head: sigmoid( tanh(y2 @ wm1) @ wm2 ) -------------------------
    t = jnp.tanh(jnp.dot(y2, wm1_ref[...],
                         preferred_element_type=jnp.float32))  # (NB*H*W, Chid)
    t = t.reshape(NB, H, W, Chid)
    # Chid -> 1 projection as a VPU multiply + lane reduction: output stays
    # lane-major (W on lanes) instead of a 1-lane-wide masked-store column.
    logits = jnp.sum(t * wm2_ref[...].reshape(1, 1, 1, Chid), axis=-1)
    o_ref[...] = jax.nn.sigmoid(logits).astype(o_ref.dtype)    # (NB, H, W)


def transit_mask_b_forward(x_nchw, params, *, images_per_step=1,
                           compute_dtype=jnp.bfloat16):
    """x_nchw: (N, in_c, H, W) float32 -> mask (N, 1, H, W) float32."""
    w1, b1, w2, b2, wm1, wm2 = params
    N, Cin, H, W = x_nchw.shape
    Cmid = w1.shape[3]
    Chid = wm1.shape[1]
    nb = images_per_step
    assert N % nb == 0, "images_per_step must divide the batch size"
    assert H >= 2 and W >= 2, "ReflectionPad2d(1) needs H, W >= 2"
    # NOTE: H and W that are multiples of 8 keep all in-kernel reshapes
    # layout-preserving (true for the demo shapes below).

    # NCHW -> NHWC + ReflectionPad2d of the *input*: data-movement glue done
    # once in XLA; cast to bf16 for the MXU (accumulation stays f32).
    x = jnp.transpose(x_nchw, (0, 2, 3, 1))
    xpad = jnp.pad(x, ((0, 0), (1, 1), (1, 1), (0, 0)),
                   mode="reflect").astype(compute_dtype)

    # Pack 3x3 weights once: (3, 3, Cin, Cout) -> (9*Cin, Cout); row-major
    # (dy, dx, cin) flattening matches the in-kernel im2col concatenation.
    w1p = w1.reshape(9 * Cin, Cmid).astype(compute_dtype)
    w2p = w2.reshape(9 * Cmid, Cmid).astype(compute_dtype)
    b1r = b1.reshape(1, Cmid).astype(jnp.float32)
    b2r = b2.reshape(1, Cmid).astype(jnp.float32)
    wm1r = wm1.astype(jnp.float32)                     # (Cmid, Chid)
    wm2r = wm2.reshape(1, Chid).astype(jnp.float32)    # (1, Chid)

    mask_hw = pl.pallas_call(
        _transit_mask_fused_kernel,
        out_shape=jax.ShapeDtypeStruct((N, H, W), jnp.float32),
        grid=(N // nb,),
        in_specs=[
            pl.BlockSpec((nb, H + 2, W + 2, Cin), lambda b: (b, 0, 0, 0)),
            pl.BlockSpec((9 * Cin, Cmid), lambda b: (0, 0)),
            pl.BlockSpec((1, Cmid), lambda b: (0, 0)),
            pl.BlockSpec((9 * Cmid, Cmid), lambda b: (0, 0)),
            pl.BlockSpec((1, Cmid), lambda b: (0, 0)),
            pl.BlockSpec((Cmid, Chid), lambda b: (0, 0)),
            pl.BlockSpec((1, Chid), lambda b: (0, 0)),
        ],
        out_specs=pl.BlockSpec((nb, H, W), lambda b: (b, 0, 0)),
        scratch_shapes=[pltpu.VMEM((nb, H + 2, W + 2, Cmid), compute_dtype)],
        compiler_params=pltpu.CompilerParams(
            dimension_semantics=("parallel",),
            vmem_limit_bytes=32 * 1024 * 1024),
    )(xpad, w1p, b1r, w2p, b2r, wm1r, wm2r)

    return mask_hw[:, None, :, :]          # -> (N, 1, H, W), matches torch


def _reference_forward(x_nchw, params):
    """Plain-JAX f32 reference (lax.conv) for a correctness sanity check."""
    w1, b1, w2, b2, wm1, wm2 = params
    x = jnp.transpose(x_nchw, (0, 2, 3, 1))
    dn = lax.conv_dimension_numbers(x.shape, w1.shape, ("NHWC", "HWIO", "NHWC"))

    def conv3(x, w, b):
        xp = jnp.pad(x, ((0, 0), (1, 1), (1, 1), (0, 0)), mode="reflect")
        y = lax.conv_general_dilated(xp, w, (1, 1), "VALID",
                                     dimension_numbers=dn)
        return jax.nn.relu(y + b)

    y = conv3(x, w1, b1)
    y = conv3(y, w2, b2)
    t = jnp.tanh(jnp.einsum("nhwc,co->nhwo", y, wm1))
    m = jax.nn.sigmoid(jnp.einsum("nhwc,co->nhwo", t, wm2))
    return jnp.transpose(m, (0, 3, 1, 2))


def init_params(key, in_c, out_c, dtype=jnp.float32):
    # Deterministic synthetic weights (shapes match the torch module).
    ks = jax.random.split(key, 6)
    w1 = jax.random.normal(ks[0], (3, 3, in_c, out_c), dtype) * 0.05
    b1 = jax.random.normal(ks[1], (out_c,), dtype) * 0.05
    w2 = jax.random.normal(ks[2], (3, 3, out_c, out_c), dtype) * 0.05
    b2 = jax.random.normal(ks[3], (out_c,), dtype) * 0.05
    wm1 = jax.random.normal(ks[4], (out_c, 64), dtype) * 0.05   # 1x1, no bias
    wm2 = jax.random.normal(ks[5], (64, 1), dtype) * 0.05       # 1x1, no bias
    return (w1, b1, w2, b2, wm1, wm2)


if __name__ == "__main__":
    N, in_c, out_c, H, W = 2, 16, 32, 16, 16   # small shapes for the demo
    key = jax.random.PRNGKey(0)
    kx, kp = jax.random.split(key)
    x = jax.random.normal(kx, (N, in_c, H, W), jnp.float32)
    params = init_params(kp, in_c, out_c)

    fwd = jax.jit(transit_mask_b_forward)
    mask = jax.block_until_ready(fwd(x, params))

    ref = jax.block_until_ready(_reference_forward(x, params))
    assert mask.shape == (N, 1, H, W)
    # Tolerance absorbs the bf16 MXU operands (accumulation is f32).
    err = float(jnp.max(jnp.abs(mask - ref)))
    assert jnp.allclose(mask, ref, rtol=1e-2, atol=1e-2), err

    print("KERNEL_OK")
</pallas_src>

<mosaic_0001>
module attributes {stable_mosaic.version = 11 : i64} {
  func.func @_transit_mask_fused_kernel(%arg0: i32, %arg1: memref<1x18x18x16xbf16, #tpu.memory_space<vmem>>, %arg2: memref<144x32xbf16, #tpu.memory_space<vmem>>, %arg3: memref<1x32xf32, #tpu.memory_space<vmem>>, %arg4: memref<288x32xbf16, #tpu.memory_space<vmem>>, %arg5: memref<1x32xf32, #tpu.memory_space<vmem>>, %arg6: memref<32x64xf32, #tpu.memory_space<vmem>>, %arg7: memref<1x64xf32, #tpu.memory_space<vmem>>, %arg8: memref<1x16x16xf32, #tpu.memory_space<vmem>>, %arg9: memref<1x18x18x32xbf16, #tpu.memory_space<vmem>>) attributes {dimension_semantics = [#tpu.dimension_semantics<parallel>], iteration_bounds = array<i64: 2>, scalar_prefetch = 0 : i64, scratch_operands = 1 : i64, tpu.core_type = #tpu.core_type<tc>, window_params = [{transform_indices = @transform_0, window_bounds = array<i64: 1, 18, 18, 16>}, {pipeline_mode = #tpu.pipeline_mode<synchronous>, transform_indices = @transform_1, window_bounds = array<i64: 144, 32>}, {pipeline_mode = #tpu.pipeline_mode<synchronous>, transform_indices = @transform_2, window_bounds = array<i64: 1, 32>}, {pipeline_mode = #tpu.pipeline_mode<synchronous>, transform_indices = @transform_3, window_bounds = array<i64: 288, 32>}, {pipeline_mode = #tpu.pipeline_mode<synchronous>, transform_indices = @transform_4, window_bounds = array<i64: 1, 32>}, {pipeline_mode = #tpu.pipeline_mode<synchronous>, transform_indices = @transform_5, window_bounds = array<i64: 32, 64>}, {pipeline_mode = #tpu.pipeline_mode<synchronous>, transform_indices = @transform_6, window_bounds = array<i64: 1, 64>}, {transform_indices = @transform_7, window_bounds = array<i64: 1, 16, 16>}]} {
    %c0 = arith.constant 0 : index
    %c0_0 = arith.constant 0 : index
    %c0_1 = arith.constant 0 : index
    %c0_2 = arith.constant 0 : index
    %0 = vector.load %arg1[%c0, %c0_0, %c0_1, %c0_2] : memref<1x18x18x16xbf16, #tpu.memory_space<vmem>>, vector<1x16x16x16xbf16>
    %c0_3 = arith.constant 0 : index
    %c0_4 = arith.constant 0 : index
    %c1 = arith.constant 1 : index
    %c0_5 = arith.constant 0 : index
    %1 = vector.load %arg1[%c0_3, %c0_4, %c1, %c0_5] : memref<1x18x18x16xbf16, #tpu.memory_space<vmem>>, vector<1x16x16x16xbf16>
    %c0_6 = arith.constant 0 : index
    %c0_7 = arith.constant 0 : index
    %c2 = arith.constant 2 : index
    %c0_8 = arith.constant 0 : index
    %2 = vector.load %arg1[%c0_6, %c0_7, %c2, %c0_8] : memref<1x18x18x16xbf16, #tpu.memory_space<vmem>>, vector<1x16x16x16xbf16>
    %c0_9 = arith.constant 0 : index
    %c1_10 = arith.constant 1 : index
    %c0_11 = arith.constant 0 : index
    %c0_12 = arith.constant 0 : index
    %3 = vector.load %arg1[%c0_9, %c1_10, %c0_11, %c0_12] : memref<1x18x18x16xbf16, #tpu.memory_space<vmem>>, vector<1x16x16x16xbf16>
    %c0_13 = arith.constant 0 : index
    %c1_14 = arith.constant 1 : index
    %c1_15 = arith.constant 1 : index
    %c0_16 = arith.constant 0 : index
    %4 = vector.load %arg1[%c0_13, %c1_14, %c1_15, %c0_16] : memref<1x18x18x16xbf16, #tpu.memory_space<vmem>>, vector<1x16x16x16xbf16>
    %c0_17 = arith.constant 0 : index
    %c1_18 = arith.constant 1 : index
    %c2_19 = arith.constant 2 : index
    %c0_20 = arith.constant 0 : index
    %5 = vector.load %arg1[%c0_17, %c1_18, %c2_19, %c0_20] : memref<1x18x18x16xbf16, #tpu.memory_space<vmem>>, vector<1x16x16x16xbf16>
    %c0_21 = arith.constant 0 : index
    %c2_22 = arith.constant 2 : index
    %c0_23 = arith.constant 0 : index
    %c0_24 = arith.constant 0 : index
    %6 = vector.load %arg1[%c0_21, %c2_22, %c0_23, %c0_24] : memref<1x18x18x16xbf16, #tpu.memory_space<vmem>>, vector<1x16x16x16xbf16>
    %c0_25 = arith.constant 0 : index
    %c2_26 = arith.constant 2 : index
    %c1_27 = arith.constant 1 : index
    %c0_28 = arith.constant 0 : index
    %7 = vector.load %arg1[%c0_25, %c2_26, %c1_27, %c0_28] : memref<1x18x18x16xbf16, #tpu.memory_space<vmem>>, vector<1x16x16x16xbf16>
    %c0_29 = arith.constant 0 : index
    %c2_30 = arith.constant 2 : index
    %c2_31 = arith.constant 2 : index
    %c0_32 = arith.constant 0 : index
    %8 = vector.load %arg1[%c0_29, %c2_30, %c2_31, %c0_32] : memref<1x18x18x16xbf16, #tpu.memory_space<vmem>>, vector<1x16x16x16xbf16>
    %9 = tpu.concatenate %0, %1, %2, %3, %4, %5, %6, %7, %8 in 3 : vector<1x16x16x16xbf16>, vector<1x16x16x16xbf16>, vector<1x16x16x16xbf16>, vector<1x16x16x16xbf16>, vector<1x16x16x16xbf16>, vector<1x16x16x16xbf16>, vector<1x16x16x16xbf16>, vector<1x16x16x16xbf16>, vector<1x16x16x16xbf16> -> vector<1x16x16x144xbf16>
    %10 = vector.shape_cast %9 : vector<1x16x16x144xbf16> to vector<256x144xbf16>
    %c0_33 = arith.constant 0 : index
    %c0_34 = arith.constant 0 : index
    %11 = vector.load %arg2[%c0_33, %c0_34] : memref<144x32xbf16, #tpu.memory_space<vmem>>, vector<144x32xbf16>
    %cst = arith.constant dense<0.000000e+00> : vector<256x32xf32>
    %12 = tpu.matmul %10, %11, %cst {dimension_numbers = #tpu.dot_dimension_numbers<[1], [0], [0], [1], [0, 0, 1, 1], [], []>} : vector<256x144xbf16>, vector<144x32xbf16>, vector<256x32xf32> -> vector<256x32xf32>
    %c0_35 = arith.constant 0 : index
    %c0_36 = arith.constant 0 : index
    %13 = vector.load %arg3[%c0_35, %c0_36] : memref<1x32xf32, #tpu.memory_space<vmem>>, vector<1x32xf32>
    %14 = vector.broadcast %13 : vector<1x32xf32> to vector<256x32xf32>
    %15 = arith.addf %12, %14 : vector<256x32xf32>
    %cst_37 = arith.constant 0.000000e+00 : f32
    %16 = vector.broadcast %cst_37 : f32 to vector<256x32xf32>
    %17 = arith.maximumf %15, %16 : vector<256x32xf32>
    %18 = vector.shape_cast %17 : vector<256x32xf32> to vector<1x16x16x32xf32>
    %19 = arith.truncf %18 : vector<1x16x16x32xf32> to vector<1x16x16x32xbf16>
    %c0_38 = arith.constant 0 : index
    %c1_39 = arith.constant 1 : index
    %c1_40 = arith.constant 1 : index
    %c0_41 = arith.constant 0 : index
    %20 = vector.load %arg9[%c0_38, %c1_39, %c1_40, %c0_41] : memref<1x18x18x32xbf16, #tpu.memory_space<vmem>>, vector<1x16x16x32xbf16>
    tpu.vector_store %arg9[%c0_38, %c1_39, %c1_40, %c0_41], %19 {strides = array<i32>} : memref<1x18x18x32xbf16, #tpu.memory_space<vmem>>, vector<1x16x16x32xbf16>,
    %21 = vector.extract_strided_slice %19 {offsets = [0, 1, 0, 0], sizes = [1, 1, 16, 32], strides = [1, 1, 1, 1]} : vector<1x16x16x32xbf16> to vector<1x1x16x32xbf16>
    %c0_42 = arith.constant 0 : index
    %c0_43 = arith.constant 0 : index
    %c1_44 = arith.constant 1 : index
    %c0_45 = arith.constant 0 : index
    %22 = vector.load %arg9[%c0_42, %c0_43, %c1_44, %c0_45] : memref<1x18x18x32xbf16, #tpu.memory_space<vmem>>, vector<1x1x16x32xbf16>
    tpu.vector_store %arg9[%c0_42, %c0_43, %c1_44, %c0_45], %21 {strides = array<i32>} : memref<1x18x18x32xbf16, #tpu.memory_space<vmem>>, vector<1x1x16x32xbf16>,
    %23 = vector.extract_strided_slice %19 {offsets = [0, 14, 0, 0], sizes = [1, 1, 16, 32], strides = [1, 1, 1, 1]} : vector<1x16x16x32xbf16> to vector<1x1x16x32xbf16>
    %c0_46 = arith.constant 0 : index
    %c17 = arith.constant 17 : index
    %c1_47 = arith.constant 1 : index
    %c0_48 = arith.constant 0 : index
    %24 = vector.load %arg9[%c0_46, %c17, %c1_47, %c0_48] : memref<1x18x18x32xbf16, #tpu.memory_space<vmem>>, vector<1x1x16x32xbf16>
    tpu.vector_store %arg9[%c0_46, %c17, %c1_47, %c0_48], %23 {strides = array<i32>} : memref<1x18x18x32xbf16, #tpu.memory_space<vmem>>, vector<1x1x16x32xbf16>,
    %c0_49 = arith.constant 0 : index
    %c0_50 = arith.constant 0 : index
    %c2_51 = arith.constant 2 : index
    %c0_52 = arith.constant 0 : index
    %25 = vector.load %arg9[%c0_49, %c0_50, %c2_51, %c0_52] : memref<1x18x18x32xbf16, #tpu.memory_space<vmem>>, vector<1x18x1x32xbf16>
    %c0_53 = arith.constant 0 : index
    %c0_54 = arith.constant 0 : index
    %c0_55 = arith.constant 0 : index
    %c0_56 = arith.constant 0 : index
    %26 = vector.load %arg9[%c0_53, %c0_54, %c0_55, %c0_56] : memref<1x18x18x32xbf16, #tpu.memory_space<vmem>>, vector<1x18x1x32xbf16>
    tpu.vector_store %arg9[%c0_53, %c0_54, %c0_55, %c0_56], %25 {strides = array<i32>} : memref<1x18x18x32xbf16, #tpu.memory_space<vmem>>, vector<1x18x1x32xbf16>,
    %c0_57 = arith.constant 0 : index
    %c0_58 = arith.constant 0 : index
    %c15 = arith.constant 15 : index
    %c0_59 = arith.constant 0 : index
    %27 = vector.load %arg9[%c0_57, %c0_58, %c15, %c0_59] : memref<1x18x18x32xbf16, #tpu.memory_space<vmem>>, vector<1x18x1x32xbf16>
    %c0_60 = arith.constant 0 : index
    %c0_61 = arith.constant 0 : index
    %c17_62 = arith.constant 17 : index
    %c0_63 = arith.constant 0 : index
    %28 = vector.load %arg9[%c0_60, %c0_61, %c17_62, %c0_63] : memref<1x18x18x32xbf16, #tpu.memory_space<vmem>>, vector<1x18x1x32xbf16>
    tpu.vector_store %arg9[%c0_60, %c0_61, %c17_62, %c0_63], %27 {strides = array<i32>} : memref<1x18x18x32xbf16, #tpu.memory_space<vmem>>, vector<1x18x1x32xbf16>,
    %c0_64 = arith.constant 0 : index
    %c0_65 = arith.constant 0 : index
    %c0_66 = arith.constant 0 : index
    %c0_67 = arith.constant 0 : index
    %29 = vector.load %arg9[%c0_64, %c0_65, %c0_66, %c0_67] : memref<1x18x18x32xbf16, #tpu.memory_space<vmem>>, vector<1x16x16x32xbf16>
    %c0_68 = arith.constant 0 : index
    %c0_69 = arith.constant 0 : index
    %c1_70 = arith.constant 1 : index
    %c0_71 = arith.constant 0 : index
    %30 = vector.load %arg9[%c0_68, %c0_69, %c1_70, %c0_71] : memref<1x18x18x32xbf16, #tpu.memory_space<vmem>>, vector<1x16x16x32xbf16>
    %c0_72 = arith.constant 0 : index
    %c0_73 = arith.constant 0 : index
    %c2_74 = arith.constant 2 : index
    %c0_75 = arith.constant 0 : index
    %31 = vector.load %arg9[%c0_72, %c0_73, %c2_74, %c0_75] : memref<1x18x18x32xbf16, #tpu.memory_space<vmem>>, vector<1x16x16x32xbf16>
    %c0_76 = arith.constant 0 : index
    %c1_77 = arith.constant 1 : index
    %c0_78 = arith.constant 0 : index
    %c0_79 = arith.constant 0 : index
    %32 = vector.load %arg9[%c0_76, %c1_77, %c0_78, %c0_79] : memref<1x18x18x32xbf16, #tpu.memory_space<vmem>>, vector<1x16x16x32xbf16>
    %c0_80 = arith.constant 0 : index
    %c1_81 = arith.constant 1 : index
    %c1_82 = arith.constant 1 : index
    %c0_83 = arith.constant 0 : index
    %33 = vector.load %arg9[%c0_80, %c1_81, %c1_82, %c0_83] : memref<1x18x18x32xbf16, #tpu.memory_space<vmem>>, vector<1x16x16x32xbf16>
    %c0_84 = arith.constant 0 : index
    %c1_85 = arith.constant 1 : index
    %c2_86 = arith.constant 2 : index
    %c0_87 = arith.constant 0 : index
    %34 = vector.load %arg9[%c0_84, %c1_85, %c2_86, %c0_87] : memref<1x18x18x32xbf16, #tpu.memory_space<vmem>>, vector<1x16x16x32xbf16>
    %c0_88 = arith.constant 0 : index
    %c2_89 = arith.constant 2 : index
    %c0_90 = arith.constant 0 : index
    %c0_91 = arith.constant 0 : index
    %35 = vector.load %arg9[%c0_88, %c2_89, %c0_90, %c0_91] : memref<1x18x18x32xbf16, #tpu.memory_space<vmem>>, vector<1x16x16x32xbf16>
    %c0_92 = arith.constant 0 : index
    %c2_93 = arith.constant 2 : index
    %c1_94 = arith.constant 1 : index
    %c0_95 = arith.constant 0 : index
    %36 = vector.load %arg9[%c0_92, %c2_93, %c1_94, %c0_95] : memref<1x18x18x32xbf16, #tpu.memory_space<vmem>>, vector<1x16x16x32xbf16>
    %c0_96 = arith.constant 0 : index
    %c2_97 = arith.constant 2 : index
    %c2_98 = arith.constant 2 : index
    %c0_99 = arith.constant 0 : index
    %37 = vector.load %arg9[%c0_96, %c2_97, %c2_98, %c0_99] : memref<1x18x18x32xbf16, #tpu.memory_space<vmem>>, vector<1x16x16x32xbf16>
    %38 = tpu.concatenate %29, %30, %31, %32, %33, %34, %35, %36, %37 in 3 : vector<1x16x16x32xbf16>, vector<1x16x16x32xbf16>, vector<1x16x16x32xbf16>, vector<1x16x16x32xbf16>, vector<1x16x16x32xbf16>, vector<1x16x16x32xbf16>, vector<1x16x16x32xbf16>, vector<1x16x16x32xbf16>, vector<1x16x16x32xbf16> -> vector<1x16x16x288xbf16>
    %39 = vector.shape_cast %38 : vector<1x16x16x288xbf16> to vector<256x288xbf16>
    %c0_100 = arith.constant 0 : index
    %c0_101 = arith.constant 0 : index
    %40 = vector.load %arg4[%c0_100, %c0_101] : memref<288x32xbf16, #tpu.memory_space<vmem>>, vector<288x32xbf16>
    %cst_102 = arith.constant dense<0.000000e+00> : vector<256x32xf32>
    %41 = tpu.matmul %39, %40, %cst_102 {dimension_numbers = #tpu.dot_dimension_numbers<[1], [0], [0], [1], [0, 0, 1, 1], [], []>} : vector<256x288xbf16>, vector<288x32xbf16>, vector<256x32xf32> -> vector<256x32xf32>
    %c0_103 = arith.constant 0 : index
    %c0_104 = arith.constant 0 : index
    %42 = vector.load %arg5[%c0_103, %c0_104] : memref<1x32xf32, #tpu.memory_space<vmem>>, vector<1x32xf32>
    %43 = vector.broadcast %42 : vector<1x32xf32> to vector<256x32xf32>
    %44 = arith.addf %41, %43 : vector<256x32xf32>
    %cst_105 = arith.constant 0.000000e+00 : f32
    %45 = vector.broadcast %cst_105 : f32 to vector<256x32xf32>
    %46 = arith.maximumf %44, %45 : vector<256x32xf32>
    %c0_106 = arith.constant 0 : index
    %c0_107 = arith.constant 0 : index
    %47 = vector.load %arg6[%c0_106, %c0_107] : memref<32x64xf32, #tpu.memory_space<vmem>>, vector<32x64xf32>
    %cst_108 = arith.constant dense<0.000000e+00> : vector<256x64xf32>
    %48 = tpu.matmul %46, %47, %cst_108 {dimension_numbers = #tpu.dot_dimension_numbers<[1], [0], [0], [1], [0, 0, 1, 1], [], []>} : vector<256x32xf32>, vector<32x64xf32>, vector<256x64xf32> -> vector<256x64xf32>
    %49 = math.tanh %48 : vector<256x64xf32>
    %50 = vector.shape_cast %49 : vector<256x64xf32> to vector<1x16x16x64xf32>
    %c0_109 = arith.constant 0 : index
    %c0_110 = arith.constant 0 : index
    %51 = vector.load %arg7[%c0_109, %c0_110] : memref<1x64xf32, #tpu.memory_space<vmem>>, vector<1x64xf32>
    %52 = vector.shape_cast %51 : vector<1x64xf32> to vector<1x1x1x64xf32>
    %53 = vector.broadcast %52 : vector<1x1x1x64xf32> to vector<1x16x16x64xf32>
    %54 = arith.mulf %50, %53 : vector<1x16x16x64xf32>
    %cst_111 = arith.constant dense<0.000000e+00> : vector<1x16x16xf32>
    %55 = vector.multi_reduction <add>, %54, %cst_111 [3] : vector<1x16x16x64xf32> to vector<1x16x16xf32>
    %56 = arith.negf %55 : vector<1x16x16xf32>
    %57 = math.exp %56 : vector<1x16x16xf32>
    %cst_112 = arith.constant 1.000000e+00 : f32
    %58 = vector.broadcast %cst_112 : f32 to vector<1x16x16xf32>
    %59 = arith.addf %58, %57 : vector<1x16x16xf32>
    %60 = arith.divf %58, %59 : vector<1x16x16xf32>
    %c0_113 = arith.constant 0 : index
    %c0_114 = arith.constant 0 : index
    %c0_115 = arith.constant 0 : index
    %61 = vector.load %arg8[%c0_113, %c0_114, %c0_115] : memref<1x16x16xf32, #tpu.memory_space<vmem>>, vector<1x16x16xf32>
    tpu.vector_store %arg8[%c0_113, %c0_114, %c0_115], %60 {strides = array<i32>} : memref<1x16x16xf32, #tpu.memory_space<vmem>>, vector<1x16x16xf32>,
    return
  }
  func.func @transform_0(%arg0: i32) -> (i32, i32, i32, i32) {
    %c0_i32 = arith.constant 0 : i32
    %c0_i32_0 = arith.constant 0 : i32
    %c0_i32_1 = arith.constant 0 : i32
    %c0_i32_2 = arith.constant 0 : i32
    return %arg0, %c0_i32, %c0_i32_0, %c0_i32_1 : i32, i32, i32, i32
  }
  func.func @transform_1(%arg0: i32) -> (i32, i32) {
    %c0_i32 = arith.constant 0 : i32
    %c0_i32_0 = arith.constant 0 : i32
    %c0_i32_1 = arith.constant 0 : i32
    return %c0_i32, %c0_i32_0 : i32, i32
  }
  func.func @transform_2(%arg0: i32) -> (i32, i32) {
    %c0_i32 = arith.constant 0 : i32
    %c0_i32_0 = arith.constant 0 : i32
    %c0_i32_1 = arith.constant 0 : i32
    return %c0_i32, %c0_i32_0 : i32, i32
  }
  func.func @transform_3(%arg0: i32) -> (i32, i32) {
    %c0_i32 = arith.constant 0 : i32
    %c0_i32_0 = arith.constant 0 : i32
    %c0_i32_1 = arith.constant 0 : i32
    return %c0_i32, %c0_i32_0 : i32, i32
  }
  func.func @transform_4(%arg0: i32) -> (i32, i32) {
    %c0_i32 = arith.constant 0 : i32
    %c0_i32_0 = arith.constant 0 : i32
    %c0_i32_1 = arith.constant 0 : i32
    return %c0_i32, %c0_i32_0 : i32, i32
  }
  func.func @transform_5(%arg0: i32) -> (i32, i32) {
    %c0_i32 = arith.constant 0 : i32
    %c0_i32_0 = arith.constant 0 : i32
    %c0_i32_1 = arith.constant 0 : i32
    return %c0_i32, %c0_i32_0 : i32, i32
  }
  func.func @transform_6(%arg0: i32) -> (i32, i32) {
    %c0_i32 = arith.constant 0 : i32
    %c0_i32_0 = arith.constant 0 : i32
    %c0_i32_1 = arith.constant 0 : i32
    return %c0_i32, %c0_i32_0 : i32, i32
  }
  func.func @transform_7(%arg0: i32) -> (i32, i32, i32) {
    %c0_i32 = arith.constant 0 : i32
    %c0_i32_0 = arith.constant 0 : i32
    %c0_i32_1 = arith.constant 0 : i32
    return %arg0, %c0_i32, %c0_i32_0 : i32, i32, i32
  }
}

</mosaic_0001>

<llo_original>
// kernel: transit_mask_b_forward.1
$region0: #{transit_mask_b_forward.1}
  #allocation0 [shape = 'u32[]', space=smem, size = 0x4, offset = 0x4, fixed_abs, tag = 'smem constant byte address 0x4 - core index']
  #allocation1 [shape = 'u32[144,128]{1,0:T(1,128)}', space=vmem, size = 0x12000, scoped, tag = 'internal scratch']
  #allocation2 [shape = 'bf16[1,18,18,32]{3,2,1,0:T(8,128)(2,1)}', space=vmem, size = 0x1b000, scoped, tag = 'scratch operand']
  %s0 = inlined_call_operand.vmem [shape: bf16[2,18,18,16], index: 0, kind: input, shape index: {}]
  %s1 = inlined_call_operand.vmem [shape: bf16[144,32], index: 1, kind: input, shape index: {}]
  %s2 = inlined_call_operand.vmem [shape: f32[1,32], index: 2, kind: input, shape index: {}]
  %s3 = inlined_call_operand.vmem [shape: bf16[288,32], index: 3, kind: input, shape index: {}]
  %s4 = inlined_call_operand.vmem [shape: f32[1,32], index: 4, kind: input, shape index: {}]
  %s5 = inlined_call_operand.vmem [shape: f32[32,64], index: 5, kind: input, shape index: {}]
  %s6 = inlined_call_operand.vmem [shape: f32[1,64], index: 6, kind: input, shape index: {}]
  %s7 = inlined_call_operand.hbm [shape: f32[2,16,16], index: 7, kind: output, shape index: {}]
  %s8 = sld [smem:[#allocation0]]
  $region61: #{transit_mask_b_forward.1} parent=0
    _
  %s10 = ssub.s32 1, %s8
  %s11 = scalar_select 0, %s10, %s8
  $region1: #{transit_mask_b_forward.1} parent=0
    #allocation3 [shape = 'u8[16384]{0}', space=vmem, size = 0x4000, scoped, tag = 'output window, operand 0']
    #allocation4 [shape = 's32[2]{0}', space=sflag, size = 0x8, scoped, tag = 'scoped memory for transit_mask_b_forward.1']
    %12 = vsyncpa [#allocation4], 0
    %s13 = scalar_lea.sflag [#allocation4], 1
    %14 = vsyncpa %s13, 0
    loop: start=0, step=1, limit=4
    $region2: #{transit_mask_b_forward.1} parent=1 // loop_pre_header
      _
    $region3: #{transit_mask_b_forward.1} parent=1 // loop_header
      %s16 = sphi 0, %s20
      %p17 = scmp.ge.s32.totalorder %s16, 4
      %s26 = sphi 0, %s28
      %s29 = sphi 0, %s26
      %s30 = sphi 0, %s29
      %s46 = sphi 0, %s30
      %s50 = sphi 0, %s50
      %s52 = sphi 0, %s50
      %s53 = sphi 0, %s52
      %s67 = sphi 0, %s53
      %s71 = sphi 0, %s71
      %s73 = sphi 0, %s71
      %s74 = sphi 0, %s73
      %s88 = sphi 0, %s74
      %s92 = sphi 0, %s92
      %s94 = sphi 0, %s92
      %s95 = sphi 0, %s94
      %s109 = sphi 0, %s95
      %s113 = sphi 0, %s113
      %s115 = sphi 0, %s113
      %s116 = sphi 0, %s115
      %s130 = sphi 0, %s116
      %s134 = sphi 0, %s134
      %s136 = sphi 0, %s134
      %s137 = sphi 0, %s136
      %s151 = sphi 0, %s137
      %s155 = sphi 0, %s155
      %s157 = sphi 0, %s155
      %s158 = sphi 0, %s157
      %s172 = sphi 0, %s158
      %s178 = sphi 0, %s180
      %s181 = sphi 0, %s178
      %s182 = sphi 0, %s181
      %s198 = sphi 0, %s182
    $region4: #{transit_mask_b_forward.1} parent=1 // loop_header_branch
      %19 = sbr.rel (%p17) target = $region8
    $region5: #{transit_mask_b_forward.1} parent=1 // loop_body
      %s21 = ssub.s32 %s16, 1
      %s22 = ssub.s32 %s16, 2
      %s23 = sadd.s32 %s16, 1
      %s24 = ssub.s32 %s16, %s23
      %p25 = scmp.eq.s32.totalorder %s24, 0
      %s27 = sadd.s32 %s26, 1
      %s28 = scalar_select %p25, %s26, %s27
      %p31 = pneg %p25
      %p32 = scmp.eq.s32.totalorder %s16, 1
      %p33 = por %p31, %p32
      %p34 = scmp.ne.s32.totalorder %s26, %s29
      %p35 = scmp.eq.s32.totalorder %s16, 0
      %p36 = por %p34, %p35
      %p37 = scmp.ne.s32.totalorder %s26, %s29
      %p38 = scmp.eq.s32.totalorder %s21, 1
      %p39 = por %p37, %p38
      %p40 = scmp.ne.s32.totalorder %s29, %s30
      %p41 = scmp.eq.s32.totalorder %s21, 0
      %p42 = por %p40, %p41
      %p43 = scmp.ne.s32.totalorder %s29, %s30
      %p44 = scmp.eq.s32.totalorder %s22, 1
      %p45 = por %p43, %p44
      %p47 = scmp.ne.s32.totalorder %s30, %s46
      %p48 = scmp.eq.s32.totalorder %s22, 0
      %p49 = por %p47, %p48
      %s51 = sadd.s32 %s50, 1
      %p54 = scmp.eq.s32.totalorder %s16, 1
      %p55 = scmp.ne.s32.totalorder %s50, %s52
      %p56 = scmp.eq.s32.totalorder %s16, 0
      %p57 = por %p55, %p56
      %p58 = scmp.ne.s32.totalorder %s50, %s52
      %p59 = scmp.eq.s32.totalorder %s21, 1
      %p60 = por %p58, %p59
      %p61 = scmp.ne.s32.totalorder %s52, %s53
      %p62 = scmp.eq.s32.totalorder %s21, 0
      %p63 = por %p61, %p62
      %p64 = scmp.ne.s32.totalorder %s52, %s53
      %p65 = scmp.eq.s32.totalorder %s22, 1
      %p66 = por %p64, %p65
      %p68 = scmp.ne.s32.totalorder %s53, %s67
      %p69 = scmp.eq.s32.totalorder %s22, 0
      %p70 = por %p68, %p69
      %s72 = sadd.s32 %s71, 1
      %p75 = scmp.eq.s32.totalorder %s16, 1
      %p76 = scmp.ne.s32.totalorder %s71, %s73
      %p77 = scmp.eq.s32.totalorder %s16, 0
      %p78 = por %p76, %p77
      %p79 = scmp.ne.s32.totalorder %s71, %s73
      %p80 = scmp.eq.s32.totalorder %s21, 1
      %p81 = por %p79, %p80
      %p82 = scmp.ne.s32.totalorder %s73, %s74
      %p83 = scmp.eq.s32.totalorder %s21, 0
      %p84 = por %p82, %p83
      %p85 = scmp.ne.s32.totalorder %s73, %s74
      %p86 = scmp.eq.s32.totalorder %s22, 1
      %p87 = por %p85, %p86
      %p89 = scmp.ne.s32.totalorder %s74, %s88
      %p90 = scmp.eq.s32.totalorder %s22, 0
      %p91 = por %p89, %p90
      %s93 = sadd.s32 %s92, 1
      %p96 = scmp.eq.s32.totalorder %s16, 1
      %p97 = scmp.ne.s32.totalorder %s92, %s94
      %p98 = scmp.eq.s32.totalorder %s16, 0
      %p99 = por %p97, %p98
      %p100 = scmp.ne.s32.totalorder %s92, %s94
      %p101 = scmp.eq.s32.totalorder %s21, 1
      %p102 = por %p100, %p101
      %p103 = scmp.ne.s32.totalorder %s94, %s95
      %p104 = scmp.eq.s32.totalorder %s21, 0
      %p105 = por %p103, %p104
      %p106 = scmp.ne.s32.totalorder %s94, %s95
      %p107 = scmp.eq.s32.totalorder %s22, 1
      %p108 = por %p106, %p107
      %p110 = scmp.ne.s32.totalorder %s95, %s109
      %p111 = scmp.eq.s32.totalorder %s22, 0
      %p112 = por %p110, %p111
      %s114 = sadd.s32 %s113, 1
      %p117 = scmp.eq.s32.totalorder %s16, 1
      %p118 = scmp.ne.s32.totalorder %s113, %s115
      %p119 = scmp.eq.s32.totalorder %s16, 0
      %p120 = por %p118, %p119
      %p121 = scmp.ne.s32.totalorder %s113, %s115
      %p122 = scmp.eq.s32.totalorder %s21, 1
      %p123 = por %p121, %p122
      %p124 = scmp.ne.s32.totalorder %s115, %s116
      %p125 = scmp.eq.s32.totalorder %s21, 0
      %p126 = por %p124, %p125
      %p127 = scmp.ne.s32.totalorder %s115, %s116
      %p128 = scmp.eq.s32.totalorder %s22, 1
      %p129 = por %p127, %p128
      %p131 = scmp.ne.s32.totalorder %s116, %s130
      %p132 = scmp.eq.s32.totalorder %s22, 0
      %p133 = por %p131, %p132
      %s135 = sadd.s32 %s134, 1
      %p138 = scmp.eq.s32.totalorder %s16, 1
      %p139 = scmp.ne.s32.totalorder %s134, %s136
      %p140 = scmp.eq.s32.totalorder %s16, 0
      %p141 = por %p139, %p140
      %p142 = scmp.ne.s32.totalorder %s134, %s136
      %p143 = scmp.eq.s32.totalorder %s21, 1
      %p144 = por %p142, %p143
      %p145 = scmp.ne.s32.totalorder %s136, %s137
      %p146 = scmp.eq.s32.totalorder %s21, 0
      %p147 = por %p145, %p146
      %p148 = scmp.ne.s32.totalorder %s136, %s137
      %p149 = scmp.eq.s32.totalorder %s22, 1
      %p150 = por %p148, %p149
      %p152 = scmp.ne.s32.totalorder %s137, %s151
      %p153 = scmp.eq.s32.totalorder %s22, 0
      %p154 = por %p152, %p153
      %s156 = sadd.s32 %s155, 1
      %p159 = scmp.eq.s32.totalorder %s16, 1
      %p160 = scmp.ne.s32.totalorder %s155, %s157
      %p161 = scmp.eq.s32.totalorder %s16, 0
      %p162 = por %p160, %p161
      %p163 = scmp.ne.s32.totalorder %s155, %s157
      %p164 = scmp.eq.s32.totalorder %s21, 1
      %p165 = por %p163, %p164
      %p166 = scmp.ne.s32.totalorder %s157, %s158
      %p167 = scmp.eq.s32.totalorder %s21, 0
      %p168 = por %p166, %p167
      %p169 = scmp.ne.s32.totalorder %s157, %s158
      %p170 = scmp.eq.s32.totalorder %s22, 1
      %p171 = por %p169, %p170
      %p173 = scmp.ne.s32.totalorder %s158, %s172
      %p174 = scmp.eq.s32.totalorder %s22, 0
      %p175 = por %p173, %p174
      %s176 = ssub.s32 %s16, %s23
      %p177 = scmp.eq.s32.totalorder %s176, 0
      %s179 = sadd.s32 %s178, 1
      %s180 = scalar_select %p177, %s178, %s179
      %p183 = pneg %p177
      %p184 = scmp.eq.s32.totalorder %s16, 1
      %p185 = por %p183, %p184
      %p186 = scmp.ne.s32.totalorder %s178, %s181
      %p187 = scmp.eq.s32.totalorder %s16, 0
      %p188 = por %p186, %p187
      %p189 = scmp.ne.s32.totalorder %s178, %s181
      %p190 = scmp.eq.s32.totalorder %s21, 1
      %p191 = por %p189, %p190
      %p192 = scmp.ne.s32.totalorder %s181, %s182
      %p193 = scmp.eq.s32.totalorder %s21, 0
      %p194 = por %p192, %p193
      %p195 = scmp.ne.s32.totalorder %s181, %s182
      %p196 = scmp.eq.s32.totalorder %s22, 1
      %p197 = por %p195, %p196
      %p199 = scmp.ne.s32.totalorder %s182, %s198
      %p200 = scmp.eq.s32.totalorder %s22, 0
      %p201 = por %p199, %p200
      %p202 = scmp.le.s32.totalorder 1, %s16
      %p203 = scmp.lt.s32.totalorder %s16, 3
      %p204 = pnand %p202, %p203
      %p205 = pneg %p204
      // Predicated region
      $region9: #{transit_mask_b_forward.1} parent=5 // pred_check
        _
      $region10: #{transit_mask_b_forward.1} parent=5 // pred_check_branch
        %207 = sbr.rel (%p204) target = $region12
      $region11: #{transit_mask_b_forward.1} parent=5 // pred_region
        %s208 = ssub.s32 %s16, 1
        // Predicated region
        $region13: #{transit_mask_b_forward.1} parent=11 // pred_check
          %p209 = pneg %p63
        $region14: #{transit_mask_b_forward.1} parent=11 // pred_check_branch
          %211 = sbr.rel (%p209) target = $region16
        $region15: #{transit_mask_b_forward.1} parent=11 // pred_region
          _
        $region16: #{transit_mask_b_forward.1} parent=11 // pred_fallthru
          _
        // Predicated region
        $region17: #{transit_mask_b_forward.1} parent=11 // pred_check
          %p212 = pneg %p84
        $region18: #{transit_mask_b_forward.1} parent=11 // pred_check_branch
          %214 = sbr.rel (%p212) target = $region20
        $region19: #{transit_mask_b_forward.1} parent=11 // pred_region
          _
        $region20: #{transit_mask_b_forward.1} parent=11 // pred_fallthru
          _
        // Predicated region
        $region21: #{transit_mask_b_forward.1} parent=11 // pred_check
          %p215 = pneg %p105
        $region22: #{transit_mask_b_forward.1} parent=11 // pred_check_branch
          %217 = sbr.rel (%p215) target = $region24
        $region23: #{transit_mask_b_forward.1} parent=11 // pred_region
          _
        $region24: #{transit_mask_b_forward.1} parent=11 // pred_fallthru
          _
        // Predicated region
        $region25: #{transit_mask_b_forward.1} parent=11 // pred_check
          %p218 = pneg %p126
        $region26: #{transit_mask_b_forward.1} parent=11 // pred_check_branch
          %220 = sbr.rel (%p218) target = $region28
        $region27: #{transit_mask_b_forward.1} parent=11 // pred_region
          _
        $region28: #{transit_mask_b_forward.1} parent=11 // pred_fallthru
          _
        // Predicated region
        $region29: #{transit_mask_b_forward.1} parent=11 // pred_check
          %p221 = pneg %p147
        $region30: #{transit_mask_b_forward.1} parent=11 // pred_check_branch
          %223 = sbr.rel (%p221) target = $region32
        $region31: #{transit_mask_b_forward.1} parent=11 // pred_region
          _
        $region32: #{transit_mask_b_forward.1} parent=11 // pred_fallthru
          _
        // Predicated region
        $region33: #{transit_mask_b_forward.1} parent=11 // pred_check
          %p224 = pneg %p168
        $region34: #{transit_mask_b_forward.1} parent=11 // pred_check_branch
          %226 = sbr.rel (%p224) target = $region36
        $region35: #{transit_mask_b_forward.1} parent=11 // pred_region
          _
        $region36: #{transit_mask_b_forward.1} parent=11 // pred_fallthru
          _
      $region12: #{transit_mask_b_forward.1} parent=5 // pred_fallthru
        _
      %p227 = scmp.lt.s32.totalorder %s16, 2
      // Predicated region
      $region37: #{transit_mask_b_forward.1} parent=5 // pred_check
        %p228 = pneg %p227
      $region38: #{transit_mask_b_forward.1} parent=5 // pred_check_branch
        %230 = sbr.rel (%p228) target = $region40
      $region39: #{transit_mask_b_forward.1} parent=5 // pred_region
        // Predicated region
        $region41: #{transit_mask_b_forward.1} parent=39 // pred_check
          %p231 = pneg %p36
        $region42: #{transit_mask_b_forward.1} parent=39 // pred_check_branch
          %233 = sbr.rel (%p231) target = $region44
        $region43: #{transit_mask_b_forward.1} parent=39 // pred_region
          %p234 = scmp.lt.s32.totalorder %s16, 1
          %s235 = scalar_select %p234, %s16, 1
          %s236 = smul.addr %s235, 54
          %s237 = smul.addr %s236, 4
          %s238 = scalar_lea.vmem %s0, %s237
        $region44: #{transit_mask_b_forward.1} parent=39 // pred_fallthru
          _
      $region40: #{transit_mask_b_forward.1} parent=5 // pred_fallthru
        _
      %p239 = scmp.le.s32.totalorder 1, %s16
      %p240 = scmp.lt.s32.totalorder %s16, 3
      %p241 = pnand %p239, %p240
      %p242 = pneg %p241
      // Predicated region
      $region45: #{transit_mask_b_forward.1} parent=5 // pred_check
        _
      $region46: #{transit_mask_b_forward.1} parent=5 // pred_check_branch
        %244 = sbr.rel (%p241) target = $region48
      $region47: #{transit_mask_b_forward.1} parent=5 // pred_region
        %s245 = ssub.s32 %s16, 1
        %p246 = scmp.lt.s32.totalorder %s21, 1
        %s247 = scalar_select %p246, %s21, 1
        %s248 = smul.addr %s247, 54
        %s249 = smul.addr %s248, 4
        %s250 = scalar_lea.vmem %s0, %s249
        %p251 = pneg %p42
        %p252 = pneg %p39
        %p253 = pneg %p63
        %p254 = pneg %p60
        %p255 = pneg %p84
        %p256 = pneg %p81
        %p257 = pneg %p105
        %p258 = pneg %p102
        %p259 = pneg %p126
        %p260 = pneg %p123
        %p261 = pneg %p147
        %p262 = pneg %p144
        %p263 = pneg %p168
        %p264 = pneg %p165
        %p265 = pneg %p194
        %p266 = pneg %p191
        %s267 = sand.u32 %s181, 1
        %s268 = scalar_lea.sflag [#allocation4], %s267
        %s269 = sand.u32 %s181, 1
        %s270 = smul.addr %s269, 16
        %s271 = scalar_lea.vmem [#allocation3], %s270
        %p272 = scmp.lt.s32.totalorder %s21, 1
        %s273 = scalar_select %p272, %s21, 1
        %s274 = smul.addr %s273, 54
        %s275 = smul.addr %s274, 4
        %s276 = scalar_lea.vmem %s0, %s275
        %v278 = vld [vmem:[%s276] sm:$0xf]
        %v279 = vld [vmem:[%s276 + $0x4] sm:$0xf]
        %v280 = vld [vmem:[%s276 + $0xc] sm:$0xf]
        %v281 = vld [vmem:[%s276 + $0x10] sm:$0xf]
        %v282 = vld [vmem:[%s276 + $0x18] sm:$0xf]
        %v283 = vld [vmem:[%s276 + $0x1c] sm:$0xf]
        %v284 = vld [vmem:[%s276 + $0x24] sm:$0xf]
        %v285 = vld [vmem:[%s276 + $0x28] sm:$0xf]
        %v286 = vld [vmem:[%s276 + $0x30] sm:$0xf]
        %v287 = vld [vmem:[%s276 + $0x34] sm:$0xf]
        %v288 = vld [vmem:[%s276 + $0x3c] sm:$0xf]
        %v289 = vld [vmem:[%s276 + $0x40] sm:$0xf]
        %v290 = vld [vmem:[%s276 + $0x48] sm:$0xf]
        %v291 = vld [vmem:[%s276 + $0x4c] sm:$0xf]
        %v292 = vld [vmem:[%s276 + $0x54] sm:$0xf]
        %v293 = vld [vmem:[%s276 + $0x58] sm:$0xf]
        %v294 = vld [vmem:[%s276 + $0x60] sm:$0xf]
        %v295 = vld [vmem:[%s276 + $0x64] sm:$0xf]
        %v296 = vld [vmem:[%s276 + $0x6c] sm:$0xf]
        %v297 = vld [vmem:[%s276 + $0x70] sm:$0xf]
        %v298 = vld [vmem:[%s276 + $0x78] sm:$0xf]
        %v299 = vld [vmem:[%s276 + $0x7c] sm:$0xf]
        %v300 = vld [vmem:[%s276 + $0x84] sm:$0xf]
        %v301 = vld [vmem:[%s276 + $0x88] sm:$0xf]
        %v302 = vld [vmem:[%s276 + $0x90] sm:$0xf]
        %v303 = vld [vmem:[%s276 + $0x94] sm:$0xf]
        %v304 = vld [vmem:[%s276 + $0x9c] sm:$0xf]
        %v305 = vld [vmem:[%s276 + $0xa0] sm:$0xf]
        %v306 = vld [vmem:[%s276 + $0xa8] sm:$0xf]
        %v307 = vld [vmem:[%s276 + $0xac] sm:$0xf]
        %v308 = vld [vmem:[%s276 + $0xb4] sm:$0xf]
        %v309 = vld [vmem:[%s276 + $0xb8] sm:$0xf]
        %v310 = vld [vmem:[%s276 + $0x8] sm:$0x1]
        %v311 = vld [vmem:[%s276 + $0x14] sm:$0x1]
        %v312 = vld [vmem:[%s276 + $0x20] sm:$0x1]
        %v313 = vld [vmem:[%s276 + $0x2c] sm:$0x1]
        %v314 = vld [vmem:[%s276 + $0x38] sm:$0x1]
        %v315 = vld [vmem:[%s276 + $0x44] sm:$0x1]
        %v316 = vld [vmem:[%s276 + $0x50] sm:$0x1]
        %v317 = vld [vmem:[%s276 + $0x5c] sm:$0x1]
        %v318 = vld [vmem:[%s276 + $0x68] sm:$0x1]
        %v319 = vld [vmem:[%s276 + $0x74] sm:$0x1]
        %v320 = vld [vmem:[%s276 + $0x80] sm:$0x1]
        %v321 = vld [vmem:[%s276 + $0x8c] sm:$0x1]
        %v322 = vld [vmem:[%s276 + $0x98] sm:$0x1]
        %v323 = vld [vmem:[%s276 + $0xa4] sm:$0x1]
        %v324 = vld [vmem:[%s276 + $0xb0] sm:$0x1]
        %v325 = vld [vmem:[%s276 + $0xbc] sm:$0x1]
        %v326 = vld [vmem:[%s276] sm:$0xe]
        %v327 = vld [vmem:[%s276 + $0xc] sm:$0xe]
        %v328 = vld [vmem:[%s276 + $0x18] sm:$0xe]
        %v329 = vld [vmem:[%s276 + $0x24] sm:$0xe]
        %v330 = vld [vmem:[%s276 + $0x30] sm:$0xe]
        %v331 = vld [vmem:[%s276 + $0x3c] sm:$0xe]
        %v332 = vld [vmem:[%s276 + $0x48] sm:$0xe]
        %v333 = vld [vmem:[%s276 + $0x54] sm:$0xe]
        %v334 = vld [vmem:[%s276 + $0x60] sm:$0xe]
        %v335 = vld [vmem:[%s276 + $0x6c] sm:$0xe]
        %v336 = vld [vmem:[%s276 + $0x78] sm:$0xe]
        %v337 = vld [vmem:[%s276 + $0x84] sm:$0xe]
        %v338 = vld [vmem:[%s276 + $0x90] sm:$0xe]
        %v339 = vld [vmem:[%s276 + $0x9c] sm:$0xe]
        %v340 = vld [vmem:[%s276 + $0xa8] sm:$0xe]
        %v341 = vld [vmem:[%s276 + $0xb4] sm:$0xe]
        %s342 = scalar_lea.vmem %s276, 12
        %v343 = vld [vmem:[%s342] sm:$0xf]
        %v344 = vld [vmem:[%s342 + $0x4] sm:$0xf]
        %v345 = vld [vmem:[%s342 + $0xc] sm:$0xf]
        %v346 = vld [vmem:[%s342 + $0x10] sm:$0xf]
        %v347 = vld [vmem:[%s342 + $0x18] sm:$0xf]
        %v348 = vld [vmem:[%s342 + $0x1c] sm:$0xf]
        %v349 = vld [vmem:[%s342 + $0x24] sm:$0xf]
        %v350 = vld [vmem:[%s342 + $0x28] sm:$0xf]
        %v351 = vld [vmem:[%s342 + $0x30] sm:$0xf]
        %v352 = vld [vmem:[%s342 + $0x34] sm:$0xf]
        %v353 = vld [vmem:[%s342 + $0x3c] sm:$0xf]
        %v354 = vld [vmem:[%s342 + $0x40] sm:$0xf]
        %v355 = vld [vmem:[%s342 + $0x48] sm:$0xf]
        %v356 = vld [vmem:[%s342 + $0x4c] sm:$0xf]
        %v357 = vld [vmem:[%s342 + $0x54] sm:$0xf]
        %v358 = vld [vmem:[%s342 + $0x58] sm:$0xf]
        %v359 = vld [vmem:[%s342 + $0x60] sm:$0xf]
        %v360 = vld [vmem:[%s342 + $0x64] sm:$0xf]
        %v361 = vld [vmem:[%s342 + $0x6c] sm:$0xf]
        %v362 = vld [vmem:[%s342 + $0x70] sm:$0xf]
        %v363 = vld [vmem:[%s342 + $0x78] sm:$0xf]
        %v364 = vld [vmem:[%s342 + $0x7c] sm:$0xf]
        %v365 = vld [vmem:[%s342 + $0x84] sm:$0xf]
        %v366 = vld [vmem:[%s342 + $0x88] sm:$0xf]
        %v367 = vld [vmem:[%s342 + $0x90] sm:$0xf]
        %v368 = vld [vmem:[%s342 + $0x94] sm:$0xf]
        %v369 = vld [vmem:[%s342 + $0x9c] sm:$0xf]
        %v370 = vld [vmem:[%s342 + $0xa0] sm:$0xf]
        %v371 = vld [vmem:[%s342 + $0xa8] sm:$0xf]
        %v372 = vld [vmem:[%s342 + $0xac] sm:$0xf]
        %v373 = vld [vmem:[%s342 + $0xb4] sm:$0xf]
        %v374 = vld [vmem:[%s342 + $0xb8] sm:$0xf]
        %v375 = vld [vmem:[%s342 + $0x8] sm:$0x1]
        %v376 = vld [vmem:[%s342 + $0x14] sm:$0x1]
        %v377 = vld [vmem:[%s342 + $0x20] sm:$0x1]
        %v378 = vld [vmem:[%s342 + $0x2c] sm:$0x1]
        %v379 = vld [vmem:[%s342 + $0x38] sm:$0x1]
        %v380 = vld [vmem:[%s342 + $0x44] sm:$0x1]
        %v381 = vld [vmem:[%s342 + $0x50] sm:$0x1]
        %v382 = vld [vmem:[%s342 + $0x5c] sm:$0x1]
        %v383 = vld [vmem:[%s342 + $0x68] sm:$0x1]
        %v384 = vld [vmem:[%s342 + $0x74] sm:$0x1]
        %v385 = vld [vmem:[%s342 + $0x80] sm:$0x1]
        %v386 = vld [vmem:[%s342 + $0x8c] sm:$0x1]
        %v387 = vld [vmem:[%s342 + $0x98] sm:$0x1]
        %v388 = vld [vmem:[%s342 + $0xa4] sm:$0x1]
        %v389 = vld [vmem:[%s342 + $0xb0] sm:$0x1]
        %v390 = vld [vmem:[%s342 + $0xbc] sm:$0x1]
        %v391 = vld [vmem:[%s342] sm:$0xe]
        %v392 = vld [vmem:[%s342 + $0xc] sm:$0xe]
        %v393 = vld [vmem:[%s342 + $0x18] sm:$0xe]
        %v394 = vld [vmem:[%s342 + $0x24] sm:$0xe]
        %v395 = vld [vmem:[%s342 + $0x30] sm:$0xe]
        %v396 = vld [vmem:[%s342 + $0x3c] sm:$0xe]
        %v397 = vld [vmem:[%s342 + $0x48] sm:$0xe]
        %v398 = vld [vmem:[%s342 + $0x54] sm:$0xe]
        %v399 = vld [vmem:[%s342 + $0x60] sm:$0xe]
        %v400 = vld [vmem:[%s342 + $0x6c] sm:$0xe]
        %v401 = vld [vmem:[%s342 + $0x78] sm:$0xe]
        %v402 = vld [vmem:[%s342 + $0x84] sm:$0xe]
        %v403 = vld [vmem:[%s342 + $0x90] sm:$0xe]
        %v404 = vld [vmem:[%s342 + $0x9c] sm:$0xe]
        %v405 = vld [vmem:[%s342 + $0xa8] sm:$0xe]
        %v406 = vld [vmem:[%s342 + $0xb4] sm:$0xe]
        %s407 = scalar_lea.vmem %s276, 24
        %v408 = vld [vmem:[%s407] sm:$0xf]
        %v409 = vld [vmem:[%s407 + $0x4] sm:$0xf]
        %v410 = vld [vmem:[%s407 + $0xc] sm:$0xf]
        %v411 = vld [vmem:[%s407 + $0x10] sm:$0xf]
        %v412 = vld [vmem:[%s407 + $0x18] sm:$0xf]
        %v413 = vld [vmem:[%s407 + $0x1c] sm:$0xf]
        %v414 = vld [vmem:[%s407 + $0x24] sm:$0xf]
        %v415 = vld [vmem:[%s407 + $0x28] sm:$0xf]
        %v416 = vld [vmem:[%s407 + $0x30] sm:$0xf]
        %v417 = vld [vmem:[%s407 + $0x34] sm:$0xf]
        %v418 = vld [vmem:[%s407 + $0x3c] sm:$0xf]
        %v419 = vld [vmem:[%s407 + $0x40] sm:$0xf]
        %v420 = vld [vmem:[%s407 + $0x48] sm:$0xf]
        %v421 = vld [vmem:[%s407 + $0x4c] sm:$0xf]
        %v422 = vld [vmem:[%s407 + $0x54] sm:$0xf]
        %v423 = vld [vmem:[%s407 + $0x58] sm:$0xf]
        %v424 = vld [vmem:[%s407 + $0x60] sm:$0xf]
        %v425 = vld [vmem:[%s407 + $0x64] sm:$0xf]
        %v426 = vld [vmem:[%s407 + $0x6c] sm:$0xf]
        %v427 = vld [vmem:[%s407 + $0x70] sm:$0xf]
        %v428 = vld [vmem:[%s407 + $0x78] sm:$0xf]
        %v429 = vld [vmem:[%s407 + $0x7c] sm:$0xf]
        %v430 = vld [vmem:[%s407 + $0x84] sm:$0xf]
        %v431 = vld [vmem:[%s407 + $0x88] sm:$0xf]
        %v432 = vld [vmem:[%s407 + $0x90] sm:$0xf]
        %v433 = vld [vmem:[%s407 + $0x94] sm:$0xf]
        %v434 = vld [vmem:[%s407 + $0x9c] sm:$0xf]
        %v435 = vld [vmem:[%s407 + $0xa0] sm:$0xf]
        %v436 = vld [vmem:[%s407 + $0xa8] sm:$0xf]
        %v437 = vld [vmem:[%s407 + $0xac] sm:$0xf]
        %v438 = vld [vmem:[%s407 + $0xb4] sm:$0xf]
        %v439 = vld [vmem:[%s407 + $0xb8] sm:$0xf]
        %v440 = vld [vmem:[%s407 + $0x8] sm:$0x1]
        %v441 = vld [vmem:[%s407 + $0x14] sm:$0x1]
        %v442 = vld [vmem:[%s407 + $0x20] sm:$0x1]
        %v443 = vld [vmem:[%s407 + $0x2c] sm:$0x1]
        %v444 = vld [vmem:[%s407 + $0x38] sm:$0x1]
        %v445 = vld [vmem:[%s407 + $0x44] sm:$0x1]
        %v446 = vld [vmem:[%s407 + $0x50] sm:$0x1]
        %v447 = vld [vmem:[%s407 + $0x5c] sm:$0x1]
        %v448 = vld [vmem:[%s407 + $0x68] sm:$0x1]
        %v449 = vld [vmem:[%s407 + $0x74] sm:$0x1]
        %v450 = vld [vmem:[%s407 + $0x80] sm:$0x1]
        %v451 = vld [vmem:[%s407 + $0x8c] sm:$0x1]
        %v452 = vld [vmem:[%s407 + $0x98] sm:$0x1]
        %v453 = vld [vmem:[%s407 + $0xa4] sm:$0x1]
        %v454 = vld [vmem:[%s407 + $0xb0] sm:$0x1]
        %v455 = vld [vmem:[%s407 + $0xbc] sm:$0x1]
        %v456 = vld [vmem:[%s407] sm:$0xe]
        %v457 = vld [vmem:[%s407 + $0xc] sm:$0xe]
        %v458 = vld [vmem:[%s407 + $0x18] sm:$0xe]
        %v459 = vld [vmem:[%s407 + $0x24] sm:$0xe]
        %v460 = vld [vmem:[%s407 + $0x30] sm:$0xe]
        %v461 = vld [vmem:[%s407 + $0x3c] sm:$0xe]
        %v462 = vld [vmem:[%s407 + $0x48] sm:$0xe]
        %v463 = vld [vmem:[%s407 + $0x54] sm:$0xe]
        %v464 = vld [vmem:[%s407 + $0x60] sm:$0xe]
        %v465 = vld [vmem:[%s407 + $0x6c] sm:$0xe]
        %v466 = vld [vmem:[%s407 + $0x78] sm:$0xe]
        %v467 = vld [vmem:[%s407 + $0x84] sm:$0xe]
        %v468 = vld [vmem:[%s407 + $0x90] sm:$0xe]
        %v469 = vld [vmem:[%s407 + $0x9c] sm:$0xe]
        %v470 = vld [vmem:[%s407 + $0xa8] sm:$0xe]
        %v471 = vld [vmem:[%s407 + $0xb4] sm:$0xe]
        %v504 = vunpack.c.l.b16 %v278
        %v505 = vunpack.c.l.b16 %v279
        %v506 = vunpack.c.l.b16 %v280
        %v507 = vunpack.c.l.b16 %v281
        %v508 = vunpack.c.l.b16 %v282
        %v509 = vunpack.c.l.b16 %v283
        %v510 = vunpack.c.l.b16 %v284
        %v511 = vunpack.c.l.b16 %v285
        %v512 = vunpack.c.l.b16 %v286
        %v513 = vunpack.c.l.b16 %v287
        %v514 = vunpack.c.l.b16 %v288
        %v515 = vunpack.c.l.b16 %v289
        %v516 = vunpack.c.l.b16 %v290
        %v517 = vunpack.c.l.b16 %v291
        %v518 = vunpack.c.l.b16 %v292
        %v519 = vunpack.c.l.b16 %v293
        %v520 = vunpack.c.l.b16 %v294
        %v521 = vunpack.c.l.b16 %v295
        %v522 = vunpack.c.l.b16 %v296
        %v523 = vunpack.c.l.b16 %v297
        %v524 = vunpack.c.l.b16 %v298
        %v525 = vunpack.c.l.b16 %v299
        %v526 = vunpack.c.l.b16 %v300
        %v527 = vunpack.c.l.b16 %v301
        %v528 = vunpack.c.l.b16 %v302
        %v529 = vunpack.c.l.b16 %v303
        %v530 = vunpack.c.l.b16 %v304
        %v531 = vunpack.c.l.b16 %v305
        %v532 = vunpack.c.l.b16 %v306
        %v533 = vunpack.c.l.b16 %v307
        %v534 = vunpack.c.l.b16 %v308
        %v535 = vunpack.c.l.b16 %v309
        %v536 = vpack.c.b16 %v505, %v504
        %v537 = vpack.c.b16 %v507, %v506
        %v538 = vpack.c.b16 %v509, %v508
        %v539 = vpack.c.b16 %v511, %v510
        %v540 = vpack.c.b16 %v513, %v512
        %v541 = vpack.c.b16 %v515, %v514
        %v542 = vpack.c.b16 %v517, %v516
        %v543 = vpack.c.b16 %v519, %v518
        %v544 = vpack.c.b16 %v521, %v520
        %v545 = vpack.c.b16 %v523, %v522
        %v546 = vpack.c.b16 %v525, %v524
        %v547 = vpack.c.b16 %v527, %v526
        %v548 = vpack.c.b16 %v529, %v528
        %v549 = vpack.c.b16 %v531, %v530
        %v550 = vpack.c.b16 %v533, %v532
        %v551 = vpack.c.b16 %v535, %v534
        %v568 = vunpack.c.l.b16 %v310
        %v569 = vunpack.c.l.b16 %v311
        %v570 = vunpack.c.l.b16 %v312
        %v571 = vunpack.c.l.b16 %v313
        %v572 = vunpack.c.l.b16 %v314
        %v573 = vunpack.c.l.b16 %v315
        %v574 = vunpack.c.l.b16 %v316
        %v575 = vunpack.c.l.b16 %v317
        %v576 = vunpack.c.l.b16 %v318
        %v577 = vunpack.c.l.b16 %v319
        %v578 = vunpack.c.l.b16 %v320
        %v579 = vunpack.c.l.b16 %v321
        %v580 = vunpack.c.l.b16 %v322
        %v581 = vunpack.c.l.b16 %v323
        %v582 = vunpack.c.l.b16 %v324
        %v583 = vunpack.c.l.b16 %v325
        %v584 = vpack.c.b16 %v568, %v568
        %v585 = vpack.c.b16 %v569, %v569
        %v586 = vpack.c.b16 %v570, %v570
        %v587 = vpack.c.b16 %v571, %v571
        %v588 = vpack.c.b16 %v572, %v572
        %v589 = vpack.c.b16 %v573, %v573
        %v590 = vpack.c.b16 %v574, %v574
        %v591 = vpack.c.b16 %v575, %v575
        %v592 = vpack.c.b16 %v576, %v576
        %v593 = vpack.c.b16 %v577, %v577
        %v594 = vpack.c.b16 %v578, %v578
        %v595 = vpack.c.b16 %v579, %v579
        %v596 = vpack.c.b16 %v580, %v580
        %v597 = vpack.c.b16 %v581, %v581
        %v598 = vpack.c.b16 %v582, %v582
        %v599 = vpack.c.b16 %v583, %v583
        %vm600 = vsmask.f32 7424
        %v602 = vshrl.u32 %v536, 16
        %v604 = vshll.u32 %v536, 16
        %v606 = vrot.slane %v604, 1
        %v607 = vor.u32 %v602, %v606
        %v609 = vshll.u32 %v584, 16
        %v611 = vrot.slane %v609, 1
        %v612 = vsel %vm600, %v607, %v611
        %v614 = vshrl.u32 %v537, 16
        %v616 = vshll.u32 %v537, 16
        %v618 = vrot.slane %v616, 1
        %v619 = vor.u32 %v614, %v618
        %v621 = vshll.u32 %v585, 16
        %v623 = vrot.slane %v621, 1
        %v624 = vsel %vm600, %v619, %v623
        %v626 = vshrl.u32 %v538, 16
        %v628 = vshll.u32 %v538, 16
        %v630 = vrot.slane %v628, 1
        %v631 = vor.u32 %v626, %v630
        %v633 = vshll.u32 %v586, 16
        %v635 = vrot.slane %v633, 1
        %v636 = vsel %vm600, %v631, %v635
        %v638 = vshrl.u32 %v539, 16
        %v640 = vshll.u32 %v539, 16
        %v642 = vrot.slane %v640, 1
        %v643 = vor.u32 %v638, %v642
        %v645 = vshll.u32 %v587, 16
        %v647 = vrot.slane %v645, 1
        %v648 = vsel %vm600, %v643, %v647
        %v650 = vshrl.u32 %v540, 16
        %v652 = vshll.u32 %v540, 16
        %v654 = vrot.slane %v652, 1
        %v655 = vor.u32 %v650, %v654
        %v657 = vshll.u32 %v588, 16
        %v659 = vrot.slane %v657, 1
        %v660 = vsel %vm600, %v655, %v659
        %v662 = vshrl.u32 %v541, 16
        %v664 = vshll.u32 %v541, 16
        %v666 = vrot.slane %v664, 1
        %v667 = vor.u32 %v662, %v666
        %v669 = vshll.u32 %v589, 16
        %v671 = vrot.slane %v669, 1
        %v672 = vsel %vm600, %v667, %v671
        %v674 = vshrl.u32 %v542, 16
        %v676 = vshll.u32 %v542, 16
        %v678 = vrot.slane %v676, 1
        %v679 = vor.u32 %v674, %v678
        %v681 = vshll.u32 %v590, 16
        %v683 = vrot.slane %v681, 1
        %v684 = vsel %vm600, %v679, %v683
        %v686 = vshrl.u32 %v543, 16
        %v688 = vshll.u32 %v543, 16
        %v690 = vrot.slane %v688, 1
        %v691 = vor.u32 %v686, %v690
        %v693 = vshll.u32 %v591, 16
        %v695 = vrot.slane %v693, 1
        %v696 = vsel %vm600, %v691, %v695
        %v698 = vshrl.u32 %v544, 16
        %v700 = vshll.u32 %v544, 16
        %v702 = vrot.slane %v700, 1
        %v703 = vor.u32 %v698, %v702
        %v705 = vshll.u32 %v592, 16
        %v707 = vrot.slane %v705, 1
        %v708 = vsel %vm600, %v703, %v707
        %v710 = vshrl.u32 %v545, 16
        %v712 = vshll.u32 %v545, 16
        %v714 = vrot.slane %v712, 1
        %v715 = vor.u32 %v710, %v714
        %v717 = vshll.u32 %v593, 16
        %v719 = vrot.slane %v717, 1
        %v720 = vsel %vm600, %v715, %v719
        %v722 = vshrl.u32 %v546, 16
        %v724 = vshll.u32 %v546, 16
        %v726 = vrot.slane %v724, 1
        %v727 = vor.u32 %v722, %v726
        %v729 = vshll.u32 %v594, 16
        %v731 = vrot.slane %v729, 1
        %v732 = vsel %vm600, %v727, %v731
        %v734 = vshrl.u32 %v547, 16
        %v736 = vshll.u32 %v547, 16
        %v738 = vrot.slane %v736, 1
        %v739 = vor.u32 %v734, %v738
        %v741 = vshll.u32 %v595, 16
        %v743 = vrot.slane %v741, 1
        %v744 = vsel %vm600, %v739, %v743
        %v746 = vshrl.u32 %v548, 16
        %v748 = vshll.u32 %v548, 16
        %v750 = vrot.slane %v748, 1
        %v751 = vor.u32 %v746, %v750
        %v753 = vshll.u32 %v596, 16
        %v755 = vrot.slane %v753, 1
        %v756 = vsel %vm600, %v751, %v755
        %v758 = vshrl.u32 %v549, 16
        %v760 = vshll.u32 %v549, 16
        %v762 = vrot.slane %v760, 1
        %v763 = vor.u32 %v758, %v762
        %v765 = vshll.u32 %v597, 16
        %v767 = vrot.slane %v765, 1
        %v768 = vsel %vm600, %v763, %v767
        %v770 = vshrl.u32 %v550, 16
        %v772 = vshll.u32 %v550, 16
        %v774 = vrot.slane %v772, 1
        %v775 = vor.u32 %v770, %v774
        %v777 = vshll.u32 %v598, 16
        %v779 = vrot.slane %v777, 1
        %v780 = vsel %vm600, %v775, %v779
        %v782 = vshrl.u32 %v551, 16
        %v784 = vshll.u32 %v551, 16
        %v786 = vrot.slane %v784, 1
        %v787 = vor.u32 %v782, %v786
        %v789 = vshll.u32 %v599, 16
        %v791 = vrot.slane %v789, 1
        %v792 = vsel %vm600, %v787, %v791
        %793 = vrot.lane.b32.xlu0 %v612, 16
        %v794 = vpop.permute.xlu0 %793
        %795 = vrot.lane.b32.xlu0 %v624, 16
        %v796 = vpop.permute.xlu0 %795
        %797 = vrot.lane.b32.xlu0 %v636, 16
        %v798 = vpop.permute.xlu0 %797
        %799 = vrot.lane.b32.xlu0 %v648, 16
        %v800 = vpop.permute.xlu0 %799
        %801 = vrot.lane.b32.xlu0 %v660, 16
        %v802 = vpop.permute.xlu0 %801
        %803 = vrot.lane.b32.xlu0 %v672, 16
        %v804 = vpop.permute.xlu0 %803
        %805 = vrot.lane.b32.xlu0 %v684, 16
        %v806 = vpop.permute.xlu0 %805
        %807 = vrot.lane.b32.xlu0 %v696, 16
        %v808 = vpop.permute.xlu0 %807
        %809 = vrot.lane.b32.xlu0 %v708, 16
        %v810 = vpop.permute.xlu0 %809
        %811 = vrot.lane.b32.xlu0 %v720, 16
        %v812 = vpop.permute.xlu0 %811
        %813 = vrot.lane.b32.xlu0 %v732, 16
        %v814 = vpop.permute.xlu0 %813
        %815 = vrot.lane.b32.xlu0 %v744, 16
        %v816 = vpop.permute.xlu0 %815
        %817 = vrot.lane.b32.xlu0 %v756, 16
        %v818 = vpop.permute.xlu0 %817
        %819 = vrot.lane.b32.xlu0 %v768, 16
        %v820 = vpop.permute.xlu0 %819
        %821 = vrot.lane.b32.xlu0 %v780, 16
        %v822 = vpop.permute.xlu0 %821
        %823 = vrot.lane.b32.xlu0 %v792, 16
        %v824 = vpop.permute.xlu0 %823
        %v841 = vunpack.c.l.b16 %v326
        %v842 = vunpack.c.l.b16 %v327
        %v843 = vunpack.c.l.b16 %v328
        %v844 = vunpack.c.l.b16 %v329
        %v845 = vunpack.c.l.b16 %v330
        %v846 = vunpack.c.l.b16 %v331
        %v847 = vunpack.c.l.b16 %v332
        %v848 = vunpack.c.l.b16 %v333
        %v849 = vunpack.c.l.b16 %v334
        %v850 = vunpack.c.l.b16 %v335
        %v851 = vunpack.c.l.b16 %v336
        %v852 = vunpack.c.l.b16 %v337
        %v853 = vunpack.c.l.b16 %v338
        %v854 = vunpack.c.l.b16 %v339
        %v855 = vunpack.c.l.b16 %v340
        %v856 = vunpack.c.l.b16 %v341
        %v857 = vpack.c.b16 %v505, %v841
        %v858 = vpack.c.b16 %v507, %v842
        %v859 = vpack.c.b16 %v509, %v843
        %v860 = vpack.c.b16 %v511, %v844
        %v861 = vpack.c.b16 %v513, %v845
        %v862 = vpack.c.b16 %v515, %v846
        %v863 = vpack.c.b16 %v517, %v847
        %v864 = vpack.c.b16 %v519, %v848
        %v865 = vpack.c.b16 %v521, %v849
        %v866 = vpack.c.b16 %v523, %v850
        %v867 = vpack.c.b16 %v525, %v851
        %v868 = vpack.c.b16 %v527, %v852
        %v869 = vpack.c.b16 %v529, %v853
        %v870 = vpack.c.b16 %v531, %v854
        %v871 = vpack.c.b16 %v533, %v855
        %v872 = vpack.c.b16 %v535, %v856
        %vm873 = vcmask 1046528
        %v874 = vrot.slane %v857, 1
        %v875 = vrot.slane %v584, 1
        %v876 = vsel %vm873, %v874, %v875
        %v877 = vrot.slane %v858, 1
        %v878 = vrot.slane %v585, 1
        %v879 = vsel %vm873, %v877, %v878
        %v880 = vrot.slane %v859, 1
        %v881 = vrot.slane %v586, 1
        %v882 = vsel %vm873, %v880, %v881
        %v883 = vrot.slane %v860, 1
        %v884 = vrot.slane %v587, 1
        %v885 = vsel %vm873, %v883, %v884
        %v886 = vrot.slane %v861, 1
        %v887 = vrot.slane %v588, 1
        %v888 = vsel %vm873, %v886, %v887
        %v889 = vrot.slane %v862, 1
        %v890 = vrot.slane %v589, 1
        %v891 = vsel %vm873, %v889, %v890
        %v892 = vrot.slane %v863, 1
        %v893 = vrot.slane %v590, 1
        %v894 = vsel %vm873, %v892, %v893
        %v895 = vrot.slane %v864, 1
        %v896 = vrot.slane %v591, 1
        %v897 = vsel %vm873, %v895, %v896
        %v898 = vrot.slane %v865, 1
        %v899 = vrot.slane %v592, 1
        %v900 = vsel %vm873, %v898, %v899
        %v901 = vrot.slane %v866, 1
        %v902 = vrot.slane %v593, 1
        %v903 = vsel %vm873, %v901, %v902
        %v904 = vrot.slane %v867, 1
        %v905 = vrot.slane %v594, 1
        %v906 = vsel %vm873, %v904, %v905
        %v907 = vrot.slane %v868, 1
        %v908 = vrot.slane %v595, 1
        %v909 = vsel %vm873, %v907, %v908
        %v910 = vrot.slane %v869, 1
        %v911 = vrot.slane %v596, 1
        %v912 = vsel %vm873, %v910, %v911
        %v913 = vrot.slane %v870, 1
        %v914 = vrot.slane %v597, 1
        %v915 = vsel %vm873, %v913, %v914
        %v916 = vrot.slane %v871, 1
        %v917 = vrot.slane %v598, 1
        %v918 = vsel %vm873, %v916, %v917
        %v919 = vrot.slane %v872, 1
        %v920 = vrot.slane %v599, 1
        %v921 = vsel %vm873, %v919, %v920
        %922 = vrot.lane.b32.xlu0 %v876, 32
        %v923 = vpop.permute.xlu0 %922
        %924 = vrot.lane.b32.xlu0 %v879, 32
        %v925 = vpop.permute.xlu0 %924
        %926 = vrot.lane.b32.xlu0 %v882, 32
        %v927 = vpop.permute.xlu0 %926
        %928 = vrot.lane.b32.xlu0 %v885, 32
        %v929 = vpop.permute.xlu0 %928
        %930 = vrot.lane.b32.xlu0 %v888, 32
        %v931 = vpop.permute.xlu0 %930
        %932 = vrot.lane.b32.xlu0 %v891, 32
        %v933 = vpop.permute.xlu0 %932
        %934 = vrot.lane.b32.xlu0 %v894, 32
        %v935 = vpop.permute.xlu0 %934
        %936 = vrot.lane.b32.xlu0 %v897, 32
        %v937 = vpop.permute.xlu0 %936
        %938 = vrot.lane.b32.xlu0 %v900, 32
        %v939 = vpop.permute.xlu0 %938
        %940 = vrot.lane.b32.xlu0 %v903, 32
        %v941 = vpop.permute.xlu0 %940
        %942 = vrot.lane.b32.xlu0 %v906, 32
        %v943 = vpop.permute.xlu0 %942
        %944 = vrot.lane.b32.xlu0 %v909, 32
        %v945 = vpop.permute.xlu0 %944
        %946 = vrot.lane.b32.xlu0 %v912, 32
        %v947 = vpop.permute.xlu0 %946
        %948 = vrot.lane.b32.xlu0 %v915, 32
        %v949 = vpop.permute.xlu0 %948
        %950 = vrot.lane.b32.xlu0 %v918, 32
        %v951 = vpop.permute.xlu0 %950
        %952 = vrot.lane.b32.xlu0 %v921, 32
        %v953 = vpop.permute.xlu0 %952
        %v986 = vunpack.c.l.b16 %v343
        %v987 = vunpack.c.l.b16 %v344
        %v988 = vunpack.c.l.b16 %v345
        %v989 = vunpack.c.l.b16 %v346
        %v990 = vunpack.c.l.b16 %v347
        %v991 = vunpack.c.l.b16 %v348
        %v992 = vunpack.c.l.b16 %v349
        %v993 = vunpack.c.l.b16 %v350
        %v994 = vunpack.c.l.b16 %v351
        %v995 = vunpack.c.l.b16 %v352
        %v996 = vunpack.c.l.b16 %v353
        %v997 = vunpack.c.l.b16 %v354
        %v998 = vunpack.c.l.b16 %v355
        %v999 = vunpack.c.l.b16 %v356
        %v1000 = vunpack.c.l.b16 %v357
        %v1001 = vunpack.c.l.b16 %v358
        %v1002 = vunpack.c.l.b16 %v359
        %v1003 = vunpack.c.l.b16 %v360
        %v1004 = vunpack.c.l.b16 %v361
        %v1005 = vunpack.c.l.b16 %v362
        %v1006 = vunpack.c.l.b16 %v363
        %v1007 = vunpack.c.l.b16 %v364
        %v1008 = vunpack.c.l.b16 %v365
        %v1009 = vunpack.c.l.b16 %v366
        %v1010 = vunpack.c.l.b16 %v367
        %v1011 = vunpack.c.l.b16 %v368
        %v1012 = vunpack.c.l.b16 %v369
        %v1013 = vunpack.c.l.b16 %v370
        %v1014 = vunpack.c.l.b16 %v371
        %v1015 = vunpack.c.l.b16 %v372
        %v1016 = vunpack.c.l.b16 %v373
        %v1017 = vunpack.c.l.b16 %v374
        %v1018 = vpack.c.b16 %v987, %v986
        %v1019 = vpack.c.b16 %v989, %v988
        %v1020 = vpack.c.b16 %v991, %v990
        %v1021 = vpack.c.b16 %v993, %v992
        %v1022 = vpack.c.b16 %v995, %v994
        %v1023 = vpack.c.b16 %v997, %v996
        %v1024 = vpack.c.b16 %v999, %v998
        %v1025 = vpack.c.b16 %v1001, %v1000
        %v1026 = vpack.c.b16 %v1003, %v1002
        %v1027 = vpack.c.b16 %v1005, %v1004
        %v1028 = vpack.c.b16 %v1007, %v1006
        %v1029 = vpack.c.b16 %v1009, %v1008
        %v1030 = vpack.c.b16 %v1011, %v1010
        %v1031 = vpack.c.b16 %v1013, %v1012
        %v1032 = vpack.c.b16 %v1015, %v1014
        %v1033 = vpack.c.b16 %v1017, %v1016
        %1034 = vrot.lane.b32.xlu0 %v1018, 48
        %v1035 = vpop.permute.xlu0 %1034
        %1036 = vrot.lane.b32.xlu0 %v1019, 48
        %v1037 = vpop.permute.xlu0 %1036
        %1038 = vrot.lane.b32.xlu0 %v1020, 48
        %v1039 = vpop.permute.xlu0 %1038
        %1040 = vrot.lane.b32.xlu0 %v1021, 48
        %v1041 = vpop.permute.xlu0 %1040
        %1042 = vrot.lane.b32.xlu0 %v1022, 48
        %v1043 = vpop.permute.xlu0 %1042
        %1044 = vrot.lane.b32.xlu0 %v1023, 48
        %v1045 = vpop.permute.xlu0 %1044
        %1046 = vrot.lane.b32.xlu0 %v1024, 48
        %v1047 = vpop.permute.xlu0 %1046
        %1048 = vrot.lane.b32.xlu0 %v1025, 48
        %v1049 = vpop.permute.xlu0 %1048
        %1050 = vrot.lane.b32.xlu0 %v1026, 48
        %v1051 = vpop.permute.xlu0 %1050
        %1052 = vrot.lane.b32.xlu0 %v1027, 48
        %v1053 = vpop.permute.xlu0 %1052
        %1054 = vrot.lane.b32.xlu0 %v1028, 48
        %v1055 = vpop.permute.xlu0 %1054
        %1056 = vrot.lane.b32.xlu0 %v1029, 48
        %v1057 = vpop.permute.xlu0 %1056
        %1058 = vrot.lane.b32.xlu0 %v1030, 48
        %v1059 = vpop.permute.xlu0 %1058
        %1060 = vrot.lane.b32.xlu0 %v1031, 48
        %v1061 = vpop.permute.xlu0 %1060
        %1062 = vrot.lane.b32.xlu0 %v1032, 48
        %v1063 = vpop.permute.xlu0 %1062
        %1064 = vrot.lane.b32.xlu0 %v1033, 48
        %v1065 = vpop.permute.xlu0 %1064
        %v1082 = vunpack.c.l.b16 %v375
        %v1083 = vunpack.c.l.b16 %v376
        %v1084 = vunpack.c.l.b16 %v377
        %v1085 = vunpack.c.l.b16 %v378
        %v1086 = vunpack.c.l.b16 %v379
        %v1087 = vunpack.c.l.b16 %v380
        %v1088 = vunpack.c.l.b16 %v381
        %v1089 = vunpack.c.l.b16 %v382
        %v1090 = vunpack.c.l.b16 %v383
        %v1091 = vunpack.c.l.b16 %v384
        %v1092 = vunpack.c.l.b16 %v385
        %v1093 = vunpack.c.l.b16 %v386
        %v1094 = vunpack.c.l.b16 %v387
        %v1095 = vunpack.c.l.b16 %v388
        %v1096 = vunpack.c.l.b16 %v389
        %v1097 = vunpack.c.l.b16 %v390
        %v1098 = vpack.c.b16 %v1082, %v1082
        %v1099 = vpack.c.b16 %v1083, %v1083
        %v1100 = vpack.c.b16 %v1084, %v1084
        %v1101 = vpack.c.b16 %v1085, %v1085
        %v1102 = vpack.c.b16 %v1086, %v1086
        %v1103 = vpack.c.b16 %v1087, %v1087
        %v1104 = vpack.c.b16 %v1088, %v1088
        %v1105 = vpack.c.b16 %v1089, %v1089
        %v1106 = vpack.c.b16 %v1090, %v1090
        %v1107 = vpack.c.b16 %v1091, %v1091
        %v1108 = vpack.c.b16 %v1092, %v1092
        %v1109 = vpack.c.b16 %v1093, %v1093
        %v1110 = vpack.c.b16 %v1094, %v1094
        %v1111 = vpack.c.b16 %v1095, %v1095
        %v1112 = vpack.c.b16 %v1096, %v1096
        %v1113 = vpack.c.b16 %v1097, %v1097
        %v1115 = vshrl.u32 %v1018, 16
        %v1117 = vshll.u32 %v1018, 16
        %v1119 = vrot.slane %v1117, 1
        %v1120 = vor.u32 %v1115, %v1119
        %v1122 = vshll.u32 %v1098, 16
        %v1124 = vrot.slane %v1122, 1
        %v1125 = vsel %vm600, %v1120, %v1124
        %v1127 = vshrl.u32 %v1019, 16
        %v1129 = vshll.u32 %v1019, 16
        %v1131 = vrot.slane %v1129, 1
        %v1132 = vor.u32 %v1127, %v1131
        %v1134 = vshll.u32 %v1099, 16
        %v1136 = vrot.slane %v1134, 1
        %v1137 = vsel %vm600, %v1132, %v1136
        %v1139 = vshrl.u32 %v1020, 16
        %v1141 = vshll.u32 %v1020, 16
        %v1143 = vrot.slane %v1141, 1
        %v1144 = vor.u32 %v1139, %v1143
        %v1146 = vshll.u32 %v1100, 16
        %v1148 = vrot.slane %v1146, 1
        %v1149 = vsel %vm600, %v1144, %v1148
        %v1151 = vshrl.u32 %v1021, 16
        %v1153 = vshll.u32 %v1021, 16
        %v1155 = vrot.slane %v1153, 1
        %v1156 = vor.u32 %v1151, %v1155
        %v1158 = vshll.u32 %v1101, 16
        %v1160 = vrot.slane %v1158, 1
        %v1161 = vsel %vm600, %v1156, %v1160
        %v1163 = vshrl.u32 %v1022, 16
        %v1165 = vshll.u32 %v1022, 16
        %v1167 = vrot.slane %v1165, 1
        %v1168 = vor.u32 %v1163, %v1167
        %v1170 = vshll.u32 %v1102, 16
        %v1172 = vrot.slane %v1170, 1
        %v1173 = vsel %vm600, %v1168, %v1172
        %v1175 = vshrl.u32 %v1023, 16
        %v1177 = vshll.u32 %v1023, 16
        %v1179 = vrot.slane %v1177, 1
        %v1180 = vor.u32 %v1175, %v1179
        %v1182 = vshll.u32 %v1103, 16
        %v1184 = vrot.slane %v1182, 1
        %v1185 = vsel %vm600, %v1180, %v1184
        %v1187 = vshrl.u32 %v1024, 16
        %v1189 = vshll.u32 %v1024, 16
        %v1191 = vrot.slane %v1189, 1
        %v1192 = vor.u32 %v1187, %v1191
        %v1194 = vshll.u32 %v1104, 16
        %v1196 = vrot.slane %v1194, 1
        %v1197 = vsel %vm600, %v1192, %v1196
        %v1199 = vshrl.u32 %v1025, 16
        %v1201 = vshll.u32 %v1025, 16
        %v1203 = vrot.slane %v1201, 1
        %v1204 = vor.u32 %v1199, %v1203
        %v1206 = vshll.u32 %v1105, 16
        %v1208 = vrot.slane %v1206, 1
        %v1209 = vsel %vm600, %v1204, %v1208
        %v1211 = vshrl.u32 %v1026, 16
        %v1213 = vshll.u32 %v1026, 16
        %v1215 = vrot.slane %v1213, 1
        %v1216 = vor.u32 %v1211, %v1215
        %v1218 = vshll.u32 %v1106, 16
        %v1220 = vrot.slane %v1218, 1
        %v1221 = vsel %vm600, %v1216, %v1220
        %v1223 = vshrl.u32 %v1027, 16
        %v1225 = vshll.u32 %v1027, 16
        %v1227 = vrot.slane %v1225, 1
        %v1228 = vor.u32 %v1223, %v1227
        %v1230 = vshll.u32 %v1107, 16
        %v1232 = vrot.slane %v1230, 1
        %v1233 = vsel %vm600, %v1228, %v1232
        %v1235 = vshrl.u32 %v1028, 16
        %v1237 = vshll.u32 %v1028, 16
        %v1239 = vrot.slane %v1237, 1
        %v1240 = vor.u32 %v1235, %v1239
        %v1242 = vshll.u32 %v1108, 16
        %v1244 = vrot.slane %v1242, 1
        %v1245 = vsel %vm600, %v1240, %v1244
        %v1247 = vshrl.u32 %v1029, 16
        %v1249 = vshll.u32 %v1029, 16
        %v1251 = vrot.slane %v1249, 1
        %v1252 = vor.u32 %v1247, %v1251
        %v1254 = vshll.u32 %v1109, 16
        %v1256 = vrot.slane %v1254, 1
        %v1257 = vsel %vm600, %v1252, %v1256
        %v1259 = vshrl.u32 %v1030, 16
        %v1261 = vshll.u32 %v1030, 16
        %v1263 = vrot.slane %v1261, 1
        %v1264 = vor.u32 %v1259, %v1263
        %v1266 = vshll.u32 %v1110, 16
        %v1268 = vrot.slane %v1266, 1
        %v1269 = vsel %vm600, %v1264, %v1268
        %v1271 = vshrl.u32 %v1031, 16
        %v1273 = vshll.u32 %v1031, 16
        %v1275 = vrot.slane %v1273, 1
        %v1276 = vor.u32 %v1271, %v1275
        %v1278 = vshll.u32 %v1111, 16
        %v1280 = vrot.slane %v1278, 1
        %v1281 = vsel %vm600, %v1276, %v1280
        %v1283 = vshrl.u32 %v1032, 16
        %v1285 = vshll.u32 %v1032, 16
        %v1287 = vrot.slane %v1285, 1
        %v1288 = vor.u32 %v1283, %v1287
        %v1290 = vshll.u32 %v1112, 16
        %v1292 = vrot.slane %v1290, 1
        %v1293 = vsel %vm600, %v1288, %v1292
        %v1295 = vshrl.u32 %v1033, 16
        %v1297 = vshll.u32 %v1033, 16
        %v1299 = vrot.slane %v1297, 1
        %v1300 = vor.u32 %v1295, %v1299
        %v1302 = vshll.u32 %v1113, 16
        %v1304 = vrot.slane %v1302, 1
        %v1305 = vsel %vm600, %v1300, %v1304
        %1306 = vrot.lane.b32.xlu0 %v1125, 64
        %v1307 = vpop.permute.xlu0 %1306
        %1308 = vrot.lane.b32.xlu0 %v1137, 64
        %v1309 = vpop.permute.xlu0 %1308
        %1310 = vrot.lane.b32.xlu0 %v1149, 64
        %v1311 = vpop.permute.xlu0 %1310
        %1312 = vrot.lane.b32.xlu0 %v1161, 64
        %v1313 = vpop.permute.xlu0 %1312
        %1314 = vrot.lane.b32.xlu0 %v1173, 64
        %v1315 = vpop.permute.xlu0 %1314
        %1316 = vrot.lane.b32.xlu0 %v1185, 64
        %v1317 = vpop.permute.xlu0 %1316
        %1318 = vrot.lane.b32.xlu0 %v1197, 64
        %v1319 = vpop.permute.xlu0 %1318
        %1320 = vrot.lane.b32.xlu0 %v1209, 64
        %v1321 = vpop.permute.xlu0 %1320
        %1322 = vrot.lane.b32.xlu0 %v1221, 64
        %v1323 = vpop.permute.xlu0 %1322
        %1324 = vrot.lane.b32.xlu0 %v1233, 64
        %v1325 = vpop.permute.xlu0 %1324
        %1326 = vrot.lane.b32.xlu0 %v1245, 64
        %v1327 = vpop.permute.xlu0 %1326
        %1328 = vrot.lane.b32.xlu0 %v1257, 64
        %v1329 = vpop.permute.xlu0 %1328
        %1330 = vrot.lane.b32.xlu0 %v1269, 64
        %v1331 = vpop.permute.xlu0 %1330
        %1332 = vrot.lane.b32.xlu0 %v1281, 64
        %v1333 = vpop.permute.xlu0 %1332
        %1334 = vrot.lane.b32.xlu0 %v1293, 64
        %v1335 = vpop.permute.xlu0 %1334
        %1336 = vrot.lane.b32.xlu0 %v1305, 64
        %v1337 = vpop.permute.xlu0 %1336
        %v1354 = vunpack.c.l.b16 %v391
        %v1355 = vunpack.c.l.b16 %v392
        %v1356 = vunpack.c.l.b16 %v393
        %v1357 = vunpack.c.l.b16 %v394
        %v1358 = vunpack.c.l.b16 %v395
        %v1359 = vunpack.c.l.b16 %v396
        %v1360 = vunpack.c.l.b16 %v397
        %v1361 = vunpack.c.l.b16 %v398
        %v1362 = vunpack.c.l.b16 %v399
        %v1363 = vunpack.c.l.b16 %v400
        %v1364 = vunpack.c.l.b16 %v401
        %v1365 = vunpack.c.l.b16 %v402
        %v1366 = vunpack.c.l.b16 %v403
        %v1367 = vunpack.c.l.b16 %v404
        %v1368 = vunpack.c.l.b16 %v405
        %v1369 = vunpack.c.l.b16 %v406
        %v1370 = vpack.c.b16 %v987, %v1354
        %v1371 = vpack.c.b16 %v989, %v1355
        %v1372 = vpack.c.b16 %v991, %v1356
        %v1373 = vpack.c.b16 %v993, %v1357
        %v1374 = vpack.c.b16 %v995, %v1358
        %v1375 = vpack.c.b16 %v997, %v1359
        %v1376 = vpack.c.b16 %v999, %v1360
        %v1377 = vpack.c.b16 %v1001, %v1361
        %v1378 = vpack.c.b16 %v1003, %v1362
        %v1379 = vpack.c.b16 %v1005, %v1363
        %v1380 = vpack.c.b16 %v1007, %v1364
        %v1381 = vpack.c.b16 %v1009, %v1365
        %v1382 = vpack.c.b16 %v1011, %v1366
        %v1383 = vpack.c.b16 %v1013, %v1367
        %v1384 = vpack.c.b16 %v1015, %v1368
        %v1385 = vpack.c.b16 %v1017, %v1369
        %v1386 = vrot.slane %v1370, 1
        %v1387 = vrot.slane %v1098, 1
        %v1388 = vsel %vm873, %v1386, %v1387
        %v1389 = vrot.slane %v1371, 1
        %v1390 = vrot.slane %v1099, 1
        %v1391 = vsel %vm873, %v1389, %v1390
        %v1392 = vrot.slane %v1372, 1
        %v1393 = vrot.slane %v1100, 1
        %v1394 = vsel %vm873, %v1392, %v1393
        %v1395 = vrot.slane %v1373, 1
        %v1396 = vrot.slane %v1101, 1
        %v1397 = vsel %vm873, %v1395, %v1396
        %v1398 = vrot.slane %v1374, 1
        %v1399 = vrot.slane %v1102, 1
        %v1400 = vsel %vm873, %v1398, %v1399
        %v1401 = vrot.slane %v1375, 1
        %v1402 = vrot.slane %v1103, 1
        %v1403 = vsel %vm873, %v1401, %v1402
        %v1404 = vrot.slane %v1376, 1
        %v1405 = vrot.slane %v1104, 1
        %v1406 = vsel %vm873, %v1404, %v1405
        %v1407 = vrot.slane %v1377, 1
        %v1408 = vrot.slane %v1105, 1
        %v1409 = vsel %vm873, %v1407, %v1408
        %v1410 = vrot.slane %v1378, 1
        %v1411 = vrot.slane %v1106, 1
        %v1412 = vsel %vm873, %v1410, %v1411
        %v1413 = vrot.slane %v1379, 1
        %v1414 = vrot.slane %v1107, 1
        %v1415 = vsel %vm873, %v1413, %v1414
        %v1416 = vrot.slane %v1380, 1
        %v1417 = vrot.slane %v1108, 1
        %v1418 = vsel %vm873, %v1416, %v1417
        %v1419 = vrot.slane %v1381, 1
        %v1420 = vrot.slane %v1109, 1
        %v1421 = vsel %vm873, %v1419, %v1420
        %v1422 = vrot.slane %v1382, 1
        %v1423 = vrot.slane %v1110, 1
        %v1424 = vsel %vm873, %v1422, %v1423
        %v1425 = vrot.slane %v1383, 1
        %v1426 = vrot.slane %v1111, 1
        %v1427 = vsel %vm873, %v1425, %v1426
        %v1428 = vrot.slane %v1384, 1
        %v1429 = vrot.slane %v1112, 1
        %v1430 = vsel %vm873, %v1428, %v1429
        %v1431 = vrot.slane %v1385, 1
        %v1432 = vrot.slane %v1113, 1
        %v1433 = vsel %vm873, %v1431, %v1432
        %1434 = vrot.lane.b32.xlu0 %v1388, 80
        %v1435 = vpop.permute.xlu0 %1434
        %1436 = vrot.lane.b32.xlu0 %v1391, 80
        %v1437 = vpop.permute.xlu0 %1436
        %1438 = vrot.lane.b32.xlu0 %v1394, 80
        %v1439 = vpop.permute.xlu0 %1438
        %1440 = vrot.lane.b32.xlu0 %v1397, 80
        %v1441 = vpop.permute.xlu0 %1440
        %1442 = vrot.lane.b32.xlu0 %v1400, 80
        %v1443 = vpop.permute.xlu0 %1442
        %1444 = vrot.lane.b32.xlu0 %v1403, 80
        %v1445 = vpop.permute.xlu0 %1444
        %1446 = vrot.lane.b32.xlu0 %v1406, 80
        %v1447 = vpop.permute.xlu0 %1446
        %1448 = vrot.lane.b32.xlu0 %v1409, 80
        %v1449 = vpop.permute.xlu0 %1448
        %1450 = vrot.lane.b32.xlu0 %v1412, 80
        %v1451 = vpop.permute.xlu0 %1450
        %1452 = vrot.lane.b32.xlu0 %v1415, 80
        %v1453 = vpop.permute.xlu0 %1452
        %1454 = vrot.lane.b32.xlu0 %v1418, 80
        %v1455 = vpop.permute.xlu0 %1454
        %1456 = vrot.lane.b32.xlu0 %v1421, 80
        %v1457 = vpop.permute.xlu0 %1456
        %1458 = vrot.lane.b32.xlu0 %v1424, 80
        %v1459 = vpop.permute.xlu0 %1458
        %1460 = vrot.lane.b32.xlu0 %v1427, 80
        %v1461 = vpop.permute.xlu0 %1460
        %1462 = vrot.lane.b32.xlu0 %v1430, 80
        %v1463 = vpop.permute.xlu0 %1462
        %1464 = vrot.lane.b32.xlu0 %v1433, 80
        %v1465 = vpop.permute.xlu0 %1464
        %v1498 = vunpack.c.l.b16 %v408
        %v1499 = vunpack.c.l.b16 %v409
        %v1500 = vunpack.c.l.b16 %v410
        %v1501 = vunpack.c.l.b16 %v411
        %v1502 = vunpack.c.l.b16 %v412
        %v1503 = vunpack.c.l.b16 %v413
        %v1504 = vunpack.c.l.b16 %v414
        %v1505 = vunpack.c.l.b16 %v415
        %v1506 = vunpack.c.l.b16 %v416
        %v1507 = vunpack.c.l.b16 %v417
        %v1508 = vunpack.c.l.b16 %v418
        %v1509 = vunpack.c.l.b16 %v419
        %v1510 = vunpack.c.l.b16 %v420
        %v1511 = vunpack.c.l.b16 %v421
        %v1512 = vunpack.c.l.b16 %v422
        %v1513 = vunpack.c.l.b16 %v423
        %v1514 = vunpack.c.l.b16 %v424
        %v1515 = vunpack.c.l.b16 %v425
        %v1516 = vunpack.c.l.b16 %v426
        %v1517 = vunpack.c.l.b16 %v427
        %v1518 = vunpack.c.l.b16 %v428
        %v1519 = vunpack.c.l.b16 %v429
        %v1520 = vunpack.c.l.b16 %v430
        %v1521 = vunpack.c.l.b16 %v431
        %v1522 = vunpack.c.l.b16 %v432
        %v1523 = vunpack.c.l.b16 %v433
        %v1524 = vunpack.c.l.b16 %v434
        %v1525 = vunpack.c.l.b16 %v435
        %v1526 = vunpack.c.l.b16 %v436
        %v1527 = vunpack.c.l.b16 %v437
        %v1528 = vunpack.c.l.b16 %v438
        %v1529 = vunpack.c.l.b16 %v439
        %v1530 = vpack.c.b16 %v1499, %v1498
        %v1531 = vpack.c.b16 %v1501, %v1500
        %v1532 = vpack.c.b16 %v1503, %v1502
        %v1533 = vpack.c.b16 %v1505, %v1504
        %v1534 = vpack.c.b16 %v1507, %v1506
        %v1535 = vpack.c.b16 %v1509, %v1508
        %v1536 = vpack.c.b16 %v1511, %v1510
        %v1537 = vpack.c.b16 %v1513, %v1512
        %v1538 = vpack.c.b16 %v1515, %v1514
        %v1539 = vpack.c.b16 %v1517, %v1516
        %v1540 = vpack.c.b16 %v1519, %v1518
        %v1541 = vpack.c.b16 %v1521, %v1520
        %v1542 = vpack.c.b16 %v1523, %v1522
        %v1543 = vpack.c.b16 %v1525, %v1524
        %v1544 = vpack.c.b16 %v1527, %v1526
        %v1545 = vpack.c.b16 %v1529, %v1528
        %1546 = vrot.lane.b32.xlu0 %v1530, 96
        %v1547 = vpop.permute.xlu0 %1546
        %1548 = vrot.lane.b32.xlu0 %v1531, 96
        %v1549 = vpop.permute.xlu0 %1548
        %1550 = vrot.lane.b32.xlu0 %v1532, 96
        %v1551 = vpop.permute.xlu0 %1550
        %1552 = vrot.lane.b32.xlu0 %v1533, 96
        %v1553 = vpop.permute.xlu0 %1552
        %1554 = vrot.lane.b32.xlu0 %v1534, 96
        %v1555 = vpop.permute.xlu0 %1554
        %1556 = vrot.lane.b32.xlu0 %v1535, 96
        %v1557 = vpop.permute.xlu0 %1556
        %1558 = vrot.lane.b32.xlu0 %v1536, 96
        %v1559 = vpop.permute.xlu0 %1558
        %1560 = vrot.lane.b32.xlu0 %v1537, 96
        %v1561 = vpop.permute.xlu0 %1560
        %1562 = vrot.lane.b32.xlu0 %v1538, 96
        %v1563 = vpop.permute.xlu0 %1562
        %1564 = vrot.lane.b32.xlu0 %v1539, 96
        %v1565 = vpop.permute.xlu0 %1564
        %1566 = vrot.lane.b32.xlu0 %v1540, 96
        %v1567 = vpop.permute.xlu0 %1566
        %1568 = vrot.lane.b32.xlu0 %v1541, 96
        %v1569 = vpop.permute.xlu0 %1568
        %1570 = vrot.lane.b32.xlu0 %v1542, 96
        %v1571 = vpop.permute.xlu0 %1570
        %1572 = vrot.lane.b32.xlu0 %v1543, 96
        %v1573 = vpop.permute.xlu0 %1572
        %1574 = vrot.lane.b32.xlu0 %v1544, 96
        %v1575 = vpop.permute.xlu0 %1574
        %1576 = vrot.lane.b32.xlu0 %v1545, 96
        %v1577 = vpop.permute.xlu0 %1576
        %v1594 = vunpack.c.l.b16 %v440
        %v1595 = vunpack.c.l.b16 %v441
        %v1596 = vunpack.c.l.b16 %v442
        %v1597 = vunpack.c.l.b16 %v443
        %v1598 = vunpack.c.l.b16 %v444
        %v1599 = vunpack.c.l.b16 %v445
        %v1600 = vunpack.c.l.b16 %v446
        %v1601 = vunpack.c.l.b16 %v447
        %v1602 = vunpack.c.l.b16 %v448
        %v1603 = vunpack.c.l.b16 %v449
        %v1604 = vunpack.c.l.b16 %v450
        %v1605 = vunpack.c.l.b16 %v451
        %v1606 = vunpack.c.l.b16 %v452
        %v1607 = vunpack.c.l.b16 %v453
        %v1608 = vunpack.c.l.b16 %v454
        %v1609 = vunpack.c.l.b16 %v455
        %v1610 = vpack.c.b16 %v1594, %v1594
        %v1611 = vpack.c.b16 %v1595, %v1595
        %v1612 = vpack.c.b16 %v1596, %v1596
        %v1613 = vpack.c.b16 %v1597, %v1597
        %v1614 = vpack.c.b16 %v1598, %v1598
        %v1615 = vpack.c.b16 %v1599, %v1599
        %v1616 = vpack.c.b16 %v1600, %v1600
        %v1617 = vpack.c.b16 %v1601, %v1601
        %v1618 = vpack.c.b16 %v1602, %v1602
        %v1619 = vpack.c.b16 %v1603, %v1603
        %v1620 = vpack.c.b16 %v1604, %v1604
        %v1621 = vpack.c.b16 %v1605, %v1605
        %v1622 = vpack.c.b16 %v1606, %v1606
        %v1623 = vpack.c.b16 %v1607, %v1607
        %v1624 = vpack.c.b16 %v1608, %v1608
        %v1625 = vpack.c.b16 %v1609, %v1609
        %v1627 = vshrl.u32 %v1530, 16
        %v1629 = vshll.u32 %v1530, 16
        %v1631 = vrot.slane %v1629, 1
        %v1632 = vor.u32 %v1627, %v1631
        %v1634 = vshll.u32 %v1610, 16
        %v1636 = vrot.slane %v1634, 1
        %v1637 = vsel %vm600, %v1632, %v1636
        %v1639 = vshrl.u32 %v1531, 16
        %v1641 = vshll.u32 %v1531, 16
        %v1643 = vrot.slane %v1641, 1
        %v1644 = vor.u32 %v1639, %v1643
        %v1646 = vshll.u32 %v1611, 16
        %v1648 = vrot.slane %v1646, 1
        %v1649 = vsel %vm600, %v1644, %v1648
        %v1651 = vshrl.u32 %v1532, 16
        %v1653 = vshll.u32 %v1532, 16
        %v1655 = vrot.slane %v1653, 1
        %v1656 = vor.u32 %v1651, %v1655
        %v1658 = vshll.u32 %v1612, 16
        %v1660 = vrot.slane %v1658, 1
        %v1661 = vsel %vm600, %v1656, %v1660
        %v1663 = vshrl.u32 %v1533, 16
        %v1665 = vshll.u32 %v1533, 16
        %v1667 = vrot.slane %v1665, 1
        %v1668 = vor.u32 %v1663, %v1667
        %v1670 = vshll.u32 %v1613, 16
        %v1672 = vrot.slane %v1670, 1
        %v1673 = vsel %vm600, %v1668, %v1672
        %v1675 = vshrl.u32 %v1534, 16
        %v1677 = vshll.u32 %v1534, 16
        %v1679 = vrot.slane %v1677, 1
        %v1680 = vor.u32 %v1675, %v1679
        %v1682 = vshll.u32 %v1614, 16
        %v1684 = vrot.slane %v1682, 1
        %v1685 = vsel %vm600, %v1680, %v1684
        %v1687 = vshrl.u32 %v1535, 16
        %v1689 = vshll.u32 %v1535, 16
        %v1691 = vrot.slane %v1689, 1
        %v1692 = vor.u32 %v1687, %v1691
        %v1694 = vshll.u32 %v1615, 16
        %v1696 = vrot.slane %v1694, 1
        %v1697 = vsel %vm600, %v1692, %v1696
        %v1699 = vshrl.u32 %v1536, 16
        %v1701 = vshll.u32 %v1536, 16
        %v1703 = vrot.slane %v1701, 1
        %v1704 = vor.u32 %v1699, %v1703
        %v1706 = vshll.u32 %v1616, 16
        %v1708 = vrot.slane %v1706, 1
        %v1709 = vsel %vm600, %v1704, %v1708
        %v1711 = vshrl.u32 %v1537, 16
        %v1713 = vshll.u32 %v1537, 16
        %v1715 = vrot.slane %v1713, 1
        %v1716 = vor.u32 %v1711, %v1715
        %v1718 = vshll.u32 %v1617, 16
        %v1720 = vrot.slane %v1718, 1
        %v1721 = vsel %vm600, %v1716, %v1720
        %v1723 = vshrl.u32 %v1538, 16
        %v1725 = vshll.u32 %v1538, 16
        %v1727 = vrot.slane %v1725, 1
        %v1728 = vor.u32 %v1723, %v1727
        %v1730 = vshll.u32 %v1618, 16
        %v1732 = vrot.slane %v1730, 1
        %v1733 = vsel %vm600, %v1728, %v1732
        %v1735 = vshrl.u32 %v1539, 16
        %v1737 = vshll.u32 %v1539, 16
        %v1739 = vrot.slane %v1737, 1
        %v1740 = vor.u32 %v1735, %v1739
        %v1742 = vshll.u32 %v1619, 16
        %v1744 = vrot.slane %v1742, 1
        %v1745 = vsel %vm600, %v1740, %v1744
        %v1747 = vshrl.u32 %v1540, 16
        %v1749 = vshll.u32 %v1540, 16
        %v1751 = vrot.slane %v1749, 1
        %v1752 = vor.u32 %v1747, %v1751
        %v1754 = vshll.u32 %v1620, 16
        %v1756 = vrot.slane %v1754, 1
        %v1757 = vsel %vm600, %v1752, %v1756
        %v1759 = vshrl.u32 %v1541, 16
        %v1761 = vshll.u32 %v1541, 16
        %v1763 = vrot.slane %v1761, 1
        %v1764 = vor.u32 %v1759, %v1763
        %v1766 = vshll.u32 %v1621, 16
        %v1768 = vrot.slane %v1766, 1
        %v1769 = vsel %vm600, %v1764, %v1768
        %v1771 = vshrl.u32 %v1542, 16
        %v1773 = vshll.u32 %v1542, 16
        %v1775 = vrot.slane %v1773, 1
        %v1776 = vor.u32 %v1771, %v1775
        %v1778 = vshll.u32 %v1622, 16
        %v1780 = vrot.slane %v1778, 1
        %v1781 = vsel %vm600, %v1776, %v1780
        %v1783 = vshrl.u32 %v1543, 16
        %v1785 = vshll.u32 %v1543, 16
        %v1787 = vrot.slane %v1785, 1
        %v1788 = vor.u32 %v1783, %v1787
        %v1790 = vshll.u32 %v1623, 16
        %v1792 = vrot.slane %v1790, 1
        %v1793 = vsel %vm600, %v1788, %v1792
        %v1795 = vshrl.u32 %v1544, 16
        %v1797 = vshll.u32 %v1544, 16
        %v1799 = vrot.slane %v1797, 1
        %v1800 = vor.u32 %v1795, %v1799
        %v1802 = vshll.u32 %v1624, 16
        %v1804 = vrot.slane %v1802, 1
        %v1805 = vsel %vm600, %v1800, %v1804
        %v1807 = vshrl.u32 %v1545, 16
        %v1809 = vshll.u32 %v1545, 16
        %v1811 = vrot.slane %v1809, 1
        %v1812 = vor.u32 %v1807, %v1811
        %v1814 = vshll.u32 %v1625, 16
        %v1816 = vrot.slane %v1814, 1
        %v1817 = vsel %vm600, %v1812, %v1816
        %1818 = vrot.lane.b32.xlu0 %v1637, 112
        %v1819 = vpop.permute.xlu0 %1818
        %1820 = vrot.lane.b32.xlu0 %v1649, 112
        %v1821 = vpop.permute.xlu0 %1820
        %1822 = vrot.lane.b32.xlu0 %v1661, 112
        %v1823 = vpop.permute.xlu0 %1822
        %1824 = vrot.lane.b32.xlu0 %v1673, 112
        %v1825 = vpop.permute.xlu0 %1824
        %1826 = vrot.lane.b32.xlu0 %v1685, 112
        %v1827 = vpop.permute.xlu0 %1826
        %1828 = vrot.lane.b32.xlu0 %v1697, 112
        %v1829 = vpop.permute.xlu0 %1828
        %1830 = vrot.lane.b32.xlu0 %v1709, 112
        %v1831 = vpop.permute.xlu0 %1830
        %1832 = vrot.lane.b32.xlu0 %v1721, 112
        %v1833 = vpop.permute.xlu0 %1832
        %1834 = vrot.lane.b32.xlu0 %v1733, 112
        %v1835 = vpop.permute.xlu0 %1834
        %1836 = vrot.lane.b32.xlu0 %v1745, 112
        %v1837 = vpop.permute.xlu0 %1836
        %1838 = vrot.lane.b32.xlu0 %v1757, 112
        %v1839 = vpop.permute.xlu0 %1838
        %1840 = vrot.lane.b32.xlu0 %v1769, 112
        %v1841 = vpop.permute.xlu0 %1840
        %1842 = vrot.lane.b32.xlu0 %v1781, 112
        %v1843 = vpop.permute.xlu0 %1842
        %1844 = vrot.lane.b32.xlu0 %v1793, 112
        %v1845 = vpop.permute.xlu0 %1844
        %1846 = vrot.lane.b32.xlu0 %v1805, 112
        %v1847 = vpop.permute.xlu0 %1846
        %1848 = vrot.lane.b32.xlu0 %v1817, 112
        %v1849 = vpop.permute.xlu0 %1848
        %v1866 = vunpack.c.l.b16 %v456
        %v1867 = vunpack.c.l.b16 %v457
        %v1868 = vunpack.c.l.b16 %v458
        %v1869 = vunpack.c.l.b16 %v459
        %v1870 = vunpack.c.l.b16 %v460
        %v1871 = vunpack.c.l.b16 %v461
        %v1872 = vunpack.c.l.b16 %v462
        %v1873 = vunpack.c.l.b16 %v463
        %v1874 = vunpack.c.l.b16 %v464
        %v1875 = vunpack.c.l.b16 %v465
        %v1876 = vunpack.c.l.b16 %v466
        %v1877 = vunpack.c.l.b16 %v467
        %v1878 = vunpack.c.l.b16 %v468
        %v1879 = vunpack.c.l.b16 %v469
        %v1880 = vunpack.c.l.b16 %v470
        %v1881 = vunpack.c.l.b16 %v471
        %v1882 = vpack.c.b16 %v1499, %v1866
        %v1883 = vpack.c.b16 %v1501, %v1867
        %v1884 = vpack.c.b16 %v1503, %v1868
        %v1885 = vpack.c.b16 %v1505, %v1869
        %v1886 = vpack.c.b16 %v1507, %v1870
        %v1887 = vpack.c.b16 %v1509, %v1871
        %v1888 = vpack.c.b16 %v1511, %v1872
        %v1889 = vpack.c.b16 %v1513, %v1873
        %v1890 = vpack.c.b16 %v1515, %v1874
        %v1891 = vpack.c.b16 %v1517, %v1875
        %v1892 = vpack.c.b16 %v1519, %v1876
        %v1893 = vpack.c.b16 %v1521, %v1877
        %v1894 = vpack.c.b16 %v1523, %v1878
        %v1895 = vpack.c.b16 %v1525, %v1879
        %v1896 = vpack.c.b16 %v1527, %v1880
        %v1897 = vpack.c.b16 %v1529, %v1881
        %v1898 = vrot.slane %v1882, 1
        %v1899 = vrot.slane %v1610, 1
        %v1900 = vsel %vm873, %v1898, %v1899
        %v1901 = vrot.slane %v1883, 1
        %v1902 = vrot.slane %v1611, 1
        %v1903 = vsel %vm873, %v1901, %v1902
        %v1904 = vrot.slane %v1884, 1
        %v1905 = vrot.slane %v1612, 1
        %v1906 = vsel %vm873, %v1904, %v1905
        %v1907 = vrot.slane %v1885, 1
        %v1908 = vrot.slane %v1613, 1
        %v1909 = vsel %vm873, %v1907, %v1908
        %v1910 = vrot.slane %v1886, 1
        %v1911 = vrot.slane %v1614, 1
        %v1912 = vsel %vm873, %v1910, %v1911
        %v1913 = vrot.slane %v1887, 1
        %v1914 = vrot.slane %v1615, 1
        %v1915 = vsel %vm873, %v1913, %v1914
        %v1916 = vrot.slane %v1888, 1
        %v1917 = vrot.slane %v1616, 1
        %v1918 = vsel %vm873, %v1916, %v1917
        %v1919 = vrot.slane %v1889, 1
        %v1920 = vrot.slane %v1617, 1
        %v1921 = vsel %vm873, %v1919, %v1920
        %v1922 = vrot.slane %v1890, 1
        %v1923 = vrot.slane %v1618, 1
        %v1924 = vsel %vm873, %v1922, %v1923
        %v1925 = vrot.slane %v1891, 1
        %v1926 = vrot.slane %v1619, 1
        %v1927 = vsel %vm873, %v1925, %v1926
        %v1928 = vrot.slane %v1892, 1
        %v1929 = vrot.slane %v1620, 1
        %v1930 = vsel %vm873, %v1928, %v1929
        %v1931 = vrot.slane %v1893, 1
        %v1932 = vrot.slane %v1621, 1
        %v1933 = vsel %vm873, %v1931, %v1932
        %v1934 = vrot.slane %v1894, 1
        %v1935 = vrot.slane %v1622, 1
        %v1936 = vsel %vm873, %v1934, %v1935
        %v1937 = vrot.slane %v1895, 1
        %v1938 = vrot.slane %v1623, 1
        %v1939 = vsel %vm873, %v1937, %v1938
        %v1940 = vrot.slane %v1896, 1
        %v1941 = vrot.slane %v1624, 1
        %v1942 = vsel %vm873, %v1940, %v1941
        %v1943 = vrot.slane %v1897, 1
        %v1944 = vrot.slane %v1625, 1
        %v1945 = vsel %vm873, %v1943, %v1944
        %vm1946 = vcmask 130048
        %v1948 = vsel %vm1946, %v536, %v794
        %v1950 = vsel %vm1946, %v537, %v796
        %v1952 = vsel %vm1946, %v538, %v798
        %v1954 = vsel %vm1946, %v539, %v800
        %v1956 = vsel %vm1946, %v540, %v802
        %v1958 = vsel %vm1946, %v541, %v804
        %v1960 = vsel %vm1946, %v542, %v806
        %v1962 = vsel %vm1946, %v543, %v808
        %v1964 = vsel %vm1946, %v544, %v810
        %v1966 = vsel %vm1946, %v545, %v812
        %v1968 = vsel %vm1946, %v546, %v814
        %v1970 = vsel %vm1946, %v547, %v816
        %v1972 = vsel %vm1946, %v548, %v818
        %v1974 = vsel %vm1946, %v549, %v820
        %v1976 = vsel %vm1946, %v550, %v822
        %v1978 = vsel %vm1946, %v551, %v824
        %vm1979 = vcmask 261120
        %v1981 = vsel %vm1979, %v1948, %v923
        %v1983 = vsel %vm1979, %v1950, %v925
        %v1985 = vsel %vm1979, %v1952, %v927
        %v1987 = vsel %vm1979, %v1954, %v929
        %v1989 = vsel %vm1979, %v1956, %v931
        %v1991 = vsel %vm1979, %v1958, %v933
        %v1993 = vsel %vm1979, %v1960, %v935
        %v1995 = vsel %vm1979, %v1962, %v937
        %v1997 = vsel %vm1979, %v1964, %v939
        %v1999 = vsel %vm1979, %v1966, %v941
        %v2001 = vsel %vm1979, %v1968, %v943
        %v2003 = vsel %vm1979, %v1970, %v945
        %v2005 = vsel %vm1979, %v1972, %v947
        %v2007 = vsel %vm1979, %v1974, %v949
        %v2009 = vsel %vm1979, %v1976, %v951
        %v2011 = vsel %vm1979, %v1978, %v953
        %vm2012 = vcmask 392192
        %v2014 = vsel %vm2012, %v1981, %v1035
        %v2016 = vsel %vm2012, %v1983, %v1037
        %v2018 = vsel %vm2012, %v1985, %v1039
        %v2020 = vsel %vm2012, %v1987, %v1041
        %v2022 = vsel %vm2012, %v1989, %v1043
        %v2024 = vsel %vm2012, %v1991, %v1045
        %v2026 = vsel %vm2012, %v1993, %v1047
        %v2028 = vsel %vm2012, %v1995, %v1049
        %v2030 = vsel %vm2012, %v1997, %v1051
        %v2032 = vsel %vm2012, %v1999, %v1053
        %v2034 = vsel %vm2012, %v2001, %v1055
        %v2036 = vsel %vm2012, %v2003, %v1057
        %v2038 = vsel %vm2012, %v2005, %v1059
        %v2040 = vsel %vm2012, %v2007, %v1061
        %v2042 = vsel %vm2012, %v2009, %v1063
        %v2044 = vsel %vm2012, %v2011, %v1065
        %vm2045 = vcmask 523264
        %v2047 = vsel %vm2045, %v2014, %v1307
        %v2049 = vsel %vm2045, %v2016, %v1309
        %v2051 = vsel %vm2045, %v2018, %v1311
        %v2053 = vsel %vm2045, %v2020, %v1313
        %v2055 = vsel %vm2045, %v2022, %v1315
        %v2057 = vsel %vm2045, %v2024, %v1317
        %v2059 = vsel %vm2045, %v2026, %v1319
        %v2061 = vsel %vm2045, %v2028, %v1321
        %v2063 = vsel %vm2045, %v2030, %v1323
        %v2065 = vsel %vm2045, %v2032, %v1325
        %v2067 = vsel %vm2045, %v2034, %v1327
        %v2069 = vsel %vm2045, %v2036, %v1329
        %v2071 = vsel %vm2045, %v2038, %v1331
        %v2073 = vsel %vm2045, %v2040, %v1333
        %v2075 = vsel %vm2045, %v2042, %v1335
        %v2077 = vsel %vm2045, %v2044, %v1337
        %vm2078 = vcmask 654336
        %v2080 = vsel %vm2078, %v2047, %v1435
        %v2082 = vsel %vm2078, %v2049, %v1437
        %v2084 = vsel %vm2078, %v2051, %v1439
        %v2086 = vsel %vm2078, %v2053, %v1441
        %v2088 = vsel %vm2078, %v2055, %v1443
        %v2090 = vsel %vm2078, %v2057, %v1445
        %v2092 = vsel %vm2078, %v2059, %v1447
        %v2094 = vsel %vm2078, %v2061, %v1449
        %v2096 = vsel %vm2078, %v2063, %v1451
        %v2098 = vsel %vm2078, %v2065, %v1453
        %v2100 = vsel %vm2078, %v2067, %v1455
        %v2102 = vsel %vm2078, %v2069, %v1457
        %v2104 = vsel %vm2078, %v2071, %v1459
        %v2106 = vsel %vm2078, %v2073, %v1461
        %v2108 = vsel %vm2078, %v2075, %v1463
        %v2110 = vsel %vm2078, %v2077, %v1465
        %vm2111 = vcmask 785408
        %v2113 = vsel %vm2111, %v2080, %v1547
        %v2115 = vsel %vm2111, %v2082, %v1549
        %v2117 = vsel %vm2111, %v2084, %v1551
        %v2119 = vsel %vm2111, %v2086, %v1553
        %v2121 = vsel %vm2111, %v2088, %v1555
        %v2123 = vsel %vm2111, %v2090, %v1557
        %v2125 = vsel %vm2111, %v2092, %v1559
        %v2127 = vsel %vm2111, %v2094, %v1561
        %v2129 = vsel %vm2111, %v2096, %v1563
        %v2131 = vsel %vm2111, %v2098, %v1565
        %v2133 = vsel %vm2111, %v2100, %v1567
        %v2135 = vsel %vm2111, %v2102, %v1569
        %v2137 = vsel %vm2111, %v2104, %v1571
        %v2139 = vsel %vm2111, %v2106, %v1573
        %v2141 = vsel %vm2111, %v2108, %v1575
        %v2143 = vsel %vm2111, %v2110, %v1577
        %vm2144 = vcmask 916480
        %v2146 = vsel %vm2144, %v2113, %v1819
        %v2149 = vsel %vm2144, %v2115, %v1821
        %v2152 = vsel %vm2144, %v2117, %v1823
        %v2155 = vsel %vm2144, %v2119, %v1825
        %v2158 = vsel %vm2144, %v2121, %v1827
        %v2161 = vsel %vm2144, %v2123, %v1829
        %v2164 = vsel %vm2144, %v2125, %v1831
        %v2167 = vsel %vm2144, %v2127, %v1833
        %v2170 = vsel %vm2144, %v2129, %v1835
        %v2173 = vsel %vm2144, %v2131, %v1837
        %v2176 = vsel %vm2144, %v2133, %v1839
        %v2179 = vsel %vm2144, %v2135, %v1841
        %v2182 = vsel %vm2144, %v2137, %v1843
        %v2185 = vsel %vm2144, %v2139, %v1845
        %v2188 = vsel %vm2144, %v2141, %v1847
        %v2191 = vsel %vm2144, %v2143, %v1849
        %v2193 = vld [vmem:[%s1] sm:$0xf]
        %v2194 = vld [vmem:[%s1 + $0x4] sm:$0xf]
        %v2195 = vld [vmem:[%s1 + $0x8] sm:$0xf]
        %v2196 = vld [vmem:[%s1 + $0xc] sm:$0xf]
        %v2197 = vld [vmem:[%s1 + $0x10] sm:$0xf]
        %v2198 = vld [vmem:[%s1 + $0x14] sm:$0xf]
        %v2199 = vld [vmem:[%s1 + $0x18] sm:$0xf]
        %v2200 = vld [vmem:[%s1 + $0x1c] sm:$0xf]
        %v2201 = vld [vmem:[%s1 + $0x20] sm:$0xf]
        %v2202 = vld [vmem:[%s1 + $0x24] sm:$0xf]
        %v2203 = vld [vmem:[%s1 + $0x28] sm:$0xf]
        %v2204 = vld [vmem:[%s1 + $0x2c] sm:$0xf]
        %v2205 = vld [vmem:[%s1 + $0x30] sm:$0xf]
        %v2206 = vld [vmem:[%s1 + $0x34] sm:$0xf]
        %v2207 = vld [vmem:[%s1 + $0x38] sm:$0xf]
        %v2208 = vld [vmem:[%s1 + $0x3c] sm:$0xf]
        %v2209 = vld [vmem:[%s1 + $0x40] sm:$0xf]
        %v2210 = vld [vmem:[%s1 + $0x44] sm:$0xf]
        %v2211 = vld [vmem:[%s2] sm:$0x1]
        %v2213 = vlaneseq
        %v2214 = vshrl.u32 %v2213, 7
        %v2215 = vsub.s32 0, %v2214
        %v2216 = vrot.slane %v2211, %v2215
        %v2236 = vunpack.c.l.b16 %v2193
        %v2237 = vunpack.c.l.b16 %v2194
        %v2238 = vunpack.c.l.b16 %v2195
        %v2239 = vunpack.c.l.b16 %v2196
        %v2240 = vunpack.c.l.b16 %v2197
        %v2241 = vunpack.c.l.b16 %v2198
        %v2242 = vunpack.c.l.b16 %v2199
        %v2243 = vunpack.c.l.b16 %v2200
        %v2244 = vunpack.c.l.b16 %v2201
        %v2245 = vunpack.c.l.b16 %v2202
        %v2246 = vunpack.c.l.b16 %v2203
        %v2247 = vunpack.c.l.b16 %v2204
        %v2248 = vunpack.c.l.b16 %v2205
        %v2249 = vunpack.c.l.b16 %v2206
        %v2250 = vunpack.c.l.b16 %v2207
        %v2251 = vunpack.c.l.b16 %v2208
        %v2252 = vunpack.c.l.b16 %v2209
        %v2253 = vunpack.c.l.b16 %v2210
        %v2254 = vpack.c.b16 %v2237, %v2236
        %v2255 = vpack.c.b16 %v2239, %v2238
        %v2256 = vpack.c.b16 %v2241, %v2240
        %v2257 = vpack.c.b16 %v2243, %v2242
        %v2258 = vpack.c.b16 %v2245, %v2244
        %v2259 = vpack.c.b16 %v2247, %v2246
        %v2260 = vpack.c.b16 %v2249, %v2248
        %v2261 = vpack.c.b16 %v2251, %v2250
        %v2262 = vpack.c.b16 %v2253, %v2252
        %v2273 = vsel %vm1946, %v1900, 0
        %v2276 = vsel %vm1946, %v1903, 0
        %v2279 = vsel %vm1946, %v1906, 0
        %v2282 = vsel %vm1946, %v1909, 0
        %v2285 = vsel %vm1946, %v1912, 0
        %v2288 = vsel %vm1946, %v1915, 0
        %v2291 = vsel %vm1946, %v1918, 0
        %v2294 = vsel %vm1946, %v1921, 0
        %v2297 = vsel %vm1946, %v1924, 0
        %v2300 = vsel %vm1946, %v1927, 0
        %v2303 = vsel %vm1946, %v1930, 0
        %v2306 = vsel %vm1946, %v1933, 0
        %v2309 = vsel %vm1946, %v1936, 0
        %v2312 = vsel %vm1946, %v1939, 0
        %v2315 = vsel %vm1946, %v1942, 0
        %v2318 = vsel %vm1946, %v1945, 0
        %2320 = vmatprep.subr.bf16.mxu0 0
        %2321 = vmatpush1.bf16.msra.mxu0 %v2261
        %2322 = vmatprep.subr.bf16.mxu0 0
        %2323 = vmatpush1.bf16.msra.mxu0 %v2260
        %2324 = vmatprep.subr.bf16.mxu0 0
        %2325 = vmatpush1.bf16.msra.mxu0 %v2259
        %2326 = vmatprep.subr.bf16.mxu0 0
        %2327 = vmatpush1.bf16.msra.mxu0 %v2258
        %2328 = vmatprep.subr.bf16.mxu0 0
        %2329 = vmatpush1.bf16.msra.mxu0 %v2257
        %2330 = vmatprep.subr.bf16.mxu0 0
        %2331 = vmatpush1.bf16.msra.mxu0 %v2256
        %2332 = vmatprep.subr.bf16.mxu0 0
        %2333 = vmatpush1.bf16.msra.mxu0 %v2255
        %2334 = vmatprep.subr.bf16.mxu0 0
        %2335 = vmatpush1.bf16.msra.mxu0 %v2254
        %2336 = vmatprep.subr.bf16.mxu0 0
        %2337 = vmatpush2.bf16.msra.mxu0 0
        %2338 = vmatprep.subr.bf16.mxu0 0
        %2339 = vmatpush2.bf16.msra.mxu0 0
        %2340 = vmatprep.subr.bf16.mxu0 0
        %2341 = vmatpush2.bf16.msra.mxu0 0
        %2342 = vmatprep.subr.bf16.mxu0 0
        %2343 = vmatpush2.bf16.msra.mxu0 0
        %2344 = vmatprep.subr.bf16.mxu0 0
        %2345 = vmatpush2.bf16.msra.mxu0 0
        %2346 = vmatprep.subr.bf16.mxu0 0
        %2347 = vmatpush2.bf16.msra.mxu0 0
        %2348 = vmatprep.subr.bf16.mxu0 0
        %2349 = vmatpush2.bf16.msra.mxu0 0
        %2350 = vmatprep.subr.bf16.mxu0 0
        %2351 = vmatpush2.bf16.msra.mxu0 %v2262
        %2352 = vmatprep.mubr.bf16.mxu0 %v2273
        %2353 = vmatmul.mubr.bf16.gmra.mxu0 %v2146
        %v2354 = vpop.f32.mrf.mxu0
        %v2355 = vadd.f32 %v2216, %v2354
        %v2356 = vpop.f32.mrf.mxu0
        %v2357 = vpop.f32.mrf.mxu0
        %v2358 = vadd.f32 %v2216, %v2357
        %v2359 = vpop.f32.mrf.mxu0
        %2360 = vmatprep.mubr.bf16.mxu0 %v2276
        %2361 = vmatmul.mubr.bf16.gmra.mxu0 %v2149
        %v2362 = vpop.f32.mrf.mxu0
        %v2363 = vadd.f32 %v2216, %v2362
        %v2364 = vpop.f32.mrf.mxu0
        %v2365 = vpop.f32.mrf.mxu0
        %v2366 = vadd.f32 %v2216, %v2365
        %v2367 = vpop.f32.mrf.mxu0
        %2368 = vmatprep.mubr.bf16.mxu0 %v2279
        %2369 = vmatmul.mubr.bf16.gmra.mxu0 %v2152
        %v2370 = vpop.f32.mrf.mxu0
        %v2371 = vadd.f32 %v2216, %v2370
        %v2372 = vpop.f32.mrf.mxu0
        %v2373 = vpop.f32.mrf.mxu0
        %v2374 = vadd.f32 %v2216, %v2373
        %v2375 = vpop.f32.mrf.mxu0
        %2376 = vmatprep.mubr.bf16.mxu0 %v2282
        %2377 = vmatmul.mubr.bf16.gmra.mxu0 %v2155
        %v2378 = vpop.f32.mrf.mxu0
        %v2379 = vadd.f32 %v2216, %v2378
        %v2380 = vpop.f32.mrf.mxu0
        %v2381 = vpop.f32.mrf.mxu0
        %v2382 = vadd.f32 %v2216, %v2381
        %v2383 = vpop.f32.mrf.mxu0
        %2384 = vmatprep.mubr.bf16.mxu0 %v2285
        %2385 = vmatmul.mubr.bf16.gmra.mxu0 %v2158
        %v2386 = vpop.f32.mrf.mxu0
        %v2387 = vadd.f32 %v2216, %v2386
        %v2388 = vpop.f32.mrf.mxu0
        %v2389 = vpop.f32.mrf.mxu0
        %v2390 = vadd.f32 %v2216, %v2389
        %v2391 = vpop.f32.mrf.mxu0
        %2392 = vmatprep.mubr.bf16.mxu0 %v2288
        %2393 = vmatmul.mubr.bf16.gmra.mxu0 %v2161
        %v2394 = vpop.f32.mrf.mxu0
        %v2395 = vadd.f32 %v2216, %v2394
        %v2396 = vpop.f32.mrf.mxu0
        %v2397 = vpop.f32.mrf.mxu0
        %v2398 = vadd.f32 %v2216, %v2397
        %v2399 = vpop.f32.mrf.mxu0
        %2400 = vmatprep.mubr.bf16.mxu0 %v2291
        %2401 = vmatmul.mubr.bf16.gmra.mxu0 %v2164
        %v2402 = vpop.f32.mrf.mxu0
        %v2403 = vadd.f32 %v2216, %v2402
        %v2404 = vpop.f32.mrf.mxu0
        %v2405 = vpop.f32.mrf.mxu0
        %v2406 = vadd.f32 %v2216, %v2405
        %v2407 = vpop.f32.mrf.mxu0
        %2408 = vmatprep.mubr.bf16.mxu0 %v2294
        %2409 = vmatmul.mubr.bf16.gmra.mxu0 %v2167
        %v2410 = vpop.f32.mrf.mxu0
        %v2411 = vadd.f32 %v2216, %v2410
        %v2412 = vpop.f32.mrf.mxu0
        %v2413 = vpop.f32.mrf.mxu0
        %v2414 = vadd.f32 %v2216, %v2413
        %v2415 = vpop.f32.mrf.mxu0
        %2416 = vmatprep.mubr.bf16.mxu0 %v2297
        %2417 = vmatmul.mubr.bf16.gmra.mxu0 %v2170
        %v2418 = vpop.f32.mrf.mxu0
        %v2419 = vadd.f32 %v2216, %v2418
        %v2420 = vpop.f32.mrf.mxu0
        %v2421 = vpop.f32.mrf.mxu0
        %v2422 = vadd.f32 %v2216, %v2421
        %v2423 = vpop.f32.mrf.mxu0
        %2424 = vmatprep.mubr.bf16.mxu0 %v2300
        %2425 = vmatmul.mubr.bf16.gmra.mxu0 %v2173
        %v2426 = vpop.f32.mrf.mxu0
        %v2427 = vadd.f32 %v2216, %v2426
        %v2428 = vpop.f32.mrf.mxu0
        %v2429 = vpop.f32.mrf.mxu0
        %v2430 = vadd.f32 %v2216, %v2429
        %v2431 = vpop.f32.mrf.mxu0
        %2432 = vmatprep.mubr.bf16.mxu0 %v2303
        %2433 = vmatmul.mubr.bf16.gmra.mxu0 %v2176
        %v2434 = vpop.f32.mrf.mxu0
        %v2435 = vadd.f32 %v2216, %v2434
        %v2436 = vpop.f32.mrf.mxu0
        %v2437 = vpop.f32.mrf.mxu0
        %v2438 = vadd.f32 %v2216, %v2437
        %v2439 = vpop.f32.mrf.mxu0
        %2440 = vmatprep.mubr.bf16.mxu0 %v2306
        %2441 = vmatmul.mubr.bf16.gmra.mxu0 %v2179
        %v2442 = vpop.f32.mrf.mxu0
        %v2443 = vadd.f32 %v2216, %v2442
        %v2444 = vpop.f32.mrf.mxu0
        %v2445 = vpop.f32.mrf.mxu0
        %v2446 = vadd.f32 %v2216, %v2445
        %v2447 = vpop.f32.mrf.mxu0
        %2448 = vmatprep.mubr.bf16.mxu0 %v2309
        %2449 = vmatmul.mubr.bf16.gmra.mxu0 %v2182
        %v2450 = vpop.f32.mrf.mxu0
        %v2451 = vadd.f32 %v2216, %v2450
        %v2452 = vpop.f32.mrf.mxu0
        %v2453 = vpop.f32.mrf.mxu0
        %v2454 = vadd.f32 %v2216, %v2453
        %v2455 = vpop.f32.mrf.mxu0
        %2456 = vmatprep.mubr.bf16.mxu0 %v2312
        %2457 = vmatmul.mubr.bf16.gmra.mxu0 %v2185
        %v2458 = vpop.f32.mrf.mxu0
        %v2459 = vadd.f32 %v2216, %v2458
        %v2460 = vpop.f32.mrf.mxu0
        %v2461 = vpop.f32.mrf.mxu0
        %v2462 = vadd.f32 %v2216, %v2461
        %v2463 = vpop.f32.mrf.mxu0
        %2464 = vmatprep.mubr.bf16.mxu0 %v2315
        %2465 = vmatmul.mubr.bf16.gmra.mxu0 %v2188
        %v2466 = vpop.f32.mrf.mxu0
        %v2467 = vadd.f32 %v2216, %v2466
        %v2468 = vpop.f32.mrf.mxu0
        %v2469 = vpop.f32.mrf.mxu0
        %v2470 = vadd.f32 %v2216, %v2469
        %v2471 = vpop.f32.mrf.mxu0
        %2472 = vmatprep.mubr.bf16.mxu0 %v2318
        %2473 = vmatmul.mubr.bf16.gmra.mxu0 %v2191
        %v2474 = vpop.f32.mrf.mxu0
        %v2475 = vadd.f32 %v2216, %v2474
        %v2476 = vpop.f32.mrf.mxu0
        %v2477 = vpop.f32.mrf.mxu0
        %v2478 = vadd.f32 %v2216, %v2477
        %v2479 = vpop.f32.mrf.mxu0
        %2480 = vdwg.mxu0
        %v2481 = vmax.f32 %v2355, 0.0
        %v2482 = vmax.f32 %v2358, 0.0
        %v2483 = vmax.f32 %v2363, 0.0
        %v2484 = vmax.f32 %v2366, 0.0
        %v2485 = vmax.f32 %v2371, 0.0
        %v2486 = vmax.f32 %v2374, 0.0
        %v2487 = vmax.f32 %v2379, 0.0
        %v2488 = vmax.f32 %v2382, 0.0
        %v2489 = vmax.f32 %v2387, 0.0
        %v2490 = vmax.f32 %v2390, 0.0
        %v2491 = vmax.f32 %v2395, 0.0
        %v2492 = vmax.f32 %v2398, 0.0
        %v2493 = vmax.f32 %v2403, 0.0
        %v2494 = vmax.f32 %v2406, 0.0
        %v2495 = vmax.f32 %v2411, 0.0
        %v2496 = vmax.f32 %v2414, 0.0
        %v2497 = vmax.f32 %v2419, 0.0
        %v2498 = vmax.f32 %v2422, 0.0
        %v2499 = vmax.f32 %v2427, 0.0
        %v2500 = vmax.f32 %v2430, 0.0
        %v2501 = vmax.f32 %v2435, 0.0
        %v2502 = vmax.f32 %v2438, 0.0
        %v2503 = vmax.f32 %v2443, 0.0
        %v2504 = vmax.f32 %v2446, 0.0
        %v2505 = vmax.f32 %v2451, 0.0
        %v2506 = vmax.f32 %v2454, 0.0
        %v2507 = vmax.f32 %v2459, 0.0
        %v2508 = vmax.f32 %v2462, 0.0
        %v2509 = vmax.f32 %v2467, 0.0
        %v2510 = vmax.f32 %v2470, 0.0
        %v2511 = vmax.f32 %v2475, 0.0
        %v2512 = vmax.f32 %v2478, 0.0
        %v2513 = vpack.c.bf16 %v2482, %v2481
        %v2514 = vpack.c.bf16 %v2484, %v2483
        %v2515 = vpack.c.bf16 %v2486, %v2485
        %v2516 = vpack.c.bf16 %v2488, %v2487
        %v2517 = vpack.c.bf16 %v2490, %v2489
        %v2518 = vpack.c.bf16 %v2492, %v2491
        %v2519 = vpack.c.bf16 %v2494, %v2493
        %v2520 = vpack.c.bf16 %v2496, %v2495
        %v2521 = vpack.c.bf16 %v2498, %v2497
        %v2522 = vpack.c.bf16 %v2500, %v2499
        %v2523 = vpack.c.bf16 %v2502, %v2501
        %v2524 = vpack.c.bf16 %v2504, %v2503
        %v2525 = vpack.c.bf16 %v2506, %v2505
        %v2526 = vpack.c.bf16 %v2508, %v2507
        %v2527 = vpack.c.bf16 %v2510, %v2509
        %v2528 = vpack.c.bf16 %v2512, %v2511
        %v2545 = vunpack.c.l.b16 %v2513
        %v2546 = vunpack.c.h.b16 %v2513
        %v2547 = vunpack.c.l.b16 %v2514
        %v2548 = vunpack.c.h.b16 %v2514
        %v2549 = vunpack.c.l.b16 %v2515
        %v2550 = vunpack.c.h.b16 %v2515
        %v2551 = vunpack.c.l.b16 %v2516
        %v2552 = vunpack.c.h.b16 %v2516
        %v2553 = vunpack.c.l.b16 %v2517
        %v2554 = vunpack.c.h.b16 %v2517
        %v2555 = vunpack.c.l.b16 %v2518
        %v2556 = vunpack.c.h.b16 %v2518
        %v2557 = vunpack.c.l.b16 %v2519
        %v2558 = vunpack.c.h.b16 %v2519
        %v2559 = vunpack.c.l.b16 %v2520
        %v2560 = vunpack.c.h.b16 %v2520
        %v2561 = vunpack.c.l.b16 %v2521
        %v2562 = vunpack.c.h.b16 %v2521
        %v2563 = vunpack.c.l.b16 %v2522
        %v2564 = vunpack.c.h.b16 %v2522
        %v2565 = vunpack.c.l.b16 %v2523
        %v2566 = vunpack.c.h.b16 %v2523
        %v2567 = vunpack.c.l.b16 %v2524
        %v2568 = vunpack.c.h.b16 %v2524
        %v2569 = vunpack.c.l.b16 %v2525
        %v2570 = vunpack.c.h.b16 %v2525
        %v2571 = vunpack.c.l.b16 %v2526
        %v2572 = vunpack.c.h.b16 %v2526
        %v2573 = vunpack.c.l.b16 %v2527
        %v2574 = vunpack.c.h.b16 %v2527
        %v2575 = vunpack.c.l.b16 %v2528
        %v2576 = vunpack.c.h.b16 %v2528
        %v2577 = vpack.c.b16 %v2545, %v2545
        %v2578 = vpack.c.b16 %v2546, %v2546
        %v2579 = vpack.c.b16 %v2547, %v2547
        %v2580 = vpack.c.b16 %v2548, %v2548
        %v2581 = vpack.c.b16 %v2549, %v2549
        %v2582 = vpack.c.b16 %v2550, %v2550
        %v2583 = vpack.c.b16 %v2551, %v2551
        %v2584 = vpack.c.b16 %v2552, %v2552
        %v2585 = vpack.c.b16 %v2553, %v2553
        %v2586 = vpack.c.b16 %v2554, %v2554
        %v2587 = vpack.c.b16 %v2555, %v2555
        %v2588 = vpack.c.b16 %v2556, %v2556
        %v2589 = vpack.c.b16 %v2557, %v2557
        %v2590 = vpack.c.b16 %v2558, %v2558
        %v2591 = vpack.c.b16 %v2559, %v2559
        %v2592 = vpack.c.b16 %v2560, %v2560
        %v2593 = vpack.c.b16 %v2561, %v2561
        %v2594 = vpack.c.b16 %v2562, %v2562
        %v2595 = vpack.c.b16 %v2563, %v2563
        %v2596 = vpack.c.b16 %v2564, %v2564
        %v2597 = vpack.c.b16 %v2565, %v2565
        %v2598 = vpack.c.b16 %v2566, %v2566
        %v2599 = vpack.c.b16 %v2567, %v2567
        %v2600 = vpack.c.b16 %v2568, %v2568
        %v2601 = vpack.c.b16 %v2569, %v2569
        %v2602 = vpack.c.b16 %v2570, %v2570
        %v2603 = vpack.c.b16 %v2571, %v2571
        %v2604 = vpack.c.b16 %v2572, %v2572
        %v2605 = vpack.c.b16 %v2573, %v2573
        %v2606 = vpack.c.b16 %v2574, %v2574
        %v2607 = vpack.c.b16 %v2575, %v2575
        %v2608 = vpack.c.b16 %v2576, %v2576
        %vm2609 = vsmask.f32 256
        %vm2610 = vsmask.f32 4368
        %vm2611 = vmor %vm2609, %vm2610
        %v2613 = vshrl.u32 %v2577, 16
        %v2615 = vrot.slane %v2613, 7
        %v2616 = vshll.u32 %v2577, 16
        %v2618 = vor.u32 %v2615, %v2616
        %v2619 = vrot.slane %v2615, 4
        %v2621 = vshrl.u32 %v2578, 16
        %v2623 = vrot.slane %v2621, 7
        %v2624 = vshll.u32 %v2578, 16
        %v2626 = vor.u32 %v2623, %v2624
        %v2627 = vsel %vm2611, %v2619, %v2626
        %v2628 = vrot.slane %v2623, 4
        %v2630 = vshrl.u32 %v2579, 16
        %v2632 = vrot.slane %v2630, 7
        %v2633 = vshll.u32 %v2579, 16
        %v2635 = vor.u32 %v2632, %v2633
        %v2636 = vrot.slane %v2632, 4
        %v2638 = vshrl.u32 %v2580, 16
        %v2640 = vrot.slane %v2638, 7
        %v2641 = vshll.u32 %v2580, 16
        %v2643 = vor.u32 %v2640, %v2641
        %v2644 = vsel %vm2611, %v2636, %v2643
        %v2645 = vrot.slane %v2640, 4
        %v2647 = vshrl.u32 %v2581, 16
        %v2649 = vrot.slane %v2647, 7
        %v2650 = vshll.u32 %v2581, 16
        %v2652 = vor.u32 %v2649, %v2650
        %v2653 = vrot.slane %v2649, 4
        %v2655 = vshrl.u32 %v2582, 16
        %v2657 = vrot.slane %v2655, 7
        %v2658 = vshll.u32 %v2582, 16
        %v2660 = vor.u32 %v2657, %v2658
        %v2661 = vsel %vm2611, %v2653, %v2660
        %v2662 = vrot.slane %v2657, 4
        %v2664 = vshrl.u32 %v2583, 16
        %v2666 = vrot.slane %v2664, 7
        %v2667 = vshll.u32 %v2583, 16
        %v2669 = vor.u32 %v2666, %v2667
        %v2670 = vrot.slane %v2666, 4
        %v2672 = vshrl.u32 %v2584, 16
        %v2674 = vrot.slane %v2672, 7
        %v2675 = vshll.u32 %v2584, 16
        %v2677 = vor.u32 %v2674, %v2675
        %v2678 = vsel %vm2611, %v2670, %v2677
        %v2679 = vrot.slane %v2674, 4
        %v2681 = vshrl.u32 %v2585, 16
        %v2683 = vrot.slane %v2681, 7
        %v2684 = vshll.u32 %v2585, 16
        %v2686 = vor.u32 %v2683, %v2684
        %v2687 = vrot.slane %v2683, 4
        %v2689 = vshrl.u32 %v2586, 16
        %v2691 = vrot.slane %v2689, 7
        %v2692 = vshll.u32 %v2586, 16
        %v2694 = vor.u32 %v2691, %v2692
        %v2695 = vsel %vm2611, %v2687, %v2694
        %v2696 = vrot.slane %v2691, 4
        %v2698 = vshrl.u32 %v2587, 16
        %v2700 = vrot.slane %v2698, 7
        %v2701 = vshll.u32 %v2587, 16
        %v2703 = vor.u32 %v2700, %v2701
        %v2704 = vrot.slane %v2700, 4
        %v2706 = vshrl.u32 %v2588, 16
        %v2708 = vrot.slane %v2706, 7
        %v2709 = vshll.u32 %v2588, 16
        %v2711 = vor.u32 %v2708, %v2709
        %v2712 = vsel %vm2611, %v2704, %v2711
        %v2713 = vrot.slane %v2708, 4
        %v2715 = vshrl.u32 %v2589, 16
        %v2717 = vrot.slane %v2715, 7
        %v2718 = vshll.u32 %v2589, 16
        %v2720 = vor.u32 %v2717, %v2718
        %v2721 = vrot.slane %v2717, 4
        %v2723 = vshrl.u32 %v2590, 16
        %v2725 = vrot.slane %v2723, 7
        %v2726 = vshll.u32 %v2590, 16
        %v2728 = vor.u32 %v2725, %v2726
        %v2729 = vsel %vm2611, %v2721, %v2728
        %v2730 = vrot.slane %v2725, 4
        %v2732 = vshrl.u32 %v2591, 16
        %v2734 = vrot.slane %v2732, 7
        %v2735 = vshll.u32 %v2591, 16
        %v2737 = vor.u32 %v2734, %v2735
        %v2738 = vrot.slane %v2734, 4
        %v2740 = vshrl.u32 %v2592, 16
        %v2742 = vrot.slane %v2740, 7
        %v2743 = vshll.u32 %v2592, 16
        %v2745 = vor.u32 %v2742, %v2743
        %v2746 = vsel %vm2611, %v2738, %v2745
        %v2747 = vrot.slane %v2742, 4
        %v2749 = vshrl.u32 %v2593, 16
        %v2751 = vrot.slane %v2749, 7
        %v2752 = vshll.u32 %v2593, 16
        %v2754 = vor.u32 %v2751, %v2752
        %v2755 = vrot.slane %v2751, 4
        %v2757 = vshrl.u32 %v2594, 16
        %v2759 = vrot.slane %v2757, 7
        %v2760 = vshll.u32 %v2594, 16
        %v2762 = vor.u32 %v2759, %v2760
        %v2763 = vsel %vm2611, %v2755, %v2762
        %v2764 = vrot.slane %v2759, 4
        %v2766 = vshrl.u32 %v2595, 16
        %v2768 = vrot.slane %v2766, 7
        %v2769 = vshll.u32 %v2595, 16
        %v2771 = vor.u32 %v2768, %v2769
        %v2772 = vrot.slane %v2768, 4
        %v2774 = vshrl.u32 %v2596, 16
        %v2776 = vrot.slane %v2774, 7
        %v2777 = vshll.u32 %v2596, 16
        %v2779 = vor.u32 %v2776, %v2777
        %v2780 = vsel %vm2611, %v2772, %v2779
        %v2781 = vrot.slane %v2776, 4
        %v2783 = vshrl.u32 %v2597, 16
        %v2785 = vrot.slane %v2783, 7
        %v2786 = vshll.u32 %v2597, 16
        %v2788 = vor.u32 %v2785, %v2786
        %v2789 = vrot.slane %v2785, 4
        %v2791 = vshrl.u32 %v2598, 16
        %v2793 = vrot.slane %v2791, 7
        %v2794 = vshll.u32 %v2598, 16
        %v2796 = vor.u32 %v2793, %v2794
        %v2797 = vsel %vm2611, %v2789, %v2796
        %v2798 = vrot.slane %v2793, 4
        %v2800 = vshrl.u32 %v2599, 16
        %v2802 = vrot.slane %v2800, 7
        %v2803 = vshll.u32 %v2599, 16
        %v2805 = vor.u32 %v2802, %v2803
        %v2806 = vrot.slane %v2802, 4
        %v2808 = vshrl.u32 %v2600, 16
        %v2810 = vrot.slane %v2808, 7
        %v2811 = vshll.u32 %v2600, 16
        %v2813 = vor.u32 %v2810, %v2811
        %v2814 = vsel %vm2611, %v2806, %v2813
        %v2815 = vrot.slane %v2810, 4
        %v2817 = vshrl.u32 %v2601, 16
        %v2819 = vrot.slane %v2817, 7
        %v2820 = vshll.u32 %v2601, 16
        %v2822 = vor.u32 %v2819, %v2820
        %v2823 = vrot.slane %v2819, 4
        %v2825 = vshrl.u32 %v2602, 16
        %v2827 = vrot.slane %v2825, 7
        %v2828 = vshll.u32 %v2602, 16
        %v2830 = vor.u32 %v2827, %v2828
        %v2831 = vsel %vm2611, %v2823, %v2830
        %v2832 = vrot.slane %v2827, 4
        %v2834 = vshrl.u32 %v2603, 16
        %v2836 = vrot.slane %v2834, 7
        %v2837 = vshll.u32 %v2603, 16
        %v2839 = vor.u32 %v2836, %v2837
        %v2840 = vrot.slane %v2836, 4
        %v2842 = vshrl.u32 %v2604, 16
        %v2844 = vrot.slane %v2842, 7
        %v2845 = vshll.u32 %v2604, 16
        %v2847 = vor.u32 %v2844, %v2845
        %v2848 = vsel %vm2611, %v2840, %v2847
        %v2849 = vrot.slane %v2844, 4
        %v2851 = vshrl.u32 %v2605, 16
        %v2853 = vrot.slane %v2851, 7
        %v2854 = vshll.u32 %v2605, 16
        %v2856 = vor.u32 %v2853, %v2854
        %v2857 = vrot.slane %v2853, 4
        %v2859 = vshrl.u32 %v2606, 16
        %v2861 = vrot.slane %v2859, 7
        %v2862 = vshll.u32 %v2606, 16
        %v2864 = vor.u32 %v2861, %v2862
        %v2865 = vsel %vm2611, %v2857, %v2864
        %v2866 = vrot.slane %v2861, 4
        %v2868 = vshrl.u32 %v2607, 16
        %v2870 = vrot.slane %v2868, 7
        %v2871 = vshll.u32 %v2607, 16
        %v2873 = vor.u32 %v2870, %v2871
        %v2874 = vrot.slane %v2870, 4
        %v2876 = vshrl.u32 %v2608, 16
        %v2878 = vrot.slane %v2876, 7
        %v2879 = vshll.u32 %v2608, 16
        %v2881 = vor.u32 %v2878, %v2879
        %v2882 = vsel %vm2611, %v2874, %v2881
        %v2883 = vrot.slane %v2878, 4
        %s2932 = scalar_lea.vmem [#allocation2], 12
        %vm2933 = vcmask 257024
        %vm2934 = vsmask.f32 7938
        %vm2935 = vmand %vm2933, %vm2934
        %v2936 = vld [vmem:[%s2932] sm:$0xf]
        %v2937 = vsel %vm2935, %v2618, %v2936
        %2938 = vst [vmem:[%s2932] sm:$0xf] %v2937
        %vm2939 = vcmask 257024
        %2940 = vst.msk [vmem:[%s2932 + $0x4] sm:$0xf] %vm2939, %v2627
        %vm2941 = vcmask 253952
        %vm2942 = vmand %vm2941, %vm2609
        %v2943 = vld [vmem:[%s2932 + $0x8] sm:$0x1]
        %v2944 = vsel %vm2942, %v2628, %v2943
        %2945 = vst [vmem:[%s2932 + $0x8] sm:$0x1] %v2944
        %v2946 = vld [vmem:[%s2932 + $0xc] sm:$0xf]
        %v2947 = vsel %vm2935, %v2635, %v2946
        %2948 = vst [vmem:[%s2932 + $0xc] sm:$0xf] %v2947
        %2949 = vst.msk [vmem:[%s2932 + $0x10] sm:$0xf] %vm2939, %v2644
        %v2950 = vld [vmem:[%s2932 + $0x14] sm:$0x1]
        %v2951 = vsel %vm2942, %v2645, %v2950
        %2952 = vst [vmem:[%s2932 + $0x14] sm:$0x1] %v2951
        %v2953 = vld [vmem:[%s2932 + $0x18] sm:$0xf]
        %v2954 = vsel %vm2935, %v2652, %v2953
        %2955 = vst [vmem:[%s2932 + $0x18] sm:$0xf] %v2954
        %2956 = vst.msk [vmem:[%s2932 + $0x1c] sm:$0xf] %vm2939, %v2661
        %v2957 = vld [vmem:[%s2932 + $0x20] sm:$0x1]
        %v2958 = vsel %vm2942, %v2662, %v2957
        %2959 = vst [vmem:[%s2932 + $0x20] sm:$0x1] %v2958
        %v2960 = vld [vmem:[%s2932 + $0x24] sm:$0xf]
        %v2961 = vsel %vm2935, %v2669, %v2960
        %2962 = vst [vmem:[%s2932 + $0x24] sm:$0xf] %v2961
        %2963 = vst.msk [vmem:[%s2932 + $0x28] sm:$0xf] %vm2939, %v2678
        %v2964 = vld [vmem:[%s2932 + $0x2c] sm:$0x1]
        %v2965 = vsel %vm2942, %v2679, %v2964
        %2966 = vst [vmem:[%s2932 + $0x2c] sm:$0x1] %v2965
        %v2967 = vld [vmem:[%s2932 + $0x30] sm:$0xf]
        %v2968 = vsel %vm2935, %v2686, %v2967
        %2969 = vst [vmem:[%s2932 + $0x30] sm:$0xf] %v2968
        %2970 = vst.msk [vmem:[%s2932 + $0x34] sm:$0xf] %vm2939, %v2695
        %v2971 = vld [vmem:[%s2932 + $0x38] sm:$0x1]
        %v2972 = vsel %vm2942, %v2696, %v2971
        %2973 = vst [vmem:[%s2932 + $0x38] sm:$0x1] %v2972
        %v2974 = vld [vmem:[%s2932 + $0x3c] sm:$0xf]
        %v2975 = vsel %vm2935, %v2703, %v2974
        %2976 = vst [vmem:[%s2932 + $0x3c] sm:$0xf] %v2975
        %2977 = vst.msk [vmem:[%s2932 + $0x40] sm:$0xf] %vm2939, %v2712
        %v2978 = vld [vmem:[%s2932 + $0x44] sm:$0x1]
        %v2979 = vsel %vm2942, %v2713, %v2978
        %2980 = vst [vmem:[%s2932 + $0x44] sm:$0x1] %v2979
        %v2981 = vld [vmem:[%s2932 + $0x48] sm:$0xf]
        %v2982 = vsel %vm2935, %v2720, %v2981
        %2983 = vst [vmem:[%s2932 + $0x48] sm:$0xf] %v2982
        %2984 = vst.msk [vmem:[%s2932 + $0x4c] sm:$0xf] %vm2939, %v2729
        %v2985 = vld [vmem:[%s2932 + $0x50] sm:$0x1]
        %v2986 = vsel %vm2942, %v2730, %v2985
        %2987 = vst [vmem:[%s2932 + $0x50] sm:$0x1] %v2986
        %v2988 = vld [vmem:[%s2932 + $0x54] sm:$0xf]
        %v2989 = vsel %vm2935, %v2737, %v2988
        %2990 = vst [vmem:[%s2932 + $0x54] sm:$0xf] %v2989
        %2991 = vst.msk [vmem:[%s2932 + $0x58] sm:$0xf] %vm2939, %v2746
        %v2992 = vld [vmem:[%s2932 + $0x5c] sm:$0x1]
        %v2993 = vsel %vm2942, %v2747, %v2992
        %2994 = vst [vmem:[%s2932 + $0x5c] sm:$0x1] %v2993
        %v2995 = vld [vmem:[%s2932 + $0x60] sm:$0xf]
        %v2996 = vsel %vm2935, %v2754, %v2995
        %2997 = vst [vmem:[%s2932 + $0x60] sm:$0xf] %v2996
        %2998 = vst.msk [vmem:[%s2932 + $0x64] sm:$0xf] %vm2939, %v2763
        %v2999 = vld [vmem:[%s2932 + $0x68] sm:$0x1]
        %v3000 = vsel %vm2942, %v2764, %v2999
        %3001 = vst [vmem:[%s2932 + $0x68] sm:$0x1] %v3000
        %v3002 = vld [vmem:[%s2932 + $0x6c] sm:$0xf]
        %v3003 = vsel %vm2935, %v2771, %v3002
        %3004 = vst [vmem:[%s2932 + $0x6c] sm:$0xf] %v3003
        %3005 = vst.msk [vmem:[%s2932 + $0x70] sm:$0xf] %vm2939, %v2780
        %v3006 = vld [vmem:[%s2932 + $0x74] sm:$0x1]
        %v3007 = vsel %vm2942, %v2781, %v3006
        %3008 = vst [vmem:[%s2932 + $0x74] sm:$0x1] %v3007
        %v3009 = vld [vmem:[%s2932 + $0x78] sm:$0xf]
        %v3010 = vsel %vm2935, %v2788, %v3009
        %3011 = vst [vmem:[%s2932 + $0x78] sm:$0xf] %v3010
        %3012 = vst.msk [vmem:[%s2932 + $0x7c] sm:$0xf] %vm2939, %v2797
        %v3013 = vld [vmem:[%s2932 + $0x80] sm:$0x1]
        %v3014 = vsel %vm2942, %v2798, %v3013
        %3015 = vst [vmem:[%s2932 + $0x80] sm:$0x1] %v3014
        %v3016 = vld [vmem:[%s2932 + $0x84] sm:$0xf]
        %v3017 = vsel %vm2935, %v2805, %v3016
        %3018 = vst [vmem:[%s2932 + $0x84] sm:$0xf] %v3017
        %3019 = vst.msk [vmem:[%s2932 + $0x88] sm:$0xf] %vm2939, %v2814
        %v3020 = vld [vmem:[%s2932 + $0x8c] sm:$0x1]
        %v3021 = vsel %vm2942, %v2815, %v3020
        %3022 = vst [vmem:[%s2932 + $0x8c] sm:$0x1] %v3021
        %v3023 = vld [vmem:[%s2932 + $0x90] sm:$0xf]
        %v3024 = vsel %vm2935, %v2822, %v3023
        %3025 = vst [vmem:[%s2932 + $0x90] sm:$0xf] %v3024
        %3026 = vst.msk [vmem:[%s2932 + $0x94] sm:$0xf] %vm2939, %v2831
        %v3027 = vld [vmem:[%s2932 + $0x98] sm:$0x1]
        %v3028 = vsel %vm2942, %v2832, %v3027
        %3029 = vst [vmem:[%s2932 + $0x98] sm:$0x1] %v3028
        %v3030 = vld [vmem:[%s2932 + $0x9c] sm:$0xf]
        %v3031 = vsel %vm2935, %v2839, %v3030
        %3032 = vst [vmem:[%s2932 + $0x9c] sm:$0xf] %v3031
        %3033 = vst.msk [vmem:[%s2932 + $0xa0] sm:$0xf] %vm2939, %v2848
        %v3034 = vld [vmem:[%s2932 + $0xa4] sm:$0x1]
        %v3035 = vsel %vm2942, %v2849, %v3034
        %3036 = vst [vmem:[%s2932 + $0xa4] sm:$0x1] %v3035
        %v3037 = vld [vmem:[%s2932 + $0xa8] sm:$0xf]
        %v3038 = vsel %vm2935, %v2856, %v3037
        %3039 = vst [vmem:[%s2932 + $0xa8] sm:$0xf] %v3038
        %3040 = vst.msk [vmem:[%s2932 + $0xac] sm:$0xf] %vm2939, %v2865
        %v3041 = vld [vmem:[%s2932 + $0xb0] sm:$0x1]
        %v3042 = vsel %vm2942, %v2866, %v3041
        %3043 = vst [vmem:[%s2932 + $0xb0] sm:$0x1] %v3042
        %v3044 = vld [vmem:[%s2932 + $0xb4] sm:$0xf]
        %v3045 = vsel %vm2935, %v2873, %v3044
        %3046 = vst [vmem:[%s2932 + $0xb4] sm:$0xf] %v3045
        %3047 = vst.msk [vmem:[%s2932 + $0xb8] sm:$0xf] %vm2939, %v2882
        %v3048 = vld [vmem:[%s2932 + $0xbc] sm:$0x1]
        %v3049 = vsel %vm2942, %v2883, %v3048
        %3050 = vst [vmem:[%s2932 + $0xbc] sm:$0x1] %v3049
        %v3051 = vld [vmem:[#allocation2] sm:$0xf]
        %v3052 = vsel %vm2935, %v2635, %v3051
        %3053 = vst [vmem:[#allocation2] sm:$0xf] %v3052
        %3054 = vst.msk [vmem:[#allocation2 + $0x4] sm:$0xf] %vm2939, %v2644
        %v3055 = vld [vmem:[#allocation2 + $0x8] sm:$0x1]
        %v3056 = vsel %vm2942, %v2645, %v3055
        %3057 = vst [vmem:[#allocation2 + $0x8] sm:$0x1] %v3056
        %s3058 = scalar_lea.vmem [#allocation2], 204
        %v3059 = vld [vmem:[%s3058] sm:$0xf]
        %v3060 = vsel %vm2935, %v2856, %v3059
        %3061 = vst [vmem:[%s3058] sm:$0xf] %v3060
        %3062 = vst.msk [vmem:[%s3058 + $0x4] sm:$0xf] %vm2939, %v2865
        %v3063 = vld [vmem:[%s3058 + $0x8] sm:$0x1]
        %v3064 = vsel %vm2942, %v2866, %v3063
        %3065 = vst [vmem:[%s3058 + $0x8] sm:$0x1] %v3064
        %v3066 = vld [vmem:[#allocation2] sm:$0x2]
        %v3067 = vld [vmem:[#allocation2 + $0xc] sm:$0x2]
        %v3068 = vld [vmem:[#allocation2 + $0x18] sm:$0x2]
        %v3069 = vld [vmem:[#allocation2 + $0x24] sm:$0x2]
        %v3070 = vld [vmem:[#allocation2 + $0x30] sm:$0x2]
        %v3071 = vld [vmem:[#allocation2 + $0x3c] sm:$0x2]
        %v3072 = vld [vmem:[#allocation2 + $0x48] sm:$0x2]
        %v3073 = vld [vmem:[#allocation2 + $0x54] sm:$0x2]
        %v3074 = vld [vmem:[#allocation2 + $0x60] sm:$0x2]
        %v3075 = vld [vmem:[#allocation2 + $0x6c] sm:$0x2]
        %v3076 = vld [vmem:[#allocation2 + $0x78] sm:$0x2]
        %v3077 = vld [vmem:[#allocation2 + $0x84] sm:$0x2]
        %v3078 = vld [vmem:[#allocation2 + $0x90] sm:$0x2]
        %v3079 = vld [vmem:[#allocation2 + $0x9c] sm:$0x2]
        %v3080 = vld [vmem:[#allocation2 + $0xa8] sm:$0x2]
        %v3081 = vld [vmem:[#allocation2 + $0xb4] sm:$0x2]
        %v3082 = vld [vmem:[#allocation2 + $0xc0] sm:$0x2]
        %v3083 = vld [vmem:[#allocation2 + $0xcc] sm:$0x2]
        %v3102 = vrot.slane %v3066, 5
        %v3103 = vrot.slane %v3102, 4
        %v3104 = vrot.slane %v3067, 5
        %v3105 = vrot.slane %v3104, 4
        %v3106 = vrot.slane %v3068, 5
        %v3107 = vrot.slane %v3106, 4
        %v3108 = vrot.slane %v3069, 5
        %v3109 = vrot.slane %v3108, 4
        %v3110 = vrot.slane %v3070, 5
        %v3111 = vrot.slane %v3110, 4
        %v3112 = vrot.slane %v3071, 5
        %v3113 = vrot.slane %v3112, 4
        %v3114 = vrot.slane %v3072, 5
        %v3115 = vrot.slane %v3114, 4
        %v3116 = vrot.slane %v3073, 5
        %v3117 = vrot.slane %v3116, 4
        %v3118 = vrot.slane %v3074, 5
        %v3119 = vrot.slane %v3118, 4
        %v3120 = vrot.slane %v3075, 5
        %v3121 = vrot.slane %v3120, 4
        %v3122 = vrot.slane %v3076, 5
        %v3123 = vrot.slane %v3122, 4
        %v3124 = vrot.slane %v3077, 5
        %v3125 = vrot.slane %v3124, 4
        %v3126 = vrot.slane %v3078, 5
        %v3127 = vrot.slane %v3126, 4
        %v3128 = vrot.slane %v3079, 5
        %v3129 = vrot.slane %v3128, 4
        %v3130 = vrot.slane %v3080, 5
        %v3131 = vrot.slane %v3130, 4
        %v3132 = vrot.slane %v3081, 5
        %v3133 = vrot.slane %v3132, 4
        %v3134 = vrot.slane %v3082, 5
        %v3135 = vrot.slane %v3134, 4
        %v3136 = vrot.slane %v3083, 5
        %v3137 = vrot.slane %v3136, 4
        %v3156 = vld [vmem:[#allocation2] sm:$0x1]
        %v3157 = vsel %vm2942, %v3103, %v3156
        %3158 = vst [vmem:[#allocation2] sm:$0x1] %v3157
        %v3159 = vld [vmem:[#allocation2 + $0xc] sm:$0x1]
        %v3160 = vsel %vm2942, %v3105, %v3159
        %3161 = vst [vmem:[#allocation2 + $0xc] sm:$0x1] %v3160
        %v3162 = vld [vmem:[#allocation2 + $0x18] sm:$0x1]
        %v3163 = vsel %vm2942, %v3107, %v3162
        %3164 = vst [vmem:[#allocation2 + $0x18] sm:$0x1] %v3163
        %v3165 = vld [vmem:[#allocation2 + $0x24] sm:$0x1]
        %v3166 = vsel %vm2942, %v3109, %v3165
        %3167 = vst [vmem:[#allocation2 + $0x24] sm:$0x1] %v3166
        %v3168 = vld [vmem:[#allocation2 + $0x30] sm:$0x1]
        %v3169 = vsel %vm2942, %v3111, %v3168
        %3170 = vst [vmem:[#allocation2 + $0x30] sm:$0x1] %v3169
        %v3171 = vld [vmem:[#allocation2 + $0x3c] sm:$0x1]
        %v3172 = vsel %vm2942, %v3113, %v3171
        %3173 = vst [vmem:[#allocation2 + $0x3c] sm:$0x1] %v3172
        %v3174 = vld [vmem:[#allocation2 + $0x48] sm:$0x1]
        %v3175 = vsel %vm2942, %v3115, %v3174
        %3176 = vst [vmem:[#allocation2 + $0x48] sm:$0x1] %v3175
        %v3177 = vld [vmem:[#allocation2 + $0x54] sm:$0x1]
        %v3178 = vsel %vm2942, %v3117, %v3177
        %3179 = vst [vmem:[#allocation2 + $0x54] sm:$0x1] %v3178
        %v3180 = vld [vmem:[#allocation2 + $0x60] sm:$0x1]
        %v3181 = vsel %vm2942, %v3119, %v3180
        %3182 = vst [vmem:[#allocation2 + $0x60] sm:$0x1] %v3181
        %v3183 = vld [vmem:[#allocation2 + $0x6c] sm:$0x1]
        %v3184 = vsel %vm2942, %v3121, %v3183
        %3185 = vst [vmem:[#allocation2 + $0x6c] sm:$0x1] %v3184
        %v3186 = vld [vmem:[#allocation2 + $0x78] sm:$0x1]
        %v3187 = vsel %vm2942, %v3123, %v3186
        %3188 = vst [vmem:[#allocation2 + $0x78] sm:$0x1] %v3187
        %v3189 = vld [vmem:[#allocation2 + $0x84] sm:$0x1]
        %v3190 = vsel %vm2942, %v3125, %v3189
        %3191 = vst [vmem:[#allocation2 + $0x84] sm:$0x1] %v3190
        %v3192 = vld [vmem:[#allocation2 + $0x90] sm:$0x1]
        %v3193 = vsel %vm2942, %v3127, %v3192
        %3194 = vst [vmem:[#allocation2 + $0x90] sm:$0x1] %v3193
        %v3195 = vld [vmem:[#allocation2 + $0x9c] sm:$0x1]
        %v3196 = vsel %vm2942, %v3129, %v3195
        %3197 = vst [vmem:[#allocation2 + $0x9c] sm:$0x1] %v3196
        %v3198 = vld [vmem:[#allocation2 + $0xa8] sm:$0x1]
        %v3199 = vsel %vm2942, %v3131, %v3198
        %3200 = vst [vmem:[#allocation2 + $0xa8] sm:$0x1] %v3199
        %v3201 = vld [vmem:[#allocation2 + $0xb4] sm:$0x1]
        %v3202 = vsel %vm2942, %v3133, %v3201
        %3203 = vst [vmem:[#allocation2 + $0xb4] sm:$0x1] %v3202
        %v3204 = vld [vmem:[#allocation2 + $0xc0] sm:$0x1]
        %v3205 = vsel %vm2942, %v3135, %v3204
        %3206 = vst [vmem:[#allocation2 + $0xc0] sm:$0x1] %v3205
        %v3207 = vld [vmem:[#allocation2 + $0xcc] sm:$0x1]
        %v3208 = vsel %vm2942, %v3137, %v3207
        %3209 = vst [vmem:[#allocation2 + $0xcc] sm:$0x1] %v3208
        %v3210 = vld [vmem:[#allocation2 + $0x4] sm:$0x8]
        %v3211 = vld [vmem:[#allocation2 + $0x10] sm:$0x8]
        %v3212 = vld [vmem:[#allocation2 + $0x1c] sm:$0x8]
        %v3213 = vld [vmem:[#allocation2 + $0x28] sm:$0x8]
        %v3214 = vld [vmem:[#allocation2 + $0x34] sm:$0x8]
        %v3215 = vld [vmem:[#allocation2 + $0x40] sm:$0x8]
        %v3216 = vld [vmem:[#allocation2 + $0x4c] sm:$0x8]
        %v3217 = vld [vmem:[#allocation2 + $0x58] sm:$0x8]
        %v3218 = vld [vmem:[#allocation2 + $0x64] sm:$0x8]
        %v3219 = vld [vmem:[#allocation2 + $0x70] sm:$0x8]
        %v3220 = vld [vmem:[#allocation2 + $0x7c] sm:$0x8]
        %v3221 = vld [vmem:[#allocation2 + $0x88] sm:$0x8]
        %v3222 = vld [vmem:[#allocation2 + $0x94] sm:$0x8]
        %v3223 = vld [vmem:[#allocation2 + $0xa0] sm:$0x8]
        %v3224 = vld [vmem:[#allocation2 + $0xac] sm:$0x8]
        %v3225 = vld [vmem:[#allocation2 + $0xb8] sm:$0x8]
        %v3226 = vld [vmem:[#allocation2 + $0xc4] sm:$0x8]
        %v3227 = vld [vmem:[#allocation2 + $0xd0] sm:$0x8]
        %v3246 = vrot.slane %v3210, 7
        %v3247 = vrot.slane %v3246, 4
        %v3248 = vrot.slane %v3211, 7
        %v3249 = vrot.slane %v3248, 4
        %v3250 = vrot.slane %v3212, 7
        %v3251 = vrot.slane %v3250, 4
        %v3252 = vrot.slane %v3213, 7
        %v3253 = vrot.slane %v3252, 4
        %v3254 = vrot.slane %v3214, 7
        %v3255 = vrot.slane %v3254, 4
        %v3256 = vrot.slane %v3215, 7
        %v3257 = vrot.slane %v3256, 4
        %v3258 = vrot.slane %v3216, 7
        %v3259 = vrot.slane %v3258, 4
        %v3260 = vrot.slane %v3217, 7
        %v3261 = vrot.slane %v3260, 4
        %v3262 = vrot.slane %v3218, 7
        %v3263 = vrot.slane %v3262, 4
        %v3264 = vrot.slane %v3219, 7
        %v3265 = vrot.slane %v3264, 4
        %v3266 = vrot.slane %v3220, 7
        %v3267 = vrot.slane %v3266, 4
        %v3268 = vrot.slane %v3221, 7
        %v3269 = vrot.slane %v3268, 4
        %v3270 = vrot.slane %v3222, 7
        %v3271 = vrot.slane %v3270, 4
        %v3272 = vrot.slane %v3223, 7
        %v3273 = vrot.slane %v3272, 4
        %v3274 = vrot.slane %v3224, 7
        %v3275 = vrot.slane %v3274, 4
        %v3276 = vrot.slane %v3225, 7
        %v3277 = vrot.slane %v3276, 4
        %v3278 = vrot.slane %v3226, 7
        %v3279 = vrot.slane %v3278, 4
        %v3280 = vrot.slane %v3227, 7
        %v3281 = vrot.slane %v3280, 4
        %vm3300 = vmand %vm2941, %vm2934
        %v3301 = vld [vmem:[#allocation2 + $0x8] sm:$0x1]
        %v3302 = vsel %vm3300, %v3247, %v3301
        %3303 = vst [vmem:[#allocation2 + $0x8] sm:$0x1] %v3302
        %v3304 = vld [vmem:[#allocation2 + $0x14] sm:$0x1]
        %v3305 = vsel %vm3300, %v3249, %v3304
        %3306 = vst [vmem:[#allocation2 + $0x14] sm:$0x1] %v3305
        %v3307 = vld [vmem:[#allocation2 + $0x20] sm:$0x1]
        %v3308 = vsel %vm3300, %v3251, %v3307
        %3309 = vst [vmem:[#allocation2 + $0x20] sm:$0x1] %v3308
        %v3310 = vld [vmem:[#allocation2 + $0x2c] sm:$0x1]
        %v3311 = vsel %vm3300, %v3253, %v3310
        %3312 = vst [vmem:[#allocation2 + $0x2c] sm:$0x1] %v3311
        %v3313 = vld [vmem:[#allocation2 + $0x38] sm:$0x1]
        %v3314 = vsel %vm3300, %v3255, %v3313
        %3315 = vst [vmem:[#allocation2 + $0x38] sm:$0x1] %v3314
        %v3316 = vld [vmem:[#allocation2 + $0x44] sm:$0x1]
        %v3317 = vsel %vm3300, %v3257, %v3316
        %3318 = vst [vmem:[#allocation2 + $0x44] sm:$0x1] %v3317
        %v3319 = vld [vmem:[#allocation2 + $0x50] sm:$0x1]
        %v3320 = vsel %vm3300, %v3259, %v3319
        %3321 = vst [vmem:[#allocation2 + $0x50] sm:$0x1] %v3320
        %v3322 = vld [vmem:[#allocation2 + $0x5c] sm:$0x1]
        %v3323 = vsel %vm3300, %v3261, %v3322
        %3324 = vst [vmem:[#allocation2 + $0x5c] sm:$0x1] %v3323
        %v3325 = vld [vmem:[#allocation2 + $0x68] sm:$0x1]
        %v3326 = vsel %vm3300, %v3263, %v3325
        %3327 = vst [vmem:[#allocation2 + $0x68] sm:$0x1] %v3326
        %v3328 = vld [vmem:[#allocation2 + $0x74] sm:$0x1]
        %v3329 = vsel %vm3300, %v3265, %v3328
        %3330 = vst [vmem:[#allocation2 + $0x74] sm:$0x1] %v3329
        %v3331 = vld [vmem:[#allocation2 + $0x80] sm:$0x1]
        %v3332 = vsel %vm3300, %v3267, %v3331
        %3333 = vst [vmem:[#allocation2 + $0x80] sm:$0x1] %v3332
        %v3334 = vld [vmem:[#allocation2 + $0x8c] sm:$0x1]
        %v3335 = vsel %vm3300, %v3269, %v3334
        %3336 = vst [vmem:[#allocation2 + $0x8c] sm:$0x1] %v3335
        %v3337 = vld [vmem:[#allocation2 + $0x98] sm:$0x1]
        %v3338 = vsel %vm3300, %v3271, %v3337
        %3339 = vst [vmem:[#allocation2 + $0x98] sm:$0x1] %v3338
        %v3340 = vld [vmem:[#allocation2 + $0xa4] sm:$0x1]
        %v3341 = vsel %vm3300, %v3273, %v3340
        %3342 = vst [vmem:[#allocation2 + $0xa4] sm:$0x1] %v3341
        %v3343 = vld [vmem:[#allocation2 + $0xb0] sm:$0x1]
        %v3344 = vsel %vm3300, %v3275, %v3343
        %3345 = vst [vmem:[#allocation2 + $0xb0] sm:$0x1] %v3344
        %v3346 = vld [vmem:[#allocation2 + $0xbc] sm:$0x1]
        %v3347 = vsel %vm3300, %v3277, %v3346
        %3348 = vst [vmem:[#allocation2 + $0xbc] sm:$0x1] %v3347
        %v3349 = vld [vmem:[#allocation2 + $0xc8] sm:$0x1]
        %v3350 = vsel %vm3300, %v3279, %v3349
        %3351 = vst [vmem:[#allocation2 + $0xc8] sm:$0x1] %v3350
        %v3352 = vld [vmem:[#allocation2 + $0xd4] sm:$0x1]
        %v3353 = vsel %vm3300, %v3281, %v3352
        %3354 = vst [vmem:[#allocation2 + $0xd4] sm:$0x1] %v3353
        %v3355 = vld [vmem:[#allocation2] sm:$0xf]
        %v3356 = vld [vmem:[#allocation2 + $0x4] sm:$0xf]
        %v3357 = vld [vmem:[#allocation2 + $0xc] sm:$0xf]
        %v3358 = vld [vmem:[#allocation2 + $0x10] sm:$0xf]
        %v3359 = vld [vmem:[#allocation2 + $0x18] sm:$0xf]
        %v3360 = vld [vmem:[#allocation2 + $0x1c] sm:$0xf]
        %v3361 = vld [vmem:[#allocation2 + $0x24] sm:$0xf]
        %v3362 = vld [vmem:[#allocation2 + $0x28] sm:$0xf]
        %v3363 = vld [vmem:[#allocation2 + $0x30] sm:$0xf]
        %v3364 = vld [vmem:[#allocation2 + $0x34] sm:$0xf]
        %v3365 = vld [vmem:[#allocation2 + $0x3c] sm:$0xf]
        %v3366 = vld [vmem:[#allocation2 + $0x40] sm:$0xf]
        %v3367 = vld [vmem:[#allocation2 + $0x48] sm:$0xf]
        %v3368 = vld [vmem:[#allocation2 + $0x4c] sm:$0xf]
        %v3369 = vld [vmem:[#allocation2 + $0x54] sm:$0xf]
        %v3370 = vld [vmem:[#allocation2 + $0x58] sm:$0xf]
        %v3371 = vld [vmem:[#allocation2 + $0x60] sm:$0xf]
        %v3372 = vld [vmem:[#allocation2 + $0x64] sm:$0xf]
        %v3373 = vld [vmem:[#allocation2 + $0x6c] sm:$0xf]
        %v3374 = vld [vmem:[#allocation2 + $0x70] sm:$0xf]
        %v3375 = vld [vmem:[#allocation2 + $0x78] sm:$0xf]
        %v3376 = vld [vmem:[#allocation2 + $0x7c] sm:$0xf]
        %v3377 = vld [vmem:[#allocation2 + $0x84] sm:$0xf]
        %v3378 = vld [vmem:[#allocation2 + $0x88] sm:$0xf]
        %v3379 = vld [vmem:[#allocation2 + $0x90] sm:$0xf]
        %v3380 = vld [vmem:[#allocation2 + $0x94] sm:$0xf]
        %v3381 = vld [vmem:[#allocation2 + $0x9c] sm:$0xf]
        %v3382 = vld [vmem:[#allocation2 + $0xa0] sm:$0xf]
        %v3383 = vld [vmem:[#allocation2 + $0xa8] sm:$0xf]
        %v3384 = vld [vmem:[#allocation2 + $0xac] sm:$0xf]
        %v3385 = vld [vmem:[#allocation2 + $0xb4] sm:$0xf]
        %v3386 = vld [vmem:[#allocation2 + $0xb8] sm:$0xf]
        %v3387 = vld [vmem:[#allocation2 + $0x8] sm:$0x1]
        %v3388 = vld [vmem:[#allocation2 + $0x14] sm:$0x1]
        %v3389 = vld [vmem:[#allocation2 + $0x20] sm:$0x1]
        %v3390 = vld [vmem:[#allocation2 + $0x2c] sm:$0x1]
        %v3391 = vld [vmem:[#allocation2 + $0x38] sm:$0x1]
        %v3392 = vld [vmem:[#allocation2 + $0x44] sm:$0x1]
        %v3393 = vld [vmem:[#allocation2 + $0x50] sm:$0x1]
        %v3394 = vld [vmem:[#allocation2 + $0x5c] sm:$0x1]
        %v3395 = vld [vmem:[#allocation2 + $0x68] sm:$0x1]
        %v3396 = vld [vmem:[#allocation2 + $0x74] sm:$0x1]
        %v3397 = vld [vmem:[#allocation2 + $0x80] sm:$0x1]
        %v3398 = vld [vmem:[#allocation2 + $0x8c] sm:$0x1]
        %v3399 = vld [vmem:[#allocation2 + $0x98] sm:$0x1]
        %v3400 = vld [vmem:[#allocation2 + $0xa4] sm:$0x1]
        %v3401 = vld [vmem:[#allocation2 + $0xb0] sm:$0x1]
        %v3402 = vld [vmem:[#allocation2 + $0xbc] sm:$0x1]
        %v3403 = vld [vmem:[#allocation2] sm:$0xe]
        %v3404 = vld [vmem:[#allocation2 + $0xc] sm:$0xe]
        %v3405 = vld [vmem:[#allocation2 + $0x18] sm:$0xe]
        %v3406 = vld [vmem:[#allocation2 + $0x24] sm:$0xe]
        %v3407 = vld [vmem:[#allocation2 + $0x30] sm:$0xe]
        %v3408 = vld [vmem:[#allocation2 + $0x3c] sm:$0xe]
        %v3409 = vld [vmem:[#allocation2 + $0x48] sm:$0xe]
        %v3410 = vld [vmem:[#allocation2 + $0x54] sm:$0xe]
        %v3411 = vld [vmem:[#allocation2 + $0x60] sm:$0xe]
        %v3412 = vld [vmem:[#allocation2 + $0x6c] sm:$0xe]
        %v3413 = vld [vmem:[#allocation2 + $0x78] sm:$0xe]
        %v3414 = vld [vmem:[#allocation2 + $0x84] sm:$0xe]
        %v3415 = vld [vmem:[#allocation2 + $0x90] sm:$0xe]
        %v3416 = vld [vmem:[#allocation2 + $0x9c] sm:$0xe]
        %v3417 = vld [vmem:[#allocation2 + $0xa8] sm:$0xe]
        %v3418 = vld [vmem:[#allocation2 + $0xb4] sm:$0xe]
        %v3419 = vld [vmem:[%s2932] sm:$0xf]
        %v3420 = vld [vmem:[%s2932 + $0x4] sm:$0xf]
        %v3421 = vld [vmem:[%s2932 + $0xc] sm:$0xf]
        %v3422 = vld [vmem:[%s2932 + $0x10] sm:$0xf]
        %v3423 = vld [vmem:[%s2932 + $0x18] sm:$0xf]
        %v3424 = vld [vmem:[%s2932 + $0x1c] sm:$0xf]
        %v3425 = vld [vmem:[%s2932 + $0x24] sm:$0xf]
        %v3426 = vld [vmem:[%s2932 + $0x28] sm:$0xf]
        %v3427 = vld [vmem:[%s2932 + $0x30] sm:$0xf]
        %v3428 = vld [vmem:[%s2932 + $0x34] sm:$0xf]
        %v3429 = vld [vmem:[%s2932 + $0x3c] sm:$0xf]
        %v3430 = vld [vmem:[%s2932 + $0x40] sm:$0xf]
        %v3431 = vld [vmem:[%s2932 + $0x48] sm:$0xf]
        %v3432 = vld [vmem:[%s2932 + $0x4c] sm:$0xf]
        %v3433 = vld [vmem:[%s2932 + $0x54] sm:$0xf]
        %v3434 = vld [vmem:[%s2932 + $0x58] sm:$0xf]
        %v3435 = vld [vmem:[%s2932 + $0x60] sm:$0xf]
        %v3436 = vld [vmem:[%s2932 + $0x64] sm:$0xf]
        %v3437 = vld [vmem:[%s2932 + $0x6c] sm:$0xf]
        %v3438 = vld [vmem:[%s2932 + $0x70] sm:$0xf]
        %v3439 = vld [vmem:[%s2932 + $0x78] sm:$0xf]
        %v3440 = vld [vmem:[%s2932 + $0x7c] sm:$0xf]
        %v3441 = vld [vmem:[%s2932 + $0x84] sm:$0xf]
        %v3442 = vld [vmem:[%s2932 + $0x88] sm:$0xf]
        %v3443 = vld [vmem:[%s2932 + $0x90] sm:$0xf]
        %v3444 = vld [vmem:[%s2932 + $0x94] sm:$0xf]
        %v3445 = vld [vmem:[%s2932 + $0x9c] sm:$0xf]
        %v3446 = vld [vmem:[%s2932 + $0xa0] sm:$0xf]
        %v3447 = vld [vmem:[%s2932 + $0xa8] sm:$0xf]
        %v3448 = vld [vmem:[%s2932 + $0xac] sm:$0xf]
        %v3449 = vld [vmem:[%s2932 + $0xb4] sm:$0xf]
        %v3450 = vld [vmem:[%s2932 + $0xb8] sm:$0xf]
        %v3451 = vld [vmem:[%s2932 + $0x8] sm:$0x1]
        %v3452 = vld [vmem:[%s2932 + $0x14] sm:$0x1]
        %v3453 = vld [vmem:[%s2932 + $0x20] sm:$0x1]
        %v3454 = vld [vmem:[%s2932 + $0x2c] sm:$0x1]
        %v3455 = vld [vmem:[%s2932 + $0x38] sm:$0x1]
        %v3456 = vld [vmem:[%s2932 + $0x44] sm:$0x1]
        %v3457 = vld [vmem:[%s2932 + $0x50] sm:$0x1]
        %v3458 = vld [vmem:[%s2932 + $0x5c] sm:$0x1]
        %v3459 = vld [vmem:[%s2932 + $0x68] sm:$0x1]
        %v3460 = vld [vmem:[%s2932 + $0x74] sm:$0x1]
        %v3461 = vld [vmem:[%s2932 + $0x80] sm:$0x1]
        %v3462 = vld [vmem:[%s2932 + $0x8c] sm:$0x1]
        %v3463 = vld [vmem:[%s2932 + $0x98] sm:$0x1]
        %v3464 = vld [vmem:[%s2932 + $0xa4] sm:$0x1]
        %v3465 = vld [vmem:[%s2932 + $0xb0] sm:$0x1]
        %v3466 = vld [vmem:[%s2932 + $0xbc] sm:$0x1]
        %v3467 = vld [vmem:[%s2932] sm:$0xe]
        %v3468 = vld [vmem:[%s2932 + $0xc] sm:$0xe]
        %v3469 = vld [vmem:[%s2932 + $0x18] sm:$0xe]
        %v3470 = vld [vmem:[%s2932 + $0x24] sm:$0xe]
        %v3471 = vld [vmem:[%s2932 + $0x30] sm:$0xe]
        %v3472 = vld [vmem:[%s2932 + $0x3c] sm:$0xe]
        %v3473 = vld [vmem:[%s2932 + $0x48] sm:$0xe]
        %v3474 = vld [vmem:[%s2932 + $0x54] sm:$0xe]
        %v3475 = vld [vmem:[%s2932 + $0x60] sm:$0xe]
        %v3476 = vld [vmem:[%s2932 + $0x6c] sm:$0xe]
        %v3477 = vld [vmem:[%s2932 + $0x78] sm:$0xe]
        %v3478 = vld [vmem:[%s2932 + $0x84] sm:$0xe]
        %v3479 = vld [vmem:[%s2932 + $0x90] sm:$0xe]
        %v3480 = vld [vmem:[%s2932 + $0x9c] sm:$0xe]
        %v3481 = vld [vmem:[%s2932 + $0xa8] sm:$0xe]
        %v3482 = vld [vmem:[%s2932 + $0xb4] sm:$0xe]
        %s3483 = scalar_lea.vmem [#allocation2], 24
        %v3484 = vld [vmem:[%s3483] sm:$0xf]
        %v3485 = vld [vmem:[%s3483 + $0x4] sm:$0xf]
        %v3486 = vld [vmem:[%s3483 + $0xc] sm:$0xf]
        %v3487 = vld [vmem:[%s3483 + $0x10] sm:$0xf]
        %v3488 = vld [vmem:[%s3483 + $0x18] sm:$0xf]
        %v3489 = vld [vmem:[%s3483 + $0x1c] sm:$0xf]
        %v3490 = vld [vmem:[%s3483 + $0x24] sm:$0xf]
        %v3491 = vld [vmem:[%s3483 + $0x28] sm:$0xf]
        %v3492 = vld [vmem:[%s3483 + $0x30] sm:$0xf]
        %v3493 = vld [vmem:[%s3483 + $0x34] sm:$0xf]
        %v3494 = vld [vmem:[%s3483 + $0x3c] sm:$0xf]
        %v3495 = vld [vmem:[%s3483 + $0x40] sm:$0xf]
        %v3496 = vld [vmem:[%s3483 + $0x48] sm:$0xf]
        %v3497 = vld [vmem:[%s3483 + $0x4c] sm:$0xf]
        %v3498 = vld [vmem:[%s3483 + $0x54] sm:$0xf]
        %v3499 = vld [vmem:[%s3483 + $0x58] sm:$0xf]
        %v3500 = vld [vmem:[%s3483 + $0x60] sm:$0xf]
        %v3501 = vld [vmem:[%s3483 + $0x64] sm:$0xf]
        %v3502 = vld [vmem:[%s3483 + $0x6c] sm:$0xf]
        %v3503 = vld [vmem:[%s3483 + $0x70] sm:$0xf]
        %v3504 = vld [vmem:[%s3483 + $0x78] sm:$0xf]
        %v3505 = vld [vmem:[%s3483 + $0x7c] sm:$0xf]
        %v3506 = vld [vmem:[%s3483 + $0x84] sm:$0xf]
        %v3507 = vld [vmem:[%s3483 + $0x88] sm:$0xf]
        %v3508 = vld [vmem:[%s3483 + $0x90] sm:$0xf]
        %v3509 = vld [vmem:[%s3483 + $0x94] sm:$0xf]
        %v3510 = vld [vmem:[%s3483 + $0x9c] sm:$0xf]
        %v3511 = vld [vmem:[%s3483 + $0xa0] sm:$0xf]
        %v3512 = vld [vmem:[%s3483 + $0xa8] sm:$0xf]
        %v3513 = vld [vmem:[%s3483 + $0xac] sm:$0xf]
        %v3514 = vld [vmem:[%s3483 + $0xb4] sm:$0xf]
        %v3515 = vld [vmem:[%s3483 + $0xb8] sm:$0xf]
        %v3516 = vld [vmem:[%s3483 + $0x8] sm:$0x1]
        %v3517 = vld [vmem:[%s3483 + $0x14] sm:$0x1]
        %v3518 = vld [vmem:[%s3483 + $0x20] sm:$0x1]
        %v3519 = vld [vmem:[%s3483 + $0x2c] sm:$0x1]
        %v3520 = vld [vmem:[%s3483 + $0x38] sm:$0x1]
        %v3521 = vld [vmem:[%s3483 + $0x44] sm:$0x1]
        %v3522 = vld [vmem:[%s3483 + $0x50] sm:$0x1]
        %v3523 = vld [vmem:[%s3483 + $0x5c] sm:$0x1]
        %v3524 = vld [vmem:[%s3483 + $0x68] sm:$0x1]
        %v3525 = vld [vmem:[%s3483 + $0x74] sm:$0x1]
        %v3526 = vld [vmem:[%s3483 + $0x80] sm:$0x1]
        %v3527 = vld [vmem:[%s3483 + $0x8c] sm:$0x1]
        %v3528 = vld [vmem:[%s3483 + $0x98] sm:$0x1]
        %v3529 = vld [vmem:[%s3483 + $0xa4] sm:$0x1]
        %v3530 = vld [vmem:[%s3483 + $0xb0] sm:$0x1]
        %v3531 = vld [vmem:[%s3483 + $0xbc] sm:$0x1]
        %v3532 = vld [vmem:[%s3483] sm:$0xe]
        %v3533 = vld [vmem:[%s3483 + $0xc] sm:$0xe]
        %v3534 = vld [vmem:[%s3483 + $0x18] sm:$0xe]
        %v3535 = vld [vmem:[%s3483 + $0x24] sm:$0xe]
        %v3536 = vld [vmem:[%s3483 + $0x30] sm:$0xe]
        %v3537 = vld [vmem:[%s3483 + $0x3c] sm:$0xe]
        %v3538 = vld [vmem:[%s3483 + $0x48] sm:$0xe]
        %v3539 = vld [vmem:[%s3483 + $0x54] sm:$0xe]
        %v3540 = vld [vmem:[%s3483 + $0x60] sm:$0xe]
        %v3541 = vld [vmem:[%s3483 + $0x6c] sm:$0xe]
        %v3542 = vld [vmem:[%s3483 + $0x78] sm:$0xe]
        %v3543 = vld [vmem:[%s3483 + $0x84] sm:$0xe]
        %v3544 = vld [vmem:[%s3483 + $0x90] sm:$0xe]
        %v3545 = vld [vmem:[%s3483 + $0x9c] sm:$0xe]
        %v3546 = vld [vmem:[%s3483 + $0xa8] sm:$0xe]
        %v3547 = vld [vmem:[%s3483 + $0xb4] sm:$0xe]
        %v3580 = vunpack.c.l.b16 %v3355
        %v3581 = vunpack.c.l.b16 %v3356
        %v3582 = vunpack.c.l.b16 %v3357
        %v3583 = vunpack.c.l.b16 %v3358
        %v3584 = vunpack.c.l.b16 %v3359
        %v3585 = vunpack.c.l.b16 %v3360
        %v3586 = vunpack.c.l.b16 %v3361
        %v3587 = vunpack.c.l.b16 %v3362
        %v3588 = vunpack.c.l.b16 %v3363
        %v3589 = vunpack.c.l.b16 %v3364
        %v3590 = vunpack.c.l.b16 %v3365
        %v3591 = vunpack.c.l.b16 %v3366
        %v3592 = vunpack.c.l.b16 %v3367
        %v3593 = vunpack.c.l.b16 %v3368
        %v3594 = vunpack.c.l.b16 %v3369
        %v3595 = vunpack.c.l.b16 %v3370
        %v3596 = vunpack.c.l.b16 %v3371
        %v3597 = vunpack.c.l.b16 %v3372
        %v3598 = vunpack.c.l.b16 %v3373
        %v3599 = vunpack.c.l.b16 %v3374
        %v3600 = vunpack.c.l.b16 %v3375
        %v3601 = vunpack.c.l.b16 %v3376
        %v3602 = vunpack.c.l.b16 %v3377
        %v3603 = vunpack.c.l.b16 %v3378
        %v3604 = vunpack.c.l.b16 %v3379
        %v3605 = vunpack.c.l.b16 %v3380
        %v3606 = vunpack.c.l.b16 %v3381
        %v3607 = vunpack.c.l.b16 %v3382
        %v3608 = vunpack.c.l.b16 %v3383
        %v3609 = vunpack.c.l.b16 %v3384
        %v3610 = vunpack.c.l.b16 %v3385
        %v3611 = vunpack.c.l.b16 %v3386
        %v3612 = vpack.c.b16 %v3581, %v3580
        %v3613 = vpack.c.b16 %v3583, %v3582
        %v3614 = vpack.c.b16 %v3585, %v3584
        %v3615 = vpack.c.b16 %v3587, %v3586
        %v3616 = vpack.c.b16 %v3589, %v3588
        %v3617 = vpack.c.b16 %v3591, %v3590
        %v3618 = vpack.c.b16 %v3593, %v3592
        %v3619 = vpack.c.b16 %v3595, %v3594
        %v3620 = vpack.c.b16 %v3597, %v3596
        %v3621 = vpack.c.b16 %v3599, %v3598
        %v3622 = vpack.c.b16 %v3601, %v3600
        %v3623 = vpack.c.b16 %v3603, %v3602
        %v3624 = vpack.c.b16 %v3605, %v3604
        %v3625 = vpack.c.b16 %v3607, %v3606
        %v3626 = vpack.c.b16 %v3609, %v3608
        %v3627 = vpack.c.b16 %v3611, %v3610
        %v3644 = vunpack.c.l.b16 %v3387
        %v3645 = vunpack.c.l.b16 %v3388
        %v3646 = vunpack.c.l.b16 %v3389
        %v3647 = vunpack.c.l.b16 %v3390
        %v3648 = vunpack.c.l.b16 %v3391
        %v3649 = vunpack.c.l.b16 %v3392
        %v3650 = vunpack.c.l.b16 %v3393
        %v3651 = vunpack.c.l.b16 %v3394
        %v3652 = vunpack.c.l.b16 %v3395
        %v3653 = vunpack.c.l.b16 %v3396
        %v3654 = vunpack.c.l.b16 %v3397
        %v3655 = vunpack.c.l.b16 %v3398
        %v3656 = vunpack.c.l.b16 %v3399
        %v3657 = vunpack.c.l.b16 %v3400
        %v3658 = vunpack.c.l.b16 %v3401
        %v3659 = vunpack.c.l.b16 %v3402
        %v3660 = vpack.c.b16 %v3644, %v3644
        %v3661 = vpack.c.b16 %v3645, %v3645
        %v3662 = vpack.c.b16 %v3646, %v3646
        %v3663 = vpack.c.b16 %v3647, %v3647
        %v3664 = vpack.c.b16 %v3648, %v3648
        %v3665 = vpack.c.b16 %v3649, %v3649
        %v3666 = vpack.c.b16 %v3650, %v3650
        %v3667 = vpack.c.b16 %v3651, %v3651
        %v3668 = vpack.c.b16 %v3652, %v3652
        %v3669 = vpack.c.b16 %v3653, %v3653
        %v3670 = vpack.c.b16 %v3654, %v3654
        %v3671 = vpack.c.b16 %v3655, %v3655
        %v3672 = vpack.c.b16 %v3656, %v3656
        %v3673 = vpack.c.b16 %v3657, %v3657
        %v3674 = vpack.c.b16 %v3658, %v3658
        %v3675 = vpack.c.b16 %v3659, %v3659
        %v3677 = vshrl.u32 %v3612, 16
        %v3679 = vshll.u32 %v3612, 16
        %v3681 = vrot.slane %v3679, 1
        %v3682 = vor.u32 %v3677, %v3681
        %v3684 = vshll.u32 %v3660, 16
        %v3686 = vrot.slane %v3684, 1
        %v3687 = vsel %vm600, %v3682, %v3686
        %v3689 = vshrl.u32 %v3613, 16
        %v3691 = vshll.u32 %v3613, 16
        %v3693 = vrot.slane %v3691, 1
        %v3694 = vor.u32 %v3689, %v3693
        %v3696 = vshll.u32 %v3661, 16
        %v3698 = vrot.slane %v3696, 1
        %v3699 = vsel %vm600, %v3694, %v3698
        %v3701 = vshrl.u32 %v3614, 16
        %v3703 = vshll.u32 %v3614, 16
        %v3705 = vrot.slane %v3703, 1
        %v3706 = vor.u32 %v3701, %v3705
        %v3708 = vshll.u32 %v3662, 16
        %v3710 = vrot.slane %v3708, 1
        %v3711 = vsel %vm600, %v3706, %v3710
        %v3713 = vshrl.u32 %v3615, 16
        %v3715 = vshll.u32 %v3615, 16
        %v3717 = vrot.slane %v3715, 1
        %v3718 = vor.u32 %v3713, %v3717
        %v3720 = vshll.u32 %v3663, 16
        %v3722 = vrot.slane %v3720, 1
        %v3723 = vsel %vm600, %v3718, %v3722
        %v3725 = vshrl.u32 %v3616, 16
        %v3727 = vshll.u32 %v3616, 16
        %v3729 = vrot.slane %v3727, 1
        %v3730 = vor.u32 %v3725, %v3729
        %v3732 = vshll.u32 %v3664, 16
        %v3734 = vrot.slane %v3732, 1
        %v3735 = vsel %vm600, %v3730, %v3734
        %v3737 = vshrl.u32 %v3617, 16
        %v3739 = vshll.u32 %v3617, 16
        %v3741 = vrot.slane %v3739, 1
        %v3742 = vor.u32 %v3737, %v3741
        %v3744 = vshll.u32 %v3665, 16
        %v3746 = vrot.slane %v3744, 1
        %v3747 = vsel %vm600, %v3742, %v3746
        %v3749 = vshrl.u32 %v3618, 16
        %v3751 = vshll.u32 %v3618, 16
        %v3753 = vrot.slane %v3751, 1
        %v3754 = vor.u32 %v3749, %v3753
        %v3756 = vshll.u32 %v3666, 16
        %v3758 = vrot.slane %v3756, 1
        %v3759 = vsel %vm600, %v3754, %v3758
        %v3761 = vshrl.u32 %v3619, 16
        %v3763 = vshll.u32 %v3619, 16
        %v3765 = vrot.slane %v3763, 1
        %v3766 = vor.u32 %v3761, %v3765
        %v3768 = vshll.u32 %v3667, 16
        %v3770 = vrot.slane %v3768, 1
        %v3771 = vsel %vm600, %v3766, %v3770
        %v3773 = vshrl.u32 %v3620, 16
        %v3775 = vshll.u32 %v3620, 16
        %v3777 = vrot.slane %v3775, 1
        %v3778 = vor.u32 %v3773, %v3777
        %v3780 = vshll.u32 %v3668, 16
        %v3782 = vrot.slane %v3780, 1
        %v3783 = vsel %vm600, %v3778, %v3782
        %v3785 = vshrl.u32 %v3621, 16
        %v3787 = vshll.u32 %v3621, 16
        %v3789 = vrot.slane %v3787, 1
        %v3790 = vor.u32 %v3785, %v3789
        %v3792 = vshll.u32 %v3669, 16
        %v3794 = vrot.slane %v3792, 1
        %v3795 = vsel %vm600, %v3790, %v3794
        %v3797 = vshrl.u32 %v3622, 16
        %v3799 = vshll.u32 %v3622, 16
        %v3801 = vrot.slane %v3799, 1
        %v3802 = vor.u32 %v3797, %v3801
        %v3804 = vshll.u32 %v3670, 16
        %v3806 = vrot.slane %v3804, 1
        %v3807 = vsel %vm600, %v3802, %v3806
        %v3809 = vshrl.u32 %v3623, 16
        %v3811 = vshll.u32 %v3623, 16
        %v3813 = vrot.slane %v3811, 1
        %v3814 = vor.u32 %v3809, %v3813
        %v3816 = vshll.u32 %v3671, 16
        %v3818 = vrot.slane %v3816, 1
        %v3819 = vsel %vm600, %v3814, %v3818
        %v3821 = vshrl.u32 %v3624, 16
        %v3823 = vshll.u32 %v3624, 16
        %v3825 = vrot.slane %v3823, 1
        %v3826 = vor.u32 %v3821, %v3825
        %v3828 = vshll.u32 %v3672, 16
        %v3830 = vrot.slane %v3828, 1
        %v3831 = vsel %vm600, %v3826, %v3830
        %v3833 = vshrl.u32 %v3625, 16
        %v3835 = vshll.u32 %v3625, 16
        %v3837 = vrot.slane %v3835, 1
        %v3838 = vor.u32 %v3833, %v3837
        %v3840 = vshll.u32 %v3673, 16
        %v3842 = vrot.slane %v3840, 1
        %v3843 = vsel %vm600, %v3838, %v3842
        %v3845 = vshrl.u32 %v3626, 16
        %v3847 = vshll.u32 %v3626, 16
        %v3849 = vrot.slane %v3847, 1
        %v3850 = vor.u32 %v3845, %v3849
        %v3852 = vshll.u32 %v3674, 16
        %v3854 = vrot.slane %v3852, 1
        %v3855 = vsel %vm600, %v3850, %v3854
        %v3857 = vshrl.u32 %v3627, 16
        %v3859 = vshll.u32 %v3627, 16
        %v3861 = vrot.slane %v3859, 1
        %v3862 = vor.u32 %v3857, %v3861
        %v3864 = vshll.u32 %v3675, 16
        %v3866 = vrot.slane %v3864, 1
        %v3867 = vsel %vm600, %v3862, %v3866
        %3868 = vrot.lane.b32.xlu0 %v3687, 32
        %v3869 = vpop.permute.xlu0 %3868
        %3870 = vrot.lane.b32.xlu0 %v3699, 32
        %v3871 = vpop.permute.xlu0 %3870
        %3872 = vrot.lane.b32.xlu0 %v3711, 32
        %v3873 = vpop.permute.xlu0 %3872
        %3874 = vrot.lane.b32.xlu0 %v3723, 32
        %v3875 = vpop.permute.xlu0 %3874
        %3876 = vrot.lane.b32.xlu0 %v3735, 32
        %v3877 = vpop.permute.xlu0 %3876
        %3878 = vrot.lane.b32.xlu0 %v3747, 32
        %v3879 = vpop.permute.xlu0 %3878
        %3880 = vrot.lane.b32.xlu0 %v3759, 32
        %v3881 = vpop.permute.xlu0 %3880
        %3882 = vrot.lane.b32.xlu0 %v3771, 32
        %v3883 = vpop.permute.xlu0 %3882
        %3884 = vrot.lane.b32.xlu0 %v3783, 32
        %v3885 = vpop.permute.xlu0 %3884
        %3886 = vrot.lane.b32.xlu0 %v3795, 32
        %v3887 = vpop.permute.xlu0 %3886
        %3888 = vrot.lane.b32.xlu0 %v3807, 32
        %v3889 = vpop.permute.xlu0 %3888
        %3890 = vrot.lane.b32.xlu0 %v3819, 32
        %v3891 = vpop.permute.xlu0 %3890
        %3892 = vrot.lane.b32.xlu0 %v3831, 32
        %v3893 = vpop.permute.xlu0 %3892
        %3894 = vrot.lane.b32.xlu0 %v3843, 32
        %v3895 = vpop.permute.xlu0 %3894
        %3896 = vrot.lane.b32.xlu0 %v3855, 32
        %v3897 = vpop.permute.xlu0 %3896
        %3898 = vrot.lane.b32.xlu0 %v3867, 32
        %v3899 = vpop.permute.xlu0 %3898
        %v3916 = vunpack.c.l.b16 %v3403
        %v3917 = vunpack.c.l.b16 %v3404
        %v3918 = vunpack.c.l.b16 %v3405
        %v3919 = vunpack.c.l.b16 %v3406
        %v3920 = vunpack.c.l.b16 %v3407
        %v3921 = vunpack.c.l.b16 %v3408
        %v3922 = vunpack.c.l.b16 %v3409
        %v3923 = vunpack.c.l.b16 %v3410
        %v3924 = vunpack.c.l.b16 %v3411
        %v3925 = vunpack.c.l.b16 %v3412
        %v3926 = vunpack.c.l.b16 %v3413
        %v3927 = vunpack.c.l.b16 %v3414
        %v3928 = vunpack.c.l.b16 %v3415
        %v3929 = vunpack.c.l.b16 %v3416
        %v3930 = vunpack.c.l.b16 %v3417
        %v3931 = vunpack.c.l.b16 %v3418
        %v3932 = vpack.c.b16 %v3581, %v3916
        %v3933 = vpack.c.b16 %v3583, %v3917
        %v3934 = vpack.c.b16 %v3585, %v3918
        %v3935 = vpack.c.b16 %v3587, %v3919
        %v3936 = vpack.c.b16 %v3589, %v3920
        %v3937 = vpack.c.b16 %v3591, %v3921
        %v3938 = vpack.c.b16 %v3593, %v3922
        %v3939 = vpack.c.b16 %v3595, %v3923
        %v3940 = vpack.c.b16 %v3597, %v3924
        %v3941 = vpack.c.b16 %v3599, %v3925
        %v3942 = vpack.c.b16 %v3601, %v3926
        %v3943 = vpack.c.b16 %v3603, %v3927
        %v3944 = vpack.c.b16 %v3605, %v3928
        %v3945 = vpack.c.b16 %v3607, %v3929
        %v3946 = vpack.c.b16 %v3609, %v3930
        %v3947 = vpack.c.b16 %v3611, %v3931
        %v3948 = vrot.slane %v3932, 1
        %v3949 = vrot.slane %v3660, 1
        %v3950 = vsel %vm873, %v3948, %v3949
        %v3951 = vrot.slane %v3933, 1
        %v3952 = vrot.slane %v3661, 1
        %v3953 = vsel %vm873, %v3951, %v3952
        %v3954 = vrot.slane %v3934, 1
        %v3955 = vrot.slane %v3662, 1
        %v3956 = vsel %vm873, %v3954, %v3955
        %v3957 = vrot.slane %v3935, 1
        %v3958 = vrot.slane %v3663, 1
        %v3959 = vsel %vm873, %v3957, %v3958
        %v3960 = vrot.slane %v3936, 1
        %v3961 = vrot.slane %v3664, 1
        %v3962 = vsel %vm873, %v3960, %v3961
        %v3963 = vrot.slane %v3937, 1
        %v3964 = vrot.slane %v3665, 1
        %v3965 = vsel %vm873, %v3963, %v3964
        %v3966 = vrot.slane %v3938, 1
        %v3967 = vrot.slane %v3666, 1
        %v3968 = vsel %vm873, %v3966, %v3967
        %v3969 = vrot.slane %v3939, 1
        %v3970 = vrot.slane %v3667, 1
        %v3971 = vsel %vm873, %v3969, %v3970
        %v3972 = vrot.slane %v3940, 1
        %v3973 = vrot.slane %v3668, 1
        %v3974 = vsel %vm873, %v3972, %v3973
        %v3975 = vrot.slane %v3941, 1
        %v3976 = vrot.slane %v3669, 1
        %v3977 = vsel %vm873, %v3975, %v3976
        %v3978 = vrot.slane %v3942, 1
        %v3979 = vrot.slane %v3670, 1
        %v3980 = vsel %vm873, %v3978, %v3979
        %v3981 = vrot.slane %v3943, 1
        %v3982 = vrot.slane %v3671, 1
        %v3983 = vsel %vm873, %v3981, %v3982
        %v3984 = vrot.slane %v3944, 1
        %v3985 = vrot.slane %v3672, 1
        %v3986 = vsel %vm873, %v3984, %v3985
        %v3987 = vrot.slane %v3945, 1
        %v3988 = vrot.slane %v3673, 1
        %v3989 = vsel %vm873, %v3987, %v3988
        %v3990 = vrot.slane %v3946, 1
        %v3991 = vrot.slane %v3674, 1
        %v3992 = vsel %vm873, %v3990, %v3991
        %v3993 = vrot.slane %v3947, 1
        %v3994 = vrot.slane %v3675, 1
        %v3995 = vsel %vm873, %v3993, %v3994
        %3996 = vrot.lane.b32.xlu0 %v3950, 64
        %v3997 = vpop.permute.xlu0 %3996
        %3998 = vrot.lane.b32.xlu0 %v3953, 64
        %v3999 = vpop.permute.xlu0 %3998
        %4000 = vrot.lane.b32.xlu0 %v3956, 64
        %v4001 = vpop.permute.xlu0 %4000
        %4002 = vrot.lane.b32.xlu0 %v3959, 64
        %v4003 = vpop.permute.xlu0 %4002
        %4004 = vrot.lane.b32.xlu0 %v3962, 64
        %v4005 = vpop.permute.xlu0 %4004
        %4006 = vrot.lane.b32.xlu0 %v3965, 64
        %v4007 = vpop.permute.xlu0 %4006
        %4008 = vrot.lane.b32.xlu0 %v3968, 64
        %v4009 = vpop.permute.xlu0 %4008
        %4010 = vrot.lane.b32.xlu0 %v3971, 64
        %v4011 = vpop.permute.xlu0 %4010
        %4012 = vrot.lane.b32.xlu0 %v3974, 64
        %v4013 = vpop.permute.xlu0 %4012
        %4014 = vrot.lane.b32.xlu0 %v3977, 64
        %v4015 = vpop.permute.xlu0 %4014
        %4016 = vrot.lane.b32.xlu0 %v3980, 64
        %v4017 = vpop.permute.xlu0 %4016
        %4018 = vrot.lane.b32.xlu0 %v3983, 64
        %v4019 = vpop.permute.xlu0 %4018
        %4020 = vrot.lane.b32.xlu0 %v3986, 64
        %v4021 = vpop.permute.xlu0 %4020
        %4022 = vrot.lane.b32.xlu0 %v3989, 64
        %v4023 = vpop.permute.xlu0 %4022
        %4024 = vrot.lane.b32.xlu0 %v3992, 64
        %v4025 = vpop.permute.xlu0 %4024
        %4026 = vrot.lane.b32.xlu0 %v3995, 64
        %v4027 = vpop.permute.xlu0 %4026
        %v4060 = vunpack.c.l.b16 %v3419
        %v4061 = vunpack.c.l.b16 %v3420
        %v4062 = vunpack.c.l.b16 %v3421
        %v4063 = vunpack.c.l.b16 %v3422
        %v4064 = vunpack.c.l.b16 %v3423
        %v4065 = vunpack.c.l.b16 %v3424
        %v4066 = vunpack.c.l.b16 %v3425
        %v4067 = vunpack.c.l.b16 %v3426
        %v4068 = vunpack.c.l.b16 %v3427
        %v4069 = vunpack.c.l.b16 %v3428
        %v4070 = vunpack.c.l.b16 %v3429
        %v4071 = vunpack.c.l.b16 %v3430
        %v4072 = vunpack.c.l.b16 %v3431
        %v4073 = vunpack.c.l.b16 %v3432
        %v4074 = vunpack.c.l.b16 %v3433
        %v4075 = vunpack.c.l.b16 %v3434
        %v4076 = vunpack.c.l.b16 %v3435
        %v4077 = vunpack.c.l.b16 %v3436
        %v4078 = vunpack.c.l.b16 %v3437
        %v4079 = vunpack.c.l.b16 %v3438
        %v4080 = vunpack.c.l.b16 %v3439
        %v4081 = vunpack.c.l.b16 %v3440
        %v4082 = vunpack.c.l.b16 %v3441
        %v4083 = vunpack.c.l.b16 %v3442
        %v4084 = vunpack.c.l.b16 %v3443
        %v4085 = vunpack.c.l.b16 %v3444
        %v4086 = vunpack.c.l.b16 %v3445
        %v4087 = vunpack.c.l.b16 %v3446
        %v4088 = vunpack.c.l.b16 %v3447
        %v4089 = vunpack.c.l.b16 %v3448
        %v4090 = vunpack.c.l.b16 %v3449
        %v4091 = vunpack.c.l.b16 %v3450
        %v4092 = vpack.c.b16 %v4061, %v4060
        %v4093 = vpack.c.b16 %v4063, %v4062
        %v4094 = vpack.c.b16 %v4065, %v4064
        %v4095 = vpack.c.b16 %v4067, %v4066
        %v4096 = vpack.c.b16 %v4069, %v4068
        %v4097 = vpack.c.b16 %v4071, %v4070
        %v4098 = vpack.c.b16 %v4073, %v4072
        %v4099 = vpack.c.b16 %v4075, %v4074
        %v4100 = vpack.c.b16 %v4077, %v4076
        %v4101 = vpack.c.b16 %v4079, %v4078
        %v4102 = vpack.c.b16 %v4081, %v4080
        %v4103 = vpack.c.b16 %v4083, %v4082
        %v4104 = vpack.c.b16 %v4085, %v4084
        %v4105 = vpack.c.b16 %v4087, %v4086
        %v4106 = vpack.c.b16 %v4089, %v4088
        %v4107 = vpack.c.b16 %v4091, %v4090
        %4108 = vrot.lane.b32.xlu0 %v4092, 96
        %v4109 = vpop.permute.xlu0 %4108
        %4110 = vrot.lane.b32.xlu0 %v4093, 96
        %v4111 = vpop.permute.xlu0 %4110
        %4112 = vrot.lane.b32.xlu0 %v4094, 96
        %v4113 = vpop.permute.xlu0 %4112
        %4114 = vrot.lane.b32.xlu0 %v4095, 96
        %v4115 = vpop.permute.xlu0 %4114
        %4116 = vrot.lane.b32.xlu0 %v4096, 96
        %v4117 = vpop.permute.xlu0 %4116
        %4118 = vrot.lane.b32.xlu0 %v4097, 96
        %v4119 = vpop.permute.xlu0 %4118
        %4120 = vrot.lane.b32.xlu0 %v4098, 96
        %v4121 = vpop.permute.xlu0 %4120
        %4122 = vrot.lane.b32.xlu0 %v4099, 96
        %v4123 = vpop.permute.xlu0 %4122
        %4124 = vrot.lane.b32.xlu0 %v4100, 96
        %v4125 = vpop.permute.xlu0 %4124
        %4126 = vrot.lane.b32.xlu0 %v4101, 96
        %v4127 = vpop.permute.xlu0 %4126
        %4128 = vrot.lane.b32.xlu0 %v4102, 96
        %v4129 = vpop.permute.xlu0 %4128
        %4130 = vrot.lane.b32.xlu0 %v4103, 96
        %v4131 = vpop.permute.xlu0 %4130
        %4132 = vrot.lane.b32.xlu0 %v4104, 96
        %v4133 = vpop.permute.xlu0 %4132
        %4134 = vrot.lane.b32.xlu0 %v4105, 96
        %v4135 = vpop.permute.xlu0 %4134
        %4136 = vrot.lane.b32.xlu0 %v4106, 96
        %v4137 = vpop.permute.xlu0 %4136
        %4138 = vrot.lane.b32.xlu0 %v4107, 96
        %v4139 = vpop.permute.xlu0 %4138
        %v4156 = vunpack.c.l.b16 %v3451
        %v4157 = vunpack.c.l.b16 %v3452
        %v4158 = vunpack.c.l.b16 %v3453
        %v4159 = vunpack.c.l.b16 %v3454
        %v4160 = vunpack.c.l.b16 %v3455
        %v4161 = vunpack.c.l.b16 %v3456
        %v4162 = vunpack.c.l.b16 %v3457
        %v4163 = vunpack.c.l.b16 %v3458
        %v4164 = vunpack.c.l.b16 %v3459
        %v4165 = vunpack.c.l.b16 %v3460
        %v4166 = vunpack.c.l.b16 %v3461
        %v4167 = vunpack.c.l.b16 %v3462
        %v4168 = vunpack.c.l.b16 %v3463
        %v4169 = vunpack.c.l.b16 %v3464
        %v4170 = vunpack.c.l.b16 %v3465
        %v4171 = vunpack.c.l.b16 %v3466
        %v4172 = vpack.c.b16 %v4156, %v4156
        %v4173 = vpack.c.b16 %v4157, %v4157
        %v4174 = vpack.c.b16 %v4158, %v4158
        %v4175 = vpack.c.b16 %v4159, %v4159
        %v4176 = vpack.c.b16 %v4160, %v4160
        %v4177 = vpack.c.b16 %v4161, %v4161
        %v4178 = vpack.c.b16 %v4162, %v4162
        %v4179 = vpack.c.b16 %v4163, %v4163
        %v4180 = vpack.c.b16 %v4164, %v4164
        %v4181 = vpack.c.b16 %v4165, %v4165
        %v4182 = vpack.c.b16 %v4166, %v4166
        %v4183 = vpack.c.b16 %v4167, %v4167
        %v4184 = vpack.c.b16 %v4168, %v4168
        %v4185 = vpack.c.b16 %v4169, %v4169
        %v4186 = vpack.c.b16 %v4170, %v4170
        %v4187 = vpack.c.b16 %v4171, %v4171
        %v4189 = vshrl.u32 %v4092, 16
        %v4191 = vshll.u32 %v4092, 16
        %v4193 = vrot.slane %v4191, 1
        %v4194 = vor.u32 %v4189, %v4193
        %v4196 = vshll.u32 %v4172, 16
        %v4198 = vrot.slane %v4196, 1
        %v4199 = vsel %vm600, %v4194, %v4198
        %v4201 = vshrl.u32 %v4093, 16
        %v4203 = vshll.u32 %v4093, 16
        %v4205 = vrot.slane %v4203, 1
        %v4206 = vor.u32 %v4201, %v4205
        %v4208 = vshll.u32 %v4173, 16
        %v4210 = vrot.slane %v4208, 1
        %v4211 = vsel %vm600, %v4206, %v4210
        %v4213 = vshrl.u32 %v4094, 16
        %v4215 = vshll.u32 %v4094, 16
        %v4217 = vrot.slane %v4215, 1
        %v4218 = vor.u32 %v4213, %v4217
        %v4220 = vshll.u32 %v4174, 16
        %v4222 = vrot.slane %v4220, 1
        %v4223 = vsel %vm600, %v4218, %v4222
        %v4225 = vshrl.u32 %v4095, 16
        %v4227 = vshll.u32 %v4095, 16
        %v4229 = vrot.slane %v4227, 1
        %v4230 = vor.u32 %v4225, %v4229
        %v4232 = vshll.u32 %v4175, 16
        %v4234 = vrot.slane %v4232, 1
        %v4235 = vsel %vm600, %v4230, %v4234
        %v4237 = vshrl.u32 %v4096, 16
        %v4239 = vshll.u32 %v4096, 16
        %v4241 = vrot.slane %v4239, 1
        %v4242 = vor.u32 %v4237, %v4241
        %v4244 = vshll.u32 %v4176, 16
        %v4246 = vrot.slane %v4244, 1
        %v4247 = vsel %vm600, %v4242, %v4246
        %v4249 = vshrl.u32 %v4097, 16
        %v4251 = vshll.u32 %v4097, 16
        %v4253 = vrot.slane %v4251, 1
        %v4254 = vor.u32 %v4249, %v4253
        %v4256 = vshll.u32 %v4177, 16
        %v4258 = vrot.slane %v4256, 1
        %v4259 = vsel %vm600, %v4254, %v4258
        %v4261 = vshrl.u32 %v4098, 16
        %v4263 = vshll.u32 %v4098, 16
        %v4265 = vrot.slane %v4263, 1
        %v4266 = vor.u32 %v4261, %v4265
        %v4268 = vshll.u32 %v4178, 16
        %v4270 = vrot.slane %v4268, 1
        %v4271 = vsel %vm600, %v4266, %v4270
        %v4273 = vshrl.u32 %v4099, 16
        %v4275 = vshll.u32 %v4099, 16
        %v4277 = vrot.slane %v4275, 1
        %v4278 = vor.u32 %v4273, %v4277
        %v4280 = vshll.u32 %v4179, 16
        %v4282 = vrot.slane %v4280, 1
        %v4283 = vsel %vm600, %v4278, %v4282
        %v4285 = vshrl.u32 %v4100, 16
        %v4287 = vshll.u32 %v4100, 16
        %v4289 = vrot.slane %v4287, 1
        %v4290 = vor.u32 %v4285, %v4289
        %v4292 = vshll.u32 %v4180, 16
        %v4294 = vrot.slane %v4292, 1
        %v4295 = vsel %vm600, %v4290, %v4294
        %v4297 = vshrl.u32 %v4101, 16
        %v4299 = vshll.u32 %v4101, 16
        %v4301 = vrot.slane %v4299, 1
        %v4302 = vor.u32 %v4297, %v4301
        %v4304 = vshll.u32 %v4181, 16
        %v4306 = vrot.slane %v4304, 1
        %v4307 = vsel %vm600, %v4302, %v4306
        %v4309 = vshrl.u32 %v4102, 16
        %v4311 = vshll.u32 %v4102, 16
        %v4313 = vrot.slane %v4311, 1
        %v4314 = vor.u32 %v4309, %v4313
        %v4316 = vshll.u32 %v4182, 16
        %v4318 = vrot.slane %v4316, 1
        %v4319 = vsel %vm600, %v4314, %v4318
        %v4321 = vshrl.u32 %v4103, 16
        %v4323 = vshll.u32 %v4103, 16
        %v4325 = vrot.slane %v4323, 1
        %v4326 = vor.u32 %v4321, %v4325
        %v4328 = vshll.u32 %v4183, 16
        %v4330 = vrot.slane %v4328, 1
        %v4331 = vsel %vm600, %v4326, %v4330
        %v4333 = vshrl.u32 %v4104, 16
        %v4335 = vshll.u32 %v4104, 16
        %v4337 = vrot.slane %v4335, 1
        %v4338 = vor.u32 %v4333, %v4337
        %v4340 = vshll.u32 %v4184, 16
        %v4342 = vrot.slane %v4340, 1
        %v4343 = vsel %vm600, %v4338, %v4342
        %v4345 = vshrl.u32 %v4105, 16
        %v4347 = vshll.u32 %v4105, 16
        %v4349 = vrot.slane %v4347, 1
        %v4350 = vor.u32 %v4345, %v4349
        %v4352 = vshll.u32 %v4185, 16
        %v4354 = vrot.slane %v4352, 1
        %v4355 = vsel %vm600, %v4350, %v4354
        %v4357 = vshrl.u32 %v4106, 16
        %v4359 = vshll.u32 %v4106, 16
        %v4361 = vrot.slane %v4359, 1
        %v4362 = vor.u32 %v4357, %v4361
        %v4364 = vshll.u32 %v4186, 16
        %v4366 = vrot.slane %v4364, 1
        %v4367 = vsel %vm600, %v4362, %v4366
        %v4369 = vshrl.u32 %v4107, 16
        %v4371 = vshll.u32 %v4107, 16
        %v4373 = vrot.slane %v4371, 1
        %v4374 = vor.u32 %v4369, %v4373
        %v4376 = vshll.u32 %v4187, 16
        %v4378 = vrot.slane %v4376, 1
        %v4379 = vsel %vm600, %v4374, %v4378
        %v4396 = vunpack.c.l.b16 %v3467
        %v4397 = vunpack.c.l.b16 %v3468
        %v4398 = vunpack.c.l.b16 %v3469
        %v4399 = vunpack.c.l.b16 %v3470
        %v4400 = vunpack.c.l.b16 %v3471
        %v4401 = vunpack.c.l.b16 %v3472
        %v4402 = vunpack.c.l.b16 %v3473
        %v4403 = vunpack.c.l.b16 %v3474
        %v4404 = vunpack.c.l.b16 %v3475
        %v4405 = vunpack.c.l.b16 %v3476
        %v4406 = vunpack.c.l.b16 %v3477
        %v4407 = vunpack.c.l.b16 %v3478
        %v4408 = vunpack.c.l.b16 %v3479
        %v4409 = vunpack.c.l.b16 %v3480
        %v4410 = vunpack.c.l.b16 %v3481
        %v4411 = vunpack.c.l.b16 %v3482
        %v4412 = vpack.c.b16 %v4061, %v4396
        %v4413 = vpack.c.b16 %v4063, %v4397
        %v4414 = vpack.c.b16 %v4065, %v4398
        %v4415 = vpack.c.b16 %v4067, %v4399
        %v4416 = vpack.c.b16 %v4069, %v4400
        %v4417 = vpack.c.b16 %v4071, %v4401
        %v4418 = vpack.c.b16 %v4073, %v4402
        %v4419 = vpack.c.b16 %v4075, %v4403
        %v4420 = vpack.c.b16 %v4077, %v4404
        %v4421 = vpack.c.b16 %v4079, %v4405
        %v4422 = vpack.c.b16 %v4081, %v4406
        %v4423 = vpack.c.b16 %v4083, %v4407
        %v4424 = vpack.c.b16 %v4085, %v4408
        %v4425 = vpack.c.b16 %v4087, %v4409
        %v4426 = vpack.c.b16 %v4089, %v4410
        %v4427 = vpack.c.b16 %v4091, %v4411
        %v4428 = vrot.slane %v4412, 1
        %v4429 = vrot.slane %v4172, 1
        %v4430 = vsel %vm873, %v4428, %v4429
        %v4431 = vrot.slane %v4413, 1
        %v4432 = vrot.slane %v4173, 1
        %v4433 = vsel %vm873, %v4431, %v4432
        %v4434 = vrot.slane %v4414, 1
        %v4435 = vrot.slane %v4174, 1
        %v4436 = vsel %vm873, %v4434, %v4435
        %v4437 = vrot.slane %v4415, 1
        %v4438 = vrot.slane %v4175, 1
        %v4439 = vsel %vm873, %v4437, %v4438
        %v4440 = vrot.slane %v4416, 1
        %v4441 = vrot.slane %v4176, 1
        %v4442 = vsel %vm873, %v4440, %v4441
        %v4443 = vrot.slane %v4417, 1
        %v4444 = vrot.slane %v4177, 1
        %v4445 = vsel %vm873, %v4443, %v4444
        %v4446 = vrot.slane %v4418, 1
        %v4447 = vrot.slane %v4178, 1
        %v4448 = vsel %vm873, %v4446, %v4447
        %v4449 = vrot.slane %v4419, 1
        %v4450 = vrot.slane %v4179, 1
        %v4451 = vsel %vm873, %v4449, %v4450
        %v4452 = vrot.slane %v4420, 1
        %v4453 = vrot.slane %v4180, 1
        %v4454 = vsel %vm873, %v4452, %v4453
        %v4455 = vrot.slane %v4421, 1
        %v4456 = vrot.slane %v4181, 1
        %v4457 = vsel %vm873, %v4455, %v4456
        %v4458 = vrot.slane %v4422, 1
        %v4459 = vrot.slane %v4182, 1
        %v4460 = vsel %vm873, %v4458, %v4459
        %v4461 = vrot.slane %v4423, 1
        %v4462 = vrot.slane %v4183, 1
        %v4463 = vsel %vm873, %v4461, %v4462
        %v4464 = vrot.slane %v4424, 1
        %v4465 = vrot.slane %v4184, 1
        %v4466 = vsel %vm873, %v4464, %v4465
        %v4467 = vrot.slane %v4425, 1
        %v4468 = vrot.slane %v4185, 1
        %v4469 = vsel %vm873, %v4467, %v4468
        %v4470 = vrot.slane %v4426, 1
        %v4471 = vrot.slane %v4186, 1
        %v4472 = vsel %vm873, %v4470, %v4471
        %v4473 = vrot.slane %v4427, 1
        %v4474 = vrot.slane %v4187, 1
        %v4475 = vsel %vm873, %v4473, %v4474
        %4476 = vrot.lane.b32.xlu0 %v4430, 32
        %v4477 = vpop.permute.xlu0 %4476
        %4478 = vrot.lane.b32.xlu0 %v4433, 32
        %v4479 = vpop.permute.xlu0 %4478
        %4480 = vrot.lane.b32.xlu0 %v4436, 32
        %v4481 = vpop.permute.xlu0 %4480
        %4482 = vrot.lane.b32.xlu0 %v4439, 32
        %v4483 = vpop.permute.xlu0 %4482
        %4484 = vrot.lane.b32.xlu0 %v4442, 32
        %v4485 = vpop.permute.xlu0 %4484
        %4486 = vrot.lane.b32.xlu0 %v4445, 32
        %v4487 = vpop.permute.xlu0 %4486
        %4488 = vrot.lane.b32.xlu0 %v4448, 32
        %v4489 = vpop.permute.xlu0 %4488
        %4490 = vrot.lane.b32.xlu0 %v4451, 32
        %v4491 = vpop.permute.xlu0 %4490
        %4492 = vrot.lane.b32.xlu0 %v4454, 32
        %v4493 = vpop.permute.xlu0 %4492
        %4494 = vrot.lane.b32.xlu0 %v4457, 32
        %v4495 = vpop.permute.xlu0 %4494
        %4496 = vrot.lane.b32.xlu0 %v4460, 32
        %v4497 = vpop.permute.xlu0 %4496
        %4498 = vrot.lane.b32.xlu0 %v4463, 32
        %v4499 = vpop.permute.xlu0 %4498
        %4500 = vrot.lane.b32.xlu0 %v4466, 32
        %v4501 = vpop.permute.xlu0 %4500
        %4502 = vrot.lane.b32.xlu0 %v4469, 32
        %v4503 = vpop.permute.xlu0 %4502
        %4504 = vrot.lane.b32.xlu0 %v4472, 32
        %v4505 = vpop.permute.xlu0 %4504
        %4506 = vrot.lane.b32.xlu0 %v4475, 32
        %v4507 = vpop.permute.xlu0 %4506
        %v4540 = vunpack.c.l.b16 %v3484
        %v4541 = vunpack.c.l.b16 %v3485
        %v4542 = vunpack.c.l.b16 %v3486
        %v4543 = vunpack.c.l.b16 %v3487
        %v4544 = vunpack.c.l.b16 %v3488
        %v4545 = vunpack.c.l.b16 %v3489
        %v4546 = vunpack.c.l.b16 %v3490
        %v4547 = vunpack.c.l.b16 %v3491
        %v4548 = vunpack.c.l.b16 %v3492
        %v4549 = vunpack.c.l.b16 %v3493
        %v4550 = vunpack.c.l.b16 %v3494
        %v4551 = vunpack.c.l.b16 %v3495
        %v4552 = vunpack.c.l.b16 %v3496
        %v4553 = vunpack.c.l.b16 %v3497
        %v4554 = vunpack.c.l.b16 %v3498
        %v4555 = vunpack.c.l.b16 %v3499
        %v4556 = vunpack.c.l.b16 %v3500
        %v4557 = vunpack.c.l.b16 %v3501
        %v4558 = vunpack.c.l.b16 %v3502
        %v4559 = vunpack.c.l.b16 %v3503
        %v4560 = vunpack.c.l.b16 %v3504
        %v4561 = vunpack.c.l.b16 %v3505
        %v4562 = vunpack.c.l.b16 %v3506
        %v4563 = vunpack.c.l.b16 %v3507
        %v4564 = vunpack.c.l.b16 %v3508
        %v4565 = vunpack.c.l.b16 %v3509
        %v4566 = vunpack.c.l.b16 %v3510
        %v4567 = vunpack.c.l.b16 %v3511
        %v4568 = vunpack.c.l.b16 %v3512
        %v4569 = vunpack.c.l.b16 %v3513
        %v4570 = vunpack.c.l.b16 %v3514
        %v4571 = vunpack.c.l.b16 %v3515
        %v4572 = vpack.c.b16 %v4541, %v4540
        %v4573 = vpack.c.b16 %v4543, %v4542
        %v4574 = vpack.c.b16 %v4545, %v4544
        %v4575 = vpack.c.b16 %v4547, %v4546
        %v4576 = vpack.c.b16 %v4549, %v4548
        %v4577 = vpack.c.b16 %v4551, %v4550
        %v4578 = vpack.c.b16 %v4553, %v4552
        %v4579 = vpack.c.b16 %v4555, %v4554
        %v4580 = vpack.c.b16 %v4557, %v4556
        %v4581 = vpack.c.b16 %v4559, %v4558
        %v4582 = vpack.c.b16 %v4561, %v4560
        %v4583 = vpack.c.b16 %v4563, %v4562
        %v4584 = vpack.c.b16 %v4565, %v4564
        %v4585 = vpack.c.b16 %v4567, %v4566
        %v4586 = vpack.c.b16 %v4569, %v4568
        %v4587 = vpack.c.b16 %v4571, %v4570
        %4588 = vrot.lane.b32.xlu0 %v4572, 64
        %v4589 = vpop.permute.xlu0 %4588
        %4590 = vrot.lane.b32.xlu0 %v4573, 64
        %v4591 = vpop.permute.xlu0 %4590
        %4592 = vrot.lane.b32.xlu0 %v4574, 64
        %v4593 = vpop.permute.xlu0 %4592
        %4594 = vrot.lane.b32.xlu0 %v4575, 64
        %v4595 = vpop.permute.xlu0 %4594
        %4596 = vrot.lane.b32.xlu0 %v4576, 64
        %v4597 = vpop.permute.xlu0 %4596
        %4598 = vrot.lane.b32.xlu0 %v4577, 64
        %v4599 = vpop.permute.xlu0 %4598
        %4600 = vrot.lane.b32.xlu0 %v4578, 64
        %v4601 = vpop.permute.xlu0 %4600
        %4602 = vrot.lane.b32.xlu0 %v4579, 64
        %v4603 = vpop.permute.xlu0 %4602
        %4604 = vrot.lane.b32.xlu0 %v4580, 64
        %v4605 = vpop.permute.xlu0 %4604
        %4606 = vrot.lane.b32.xlu0 %v4581, 64
        %v4607 = vpop.permute.xlu0 %4606
        %4608 = vrot.lane.b32.xlu0 %v4582, 64
        %v4609 = vpop.permute.xlu0 %4608
        %4610 = vrot.lane.b32.xlu0 %v4583, 64
        %v4611 = vpop.permute.xlu0 %4610
        %4612 = vrot.lane.b32.xlu0 %v4584, 64
        %v4613 = vpop.permute.xlu0 %4612
        %4614 = vrot.lane.b32.xlu0 %v4585, 64
        %v4615 = vpop.permute.xlu0 %4614
        %4616 = vrot.lane.b32.xlu0 %v4586, 64
        %v4617 = vpop.permute.xlu0 %4616
        %4618 = vrot.lane.b32.xlu0 %v4587, 64
        %v4619 = vpop.permute.xlu0 %4618
        %v4636 = vunpack.c.l.b16 %v3516
        %v4637 = vunpack.c.l.b16 %v3517
        %v4638 = vunpack.c.l.b16 %v3518
        %v4639 = vunpack.c.l.b16 %v3519
        %v4640 = vunpack.c.l.b16 %v3520
        %v4641 = vunpack.c.l.b16 %v3521
        %v4642 = vunpack.c.l.b16 %v3522
        %v4643 = vunpack.c.l.b16 %v3523
        %v4644 = vunpack.c.l.b16 %v3524
        %v4645 = vunpack.c.l.b16 %v3525
        %v4646 = vunpack.c.l.b16 %v3526
        %v4647 = vunpack.c.l.b16 %v3527
        %v4648 = vunpack.c.l.b16 %v3528
        %v4649 = vunpack.c.l.b16 %v3529
        %v4650 = vunpack.c.l.b16 %v3530
        %v4651 = vunpack.c.l.b16 %v3531
        %v4652 = vpack.c.b16 %v4636, %v4636
        %v4653 = vpack.c.b16 %v4637, %v4637
        %v4654 = vpack.c.b16 %v4638, %v4638
        %v4655 = vpack.c.b16 %v4639, %v4639
        %v4656 = vpack.c.b16 %v4640, %v4640
        %v4657 = vpack.c.b16 %v4641, %v4641
        %v4658 = vpack.c.b16 %v4642, %v4642
        %v4659 = vpack.c.b16 %v4643, %v4643
        %v4660 = vpack.c.b16 %v4644, %v4644
        %v4661 = vpack.c.b16 %v4645, %v4645
        %v4662 = vpack.c.b16 %v4646, %v4646
        %v4663 = vpack.c.b16 %v4647, %v4647
        %v4664 = vpack.c.b16 %v4648, %v4648
        %v4665 = vpack.c.b16 %v4649, %v4649
        %v4666 = vpack.c.b16 %v4650, %v4650
        %v4667 = vpack.c.b16 %v4651, %v4651
        %v4669 = vshrl.u32 %v4572, 16
        %v4671 = vshll.u32 %v4572, 16
        %v4673 = vrot.slane %v4671, 1
        %v4674 = vor.u32 %v4669, %v4673
        %v4676 = vshll.u32 %v4652, 16
        %v4678 = vrot.slane %v4676, 1
        %v4679 = vsel %vm600, %v4674, %v4678
        %v4681 = vshrl.u32 %v4573, 16
        %v4683 = vshll.u32 %v4573, 16
        %v4685 = vrot.slane %v4683, 1
        %v4686 = vor.u32 %v4681, %v4685
        %v4688 = vshll.u32 %v4653, 16
        %v4690 = vrot.slane %v4688, 1
        %v4691 = vsel %vm600, %v4686, %v4690
        %v4693 = vshrl.u32 %v4574, 16
        %v4695 = vshll.u32 %v4574, 16
        %v4697 = vrot.slane %v4695, 1
        %v4698 = vor.u32 %v4693, %v4697
        %v4700 = vshll.u32 %v4654, 16
        %v4702 = vrot.slane %v4700, 1
        %v4703 = vsel %vm600, %v4698, %v4702
        %v4705 = vshrl.u32 %v4575, 16
        %v4707 = vshll.u32 %v4575, 16
        %v4709 = vrot.slane %v4707, 1
        %v4710 = vor.u32 %v4705, %v4709
        %v4712 = vshll.u32 %v4655, 16
        %v4714 = vrot.slane %v4712, 1
        %v4715 = vsel %vm600, %v4710, %v4714
        %v4717 = vshrl.u32 %v4576, 16
        %v4719 = vshll.u32 %v4576, 16
        %v4721 = vrot.slane %v4719, 1
        %v4722 = vor.u32 %v4717, %v4721
        %v4724 = vshll.u32 %v4656, 16
        %v4726 = vrot.slane %v4724, 1
        %v4727 = vsel %vm600, %v4722, %v4726
        %v4729 = vshrl.u32 %v4577, 16
        %v4731 = vshll.u32 %v4577, 16
        %v4733 = vrot.slane %v4731, 1
        %v4734 = vor.u32 %v4729, %v4733
        %v4736 = vshll.u32 %v4657, 16
        %v4738 = vrot.slane %v4736, 1
        %v4739 = vsel %vm600, %v4734, %v4738
        %v4741 = vshrl.u32 %v4578, 16
        %v4743 = vshll.u32 %v4578, 16
        %v4745 = vrot.slane %v4743, 1
        %v4746 = vor.u32 %v4741, %v4745
        %v4748 = vshll.u32 %v4658, 16
        %v4750 = vrot.slane %v4748, 1
        %v4751 = vsel %vm600, %v4746, %v4750
        %v4753 = vshrl.u32 %v4579, 16
        %v4755 = vshll.u32 %v4579, 16
        %v4757 = vrot.slane %v4755, 1
        %v4758 = vor.u32 %v4753, %v4757
        %v4760 = vshll.u32 %v4659, 16
        %v4762 = vrot.slane %v4760, 1
        %v4763 = vsel %vm600, %v4758, %v4762
        %v4765 = vshrl.u32 %v4580, 16
        %v4767 = vshll.u32 %v4580, 16
        %v4769 = vrot.slane %v4767, 1
        %v4770 = vor.u32 %v4765, %v4769
        %v4772 = vshll.u32 %v4660, 16
        %v4774 = vrot.slane %v4772, 1
        %v4775 = vsel %vm600, %v4770, %v4774
        %v4777 = vshrl.u32 %v4581, 16
        %v4779 = vshll.u32 %v4581, 16
        %v4781 = vrot.slane %v4779, 1
        %v4782 = vor.u32 %v4777, %v4781
        %v4784 = vshll.u32 %v4661, 16
        %v4786 = vrot.slane %v4784, 1
        %v4787 = vsel %vm600, %v4782, %v4786
        %v4789 = vshrl.u32 %v4582, 16
        %v4791 = vshll.u32 %v4582, 16
        %v4793 = vrot.slane %v4791, 1
        %v4794 = vor.u32 %v4789, %v4793
        %v4796 = vshll.u32 %v4662, 16
        %v4798 = vrot.slane %v4796, 1
        %v4799 = vsel %vm600, %v4794, %v4798
        %v4801 = vshrl.u32 %v4583, 16
        %v4803 = vshll.u32 %v4583, 16
        %v4805 = vrot.slane %v4803, 1
        %v4806 = vor.u32 %v4801, %v4805
        %v4808 = vshll.u32 %v4663, 16
        %v4810 = vrot.slane %v4808, 1
        %v4811 = vsel %vm600, %v4806, %v4810
        %v4813 = vshrl.u32 %v4584, 16
        %v4815 = vshll.u32 %v4584, 16
        %v4817 = vrot.slane %v4815, 1
        %v4818 = vor.u32 %v4813, %v4817
        %v4820 = vshll.u32 %v4664, 16
        %v4822 = vrot.slane %v4820, 1
        %v4823 = vsel %vm600, %v4818, %v4822
        %v4825 = vshrl.u32 %v4585, 16
        %v4827 = vshll.u32 %v4585, 16
        %v4829 = vrot.slane %v4827, 1
        %v4830 = vor.u32 %v4825, %v4829
        %v4832 = vshll.u32 %v4665, 16
        %v4834 = vrot.slane %v4832, 1
        %v4835 = vsel %vm600, %v4830, %v4834
        %v4837 = vshrl.u32 %v4586, 16
        %v4839 = vshll.u32 %v4586, 16
        %v4841 = vrot.slane %v4839, 1
        %v4842 = vor.u32 %v4837, %v4841
        %v4844 = vshll.u32 %v4666, 16
        %v4846 = vrot.slane %v4844, 1
        %v4847 = vsel %vm600, %v4842, %v4846
        %v4849 = vshrl.u32 %v4587, 16
        %v4851 = vshll.u32 %v4587, 16
        %v4853 = vrot.slane %v4851, 1
        %v4854 = vor.u32 %v4849, %v4853
        %v4856 = vshll.u32 %v4667, 16
        %v4858 = vrot.slane %v4856, 1
        %v4859 = vsel %vm600, %v4854, %v4858
        %4860 = vrot.lane.b32.xlu0 %v4679, 96
        %v4861 = vpop.permute.xlu0 %4860
        %4862 = vrot.lane.b32.xlu0 %v4691, 96
        %v4863 = vpop.permute.xlu0 %4862
        %4864 = vrot.lane.b32.xlu0 %v4703, 96
        %v4865 = vpop.permute.xlu0 %4864
        %4866 = vrot.lane.b32.xlu0 %v4715, 96
        %v4867 = vpop.permute.xlu0 %4866
        %4868 = vrot.lane.b32.xlu0 %v4727, 96
        %v4869 = vpop.permute.xlu0 %4868
        %4870 = vrot.lane.b32.xlu0 %v4739, 96
        %v4871 = vpop.permute.xlu0 %4870
        %4872 = vrot.lane.b32.xlu0 %v4751, 96
        %v4873 = vpop.permute.xlu0 %4872
        %4874 = vrot.lane.b32.xlu0 %v4763, 96
        %v4875 = vpop.permute.xlu0 %4874
        %4876 = vrot.lane.b32.xlu0 %v4775, 96
        %v4877 = vpop.permute.xlu0 %4876
        %4878 = vrot.lane.b32.xlu0 %v4787, 96
        %v4879 = vpop.permute.xlu0 %4878
        %4880 = vrot.lane.b32.xlu0 %v4799, 96
        %v4881 = vpop.permute.xlu0 %4880
        %4882 = vrot.lane.b32.xlu0 %v4811, 96
        %v4883 = vpop.permute.xlu0 %4882
        %4884 = vrot.lane.b32.xlu0 %v4823, 96
        %v4885 = vpop.permute.xlu0 %4884
        %4886 = vrot.lane.b32.xlu0 %v4835, 96
        %v4887 = vpop.permute.xlu0 %4886
        %4888 = vrot.lane.b32.xlu0 %v4847, 96
        %v4889 = vpop.permute.xlu0 %4888
        %4890 = vrot.lane.b32.xlu0 %v4859, 96
        %v4891 = vpop.permute.xlu0 %4890
        %v4908 = vunpack.c.l.b16 %v3532
        %v4909 = vunpack.c.l.b16 %v3533
        %v4910 = vunpack.c.l.b16 %v3534
        %v4911 = vunpack.c.l.b16 %v3535
        %v4912 = vunpack.c.l.b16 %v3536
        %v4913 = vunpack.c.l.b16 %v3537
        %v4914 = vunpack.c.l.b16 %v3538
        %v4915 = vunpack.c.l.b16 %v3539
        %v4916 = vunpack.c.l.b16 %v3540
        %v4917 = vunpack.c.l.b16 %v3541
        %v4918 = vunpack.c.l.b16 %v3542
        %v4919 = vunpack.c.l.b16 %v3543
        %v4920 = vunpack.c.l.b16 %v3544
        %v4921 = vunpack.c.l.b16 %v3545
        %v4922 = vunpack.c.l.b16 %v3546
        %v4923 = vunpack.c.l.b16 %v3547
        %v4924 = vpack.c.b16 %v4541, %v4908
        %v4925 = vpack.c.b16 %v4543, %v4909
        %v4926 = vpack.c.b16 %v4545, %v4910
        %v4927 = vpack.c.b16 %v4547, %v4911
        %v4928 = vpack.c.b16 %v4549, %v4912
        %v4929 = vpack.c.b16 %v4551, %v4913
        %v4930 = vpack.c.b16 %v4553, %v4914
        %v4931 = vpack.c.b16 %v4555, %v4915
        %v4932 = vpack.c.b16 %v4557, %v4916
        %v4933 = vpack.c.b16 %v4559, %v4917
        %v4934 = vpack.c.b16 %v4561, %v4918
        %v4935 = vpack.c.b16 %v4563, %v4919
        %v4936 = vpack.c.b16 %v4565, %v4920
        %v4937 = vpack.c.b16 %v4567, %v4921
        %v4938 = vpack.c.b16 %v4569, %v4922
        %v4939 = vpack.c.b16 %v4571, %v4923
        %v4940 = vrot.slane %v4924, 1
        %v4941 = vrot.slane %v4652, 1
        %v4942 = vsel %vm873, %v4940, %v4941
        %v4943 = vrot.slane %v4925, 1
        %v4944 = vrot.slane %v4653, 1
        %v4945 = vsel %vm873, %v4943, %v4944
        %v4946 = vrot.slane %v4926, 1
        %v4947 = vrot.slane %v4654, 1
        %v4948 = vsel %vm873, %v4946, %v4947
        %v4949 = vrot.slane %v4927, 1
        %v4950 = vrot.slane %v4655, 1
        %v4951 = vsel %vm873, %v4949, %v4950
        %v4952 = vrot.slane %v4928, 1
        %v4953 = vrot.slane %v4656, 1
        %v4954 = vsel %vm873, %v4952, %v4953
        %v4955 = vrot.slane %v4929, 1
        %v4956 = vrot.slane %v4657, 1
        %v4957 = vsel %vm873, %v4955, %v4956
        %v4958 = vrot.slane %v4930, 1
        %v4959 = vrot.slane %v4658, 1
        %v4960 = vsel %vm873, %v4958, %v4959
        %v4961 = vrot.slane %v4931, 1
        %v4962 = vrot.slane %v4659, 1
        %v4963 = vsel %vm873, %v4961, %v4962
        %v4964 = vrot.slane %v4932, 1
        %v4965 = vrot.slane %v4660, 1
        %v4966 = vsel %vm873, %v4964, %v4965
        %v4967 = vrot.slane %v4933, 1
        %v4968 = vrot.slane %v4661, 1
        %v4969 = vsel %vm873, %v4967, %v4968
        %v4970 = vrot.slane %v4934, 1
        %v4971 = vrot.slane %v4662, 1
        %v4972 = vsel %vm873, %v4970, %v4971
        %v4973 = vrot.slane %v4935, 1
        %v4974 = vrot.slane %v4663, 1
        %v4975 = vsel %vm873, %v4973, %v4974
        %v4976 = vrot.slane %v4936, 1
        %v4977 = vrot.slane %v4664, 1
        %v4978 = vsel %vm873, %v4976, %v4977
        %v4979 = vrot.slane %v4937, 1
        %v4980 = vrot.slane %v4665, 1
        %v4981 = vsel %vm873, %v4979, %v4980
        %v4982 = vrot.slane %v4938, 1
        %v4983 = vrot.slane %v4666, 1
        %v4984 = vsel %vm873, %v4982, %v4983
        %v4985 = vrot.slane %v4939, 1
        %v4986 = vrot.slane %v4667, 1
        %v4987 = vsel %vm873, %v4985, %v4986
        %v4989 = vsel %vm1979, %v3612, %v3869
        %v4991 = vsel %vm1979, %v3613, %v3871
        %v4993 = vsel %vm1979, %v3614, %v3873
        %v4995 = vsel %vm1979, %v3615, %v3875
        %v4997 = vsel %vm1979, %v3616, %v3877
        %v4999 = vsel %vm1979, %v3617, %v3879
        %v5001 = vsel %vm1979, %v3618, %v3881
        %v5003 = vsel %vm1979, %v3619, %v3883
        %v5005 = vsel %vm1979, %v3620, %v3885
        %v5007 = vsel %vm1979, %v3621, %v3887
        %v5009 = vsel %vm1979, %v3622, %v3889
        %v5011 = vsel %vm1979, %v3623, %v3891
        %v5013 = vsel %vm1979, %v3624, %v3893
        %v5015 = vsel %vm1979, %v3625, %v3895
        %v5017 = vsel %vm1979, %v3626, %v3897
        %v5019 = vsel %vm1979, %v3627, %v3899
        %v5021 = vsel %vm2045, %v4989, %v3997
        %v5023 = vsel %vm2045, %v4991, %v3999
        %v5025 = vsel %vm2045, %v4993, %v4001
        %v5027 = vsel %vm2045, %v4995, %v4003
        %v5029 = vsel %vm2045, %v4997, %v4005
        %v5031 = vsel %vm2045, %v4999, %v4007
        %v5033 = vsel %vm2045, %v5001, %v4009
        %v5035 = vsel %vm2045, %v5003, %v4011
        %v5037 = vsel %vm2045, %v5005, %v4013
        %v5039 = vsel %vm2045, %v5007, %v4015
        %v5041 = vsel %vm2045, %v5009, %v4017
        %v5043 = vsel %vm2045, %v5011, %v4019
        %v5045 = vsel %vm2045, %v5013, %v4021
        %v5047 = vsel %vm2045, %v5015, %v4023
        %v5049 = vsel %vm2045, %v5017, %v4025
        %v5051 = vsel %vm2045, %v5019, %v4027
        %v5053 = vsel %vm2111, %v5021, %v4109
        %v5056 = vsel %vm2111, %v5023, %v4111
        %v5059 = vsel %vm2111, %v5025, %v4113
        %v5062 = vsel %vm2111, %v5027, %v4115
        %v5065 = vsel %vm2111, %v5029, %v4117
        %v5068 = vsel %vm2111, %v5031, %v4119
        %v5071 = vsel %vm2111, %v5033, %v4121
        %v5074 = vsel %vm2111, %v5035, %v4123
        %v5077 = vsel %vm2111, %v5037, %v4125
        %v5080 = vsel %vm2111, %v5039, %v4127
        %v5083 = vsel %vm2111, %v5041, %v4129
        %v5086 = vsel %vm2111, %v5043, %v4131
        %v5089 = vsel %vm2111, %v5045, %v4133
        %v5092 = vsel %vm2111, %v5047, %v4135
        %v5095 = vsel %vm2111, %v5049, %v4137
        %v5098 = vsel %vm2111, %v5051, %v4139
        %v5102 = vsel %vm1979, %v4199, %v4477
        %v5105 = vsel %vm1979, %v4211, %v4479
        %v5108 = vsel %vm1979, %v4223, %v4481
        %v5111 = vsel %vm1979, %v4235, %v4483
        %v5114 = vsel %vm1979, %v4247, %v4485
        %v5117 = vsel %vm1979, %v4259, %v4487
        %v5120 = vsel %vm1979, %v4271, %v4489
        %v5123 = vsel %vm1979, %v4283, %v4491
        %v5126 = vsel %vm1979, %v4295, %v4493
        %v5129 = vsel %vm1979, %v4307, %v4495
        %v5132 = vsel %vm1979, %v4319, %v4497
        %v5135 = vsel %vm1979, %v4331, %v4499
        %v5138 = vsel %vm1979, %v4343, %v4501
        %v5141 = vsel %vm1979, %v4355, %v4503
        %v5144 = vsel %vm1979, %v4367, %v4505
        %v5147 = vsel %vm1979, %v4379, %v4507
        %v5149 = vsel %vm2045, %v5102, %v4589
        %v5151 = vsel %vm2045, %v5105, %v4591
        %v5153 = vsel %vm2045, %v5108, %v4593
        %v5155 = vsel %vm2045, %v5111, %v4595
        %v5157 = vsel %vm2045, %v5114, %v4597
        %v5159 = vsel %vm2045, %v5117, %v4599
        %v5161 = vsel %vm2045, %v5120, %v4601
        %v5163 = vsel %vm2045, %v5123, %v4603
        %v5165 = vsel %vm2045, %v5126, %v4605
        %v5167 = vsel %vm2045, %v5129, %v4607
        %v5169 = vsel %vm2045, %v5132, %v4609
        %v5171 = vsel %vm2045, %v5135, %v4611
        %v5173 = vsel %vm2045, %v5138, %v4613
        %v5175 = vsel %vm2045, %v5141, %v4615
        %v5177 = vsel %vm2045, %v5144, %v4617
        %v5179 = vsel %vm2045, %v5147, %v4619
        %v5181 = vsel %vm2111, %v5149, %v4861
        %v5184 = vsel %vm2111, %v5151, %v4863
        %v5187 = vsel %vm2111, %v5153, %v4865
        %v5190 = vsel %vm2111, %v5155, %v4867
        %v5193 = vsel %vm2111, %v5157, %v4869
        %v5196 = vsel %vm2111, %v5159, %v4871
        %v5199 = vsel %vm2111, %v5161, %v4873
        %v5202 = vsel %vm2111, %v5163, %v4875
        %v5205 = vsel %vm2111, %v5165, %v4877
        %v5208 = vsel %vm2111, %v5167, %v4879
        %v5211 = vsel %vm2111, %v5169, %v4881
        %v5214 = vsel %vm2111, %v5171, %v4883
        %v5217 = vsel %vm2111, %v5173, %v4885
        %v5220 = vsel %vm2111, %v5175, %v4887
        %v5223 = vsel %vm2111, %v5177, %v4889
        %v5226 = vsel %vm2111, %v5179, %v4891
        %v5228 = vld [vmem:[%s3] sm:$0xf]
        %v5229 = vld [vmem:[%s3 + $0x4] sm:$0xf]
        %v5230 = vld [vmem:[%s3 + $0x8] sm:$0xf]
        %v5231 = vld [vmem:[%s3 + $0xc] sm:$0xf]
        %v5232 = vld [vmem:[%s3 + $0x10] sm:$0xf]
        %v5233 = vld [vmem:[%s3 + $0x14] sm:$0xf]
        %v5234 = vld [vmem:[%s3 + $0x18] sm:$0xf]
        %v5235 = vld [vmem:[%s3 + $0x1c] sm:$0xf]
        %v5236 = vld [vmem:[%s3 + $0x20] sm:$0xf]
        %v5237 = vld [vmem:[%s3 + $0x24] sm:$0xf]
        %v5238 = vld [vmem:[%s3 + $0x28] sm:$0xf]
        %v5239 = vld [vmem:[%s3 + $0x2c] sm:$0xf]
        %v5240 = vld [vmem:[%s3 + $0x30] sm:$0xf]
        %v5241 = vld [vmem:[%s3 + $0x34] sm:$0xf]
        %v5242 = vld [vmem:[%s3 + $0x38] sm:$0xf]
        %v5243 = vld [vmem:[%s3 + $0x3c] sm:$0xf]
        %v5244 = vld [vmem:[%s3 + $0x40] sm:$0xf]
        %v5245 = vld [vmem:[%s3 + $0x44] sm:$0xf]
        %v5246 = vld [vmem:[%s3 + $0x48] sm:$0xf]
        %v5247 = vld [vmem:[%s3 + $0x4c] sm:$0xf]
        %v5248 = vld [vmem:[%s3 + $0x50] sm:$0xf]
        %v5249 = vld [vmem:[%s3 + $0x54] sm:$0xf]
        %v5250 = vld [vmem:[%s3 + $0x58] sm:$0xf]
        %v5251 = vld [vmem:[%s3 + $0x5c] sm:$0xf]
        %v5252 = vld [vmem:[%s3 + $0x60] sm:$0xf]
        %v5253 = vld [vmem:[%s3 + $0x64] sm:$0xf]
        %v5254 = vld [vmem:[%s3 + $0x68] sm:$0xf]
        %v5255 = vld [vmem:[%s3 + $0x6c] sm:$0xf]
        %v5256 = vld [vmem:[%s3 + $0x70] sm:$0xf]
        %v5257 = vld [vmem:[%s3 + $0x74] sm:$0xf]
        %v5258 = vld [vmem:[%s3 + $0x78] sm:$0xf]
        %v5259 = vld [vmem:[%s3 + $0x7c] sm:$0xf]
        %v5260 = vld [vmem:[%s3 + $0x80] sm:$0xf]
        %v5261 = vld [vmem:[%s3 + $0x84] sm:$0xf]
        %v5262 = vld [vmem:[%s3 + $0x88] sm:$0xf]
        %v5263 = vld [vmem:[%s3 + $0x8c] sm:$0xf]
        %v5264 = vld [vmem:[%s4] sm:$0x1]
        %v5266 = vlaneseq
        %v5267 = vshrl.u32 %v5266, 7
        %v5268 = vsub.s32 0, %v5267
        %v5269 = vrot.slane %v5264, %v5268
        %v5307 = vunpack.c.l.b16 %v5228
        %v5308 = vunpack.c.l.b16 %v5229
        %v5309 = vunpack.c.l.b16 %v5230
        %v5310 = vunpack.c.l.b16 %v5231
        %v5311 = vunpack.c.l.b16 %v5232
        %v5312 = vunpack.c.l.b16 %v5233
        %v5313 = vunpack.c.l.b16 %v5234
        %v5314 = vunpack.c.l.b16 %v5235
        %v5315 = vunpack.c.l.b16 %v5236
        %v5316 = vunpack.c.l.b16 %v5237
        %v5317 = vunpack.c.l.b16 %v5238
        %v5318 = vunpack.c.l.b16 %v5239
        %v5319 = vunpack.c.l.b16 %v5240
        %v5320 = vunpack.c.l.b16 %v5241
        %v5321 = vunpack.c.l.b16 %v5242
        %v5322 = vunpack.c.l.b16 %v5243
        %v5323 = vunpack.c.l.b16 %v5244
        %v5324 = vunpack.c.l.b16 %v5245
        %v5325 = vunpack.c.l.b16 %v5246
        %v5326 = vunpack.c.l.b16 %v5247
        %v5327 = vunpack.c.l.b16 %v5248
        %v5328 = vunpack.c.l.b16 %v5249
        %v5329 = vunpack.c.l.b16 %v5250
        %v5330 = vunpack.c.l.b16 %v5251
        %v5331 = vunpack.c.l.b16 %v5252
        %v5332 = vunpack.c.l.b16 %v5253
        %v5333 = vunpack.c.l.b16 %v5254
        %v5334 = vunpack.c.l.b16 %v5255
        %v5335 = vunpack.c.l.b16 %v5256
        %v5336 = vunpack.c.l.b16 %v5257
        %v5337 = vunpack.c.l.b16 %v5258
        %v5338 = vunpack.c.l.b16 %v5259
        %v5339 = vunpack.c.l.b16 %v5260
        %v5340 = vunpack.c.l.b16 %v5261
        %v5341 = vunpack.c.l.b16 %v5262
        %v5342 = vunpack.c.l.b16 %v5263
        %v5343 = vpack.c.b16 %v5308, %v5307
        %v5344 = vpack.c.b16 %v5310, %v5309
        %v5345 = vpack.c.b16 %v5312, %v5311
        %v5346 = vpack.c.b16 %v5314, %v5313
        %v5347 = vpack.c.b16 %v5316, %v5315
        %v5348 = vpack.c.b16 %v5318, %v5317
        %v5349 = vpack.c.b16 %v5320, %v5319
        %v5350 = vpack.c.b16 %v5322, %v5321
        %v5351 = vpack.c.b16 %v5324, %v5323
        %v5352 = vpack.c.b16 %v5326, %v5325
        %v5353 = vpack.c.b16 %v5328, %v5327
        %v5354 = vpack.c.b16 %v5330, %v5329
        %v5355 = vpack.c.b16 %v5332, %v5331
        %v5356 = vpack.c.b16 %v5334, %v5333
        %v5357 = vpack.c.b16 %v5336, %v5335
        %v5358 = vpack.c.b16 %v5338, %v5337
        %v5359 = vpack.c.b16 %v5340, %v5339
        %v5360 = vpack.c.b16 %v5342, %v5341
        %v5380 = vsel %vm1979, %v4942, 0
        %v5383 = vsel %vm1979, %v4945, 0
        %v5386 = vsel %vm1979, %v4948, 0
        %v5389 = vsel %vm1979, %v4951, 0
        %v5392 = vsel %vm1979, %v4954, 0
        %v5395 = vsel %vm1979, %v4957, 0
        %v5398 = vsel %vm1979, %v4960, 0
        %v5401 = vsel %vm1979, %v4963, 0
        %v5404 = vsel %vm1979, %v4966, 0
        %v5407 = vsel %vm1979, %v4969, 0
        %v5410 = vsel %vm1979, %v4972, 0
        %v5413 = vsel %vm1979, %v4975, 0
        %v5416 = vsel %vm1979, %v4978, 0
        %v5419 = vsel %vm1979, %v4981, 0
        %v5422 = vsel %vm1979, %v4984, 0
        %v5425 = vsel %vm1979, %v4987, 0
        %5427 = vmatprep.subr.bf16.mxu0 0
        %5428 = vmatpush1.bf16.msra.mxu0 %v5350
        %5429 = vmatprep.subr.bf16.mxu0 0
        %5430 = vmatpush1.bf16.msra.mxu0 %v5349
        %5431 = vmatprep.subr.bf16.mxu0 0
        %5432 = vmatpush1.bf16.msra.mxu0 %v5348
        %5433 = vmatprep.subr.bf16.mxu0 0
        %5434 = vmatpush1.bf16.msra.mxu0 %v5347
        %5435 = vmatprep.subr.bf16.mxu0 0
        %5436 = vmatpush1.bf16.msra.mxu0 %v5346
        %5437 = vmatprep.subr.bf16.mxu0 0
        %5438 = vmatpush1.bf16.msra.mxu0 %v5345
        %5439 = vmatprep.subr.bf16.mxu0 0
        %5440 = vmatpush1.bf16.msra.mxu0 %v5344
        %5441 = vmatprep.subr.bf16.mxu0 0
        %5442 = vmatpush1.bf16.msra.mxu0 %v5343
        %5443 = vmatprep.subr.bf16.mxu0 0
        %5444 = vmatpush2.bf16.msra.mxu0 %v5358
        %5445 = vmatprep.subr.bf16.mxu0 0
        %5446 = vmatpush2.bf16.msra.mxu0 %v5357
        %5447 = vmatprep.subr.bf16.mxu0 0
        %5448 = vmatpush2.bf16.msra.mxu0 %v5356
        %5449 = vmatprep.subr.bf16.mxu0 0
        %5450 = vmatpush2.bf16.msra.mxu0 %v5355
        %5451 = vmatprep.subr.bf16.mxu0 0
        %5452 = vmatpush2.bf16.msra.mxu0 %v5354
        %5453 = vmatprep.subr.bf16.mxu0 0
        %5454 = vmatpush2.bf16.msra.mxu0 %v5353
        %5455 = vmatprep.subr.bf16.mxu0 0
        %5456 = vmatpush2.bf16.msra.mxu0 %v5352
        %5457 = vmatprep.subr.bf16.mxu0 0
        %5458 = vmatpush2.bf16.msra.mxu0 %v5351
        %5459 = vmatprep.mubr.bf16.mxu0 %v5181
        %5460 = vmatmul.mubr.bf16.gmra.mxu0 %v5053
        %v5461 = vpop.f32.mrf.mxu0
        %v5462 = vadd.f32 %v5269, %v5461
        %v5463 = vpop.f32.mrf.mxu0
        %v5464 = vpop.f32.mrf.mxu0
        %v5465 = vadd.f32 %v5269, %v5464
        %v5466 = vpop.f32.mrf.mxu0
        %5467 = vmatprep.mubr.bf16.mxu0 %v5184
        %5468 = vmatmul.mubr.bf16.gmra.mxu0 %v5056
        %v5469 = vpop.f32.mrf.mxu0
        %v5470 = vadd.f32 %v5269, %v5469
        %v5471 = vpop.f32.mrf.mxu0
        %v5472 = vpop.f32.mrf.mxu0
        %v5473 = vadd.f32 %v5269, %v5472
        %v5474 = vpop.f32.mrf.mxu0
        %5475 = vmatprep.mubr.bf16.mxu0 %v5187
        %5476 = vmatmul.mubr.bf16.gmra.mxu0 %v5059
        %v5477 = vpop.f32.mrf.mxu0
        %v5478 = vadd.f32 %v5269, %v5477
        %v5479 = vpop.f32.mrf.mxu0
        %v5480 = vpop.f32.mrf.mxu0
        %v5481 = vadd.f32 %v5269, %v5480
        %v5482 = vpop.f32.mrf.mxu0
        %5483 = vmatprep.mubr.bf16.mxu0 %v5190
        %5484 = vmatmul.mubr.bf16.gmra.mxu0 %v5062
        %v5485 = vpop.f32.mrf.mxu0
        %v5486 = vadd.f32 %v5269, %v5485
        %v5487 = vpop.f32.mrf.mxu0
        %v5488 = vpop.f32.mrf.mxu0
        %v5489 = vadd.f32 %v5269, %v5488
        %v5490 = vpop.f32.mrf.mxu0
        %5491 = vmatprep.mubr.bf16.mxu0 %v5193
        %5492 = vmatmul.mubr.bf16.gmra.mxu0 %v5065
        %v5493 = vpop.f32.mrf.mxu0
        %v5494 = vadd.f32 %v5269, %v5493
        %v5495 = vpop.f32.mrf.mxu0
        %v5496 = vpop.f32.mrf.mxu0
        %v5497 = vadd.f32 %v5269, %v5496
        %v5498 = vpop.f32.mrf.mxu0
        %5499 = vmatprep.mubr.bf16.mxu0 %v5196
        %5500 = vmatmul.mubr.bf16.gmra.mxu0 %v5068
        %v5501 = vpop.f32.mrf.mxu0
        %v5502 = vadd.f32 %v5269, %v5501
        %v5503 = vpop.f32.mrf.mxu0
        %v5504 = vpop.f32.mrf.mxu0
        %v5505 = vadd.f32 %v5269, %v5504
        %v5506 = vpop.f32.mrf.mxu0
        %5507 = vmatprep.mubr.bf16.mxu0 %v5199
        %5508 = vmatmul.mubr.bf16.gmra.mxu0 %v5071
        %v5509 = vpop.f32.mrf.mxu0
        %v5510 = vadd.f32 %v5269, %v5509
        %v5511 = vpop.f32.mrf.mxu0
        %v5512 = vpop.f32.mrf.mxu0
        %v5513 = vadd.f32 %v5269, %v5512
        %v5514 = vpop.f32.mrf.mxu0
        %5515 = vmatprep.mubr.bf16.mxu0 %v5202
        %5516 = vmatmul.mubr.bf16.gmra.mxu0 %v5074
        %v5517 = vpop.f32.mrf.mxu0
        %v5518 = vadd.f32 %v5269, %v5517
        %v5519 = vpop.f32.mrf.mxu0
        %v5520 = vpop.f32.mrf.mxu0
        %v5521 = vadd.f32 %v5269, %v5520
        %v5522 = vpop.f32.mrf.mxu0
        %5523 = vmatprep.mubr.bf16.mxu0 %v5205
        %5524 = vmatmul.mubr.bf16.gmra.mxu0 %v5077
        %v5525 = vpop.f32.mrf.mxu0
        %v5526 = vadd.f32 %v5269, %v5525
        %v5527 = vpop.f32.mrf.mxu0
        %v5528 = vpop.f32.mrf.mxu0
        %v5529 = vadd.f32 %v5269, %v5528
        %v5530 = vpop.f32.mrf.mxu0
        %5531 = vmatprep.mubr.bf16.mxu0 %v5208
        %5532 = vmatmul.mubr.bf16.gmra.mxu0 %v5080
        %v5533 = vpop.f32.mrf.mxu0
        %v5534 = vadd.f32 %v5269, %v5533
        %v5535 = vpop.f32.mrf.mxu0
        %v5536 = vpop.f32.mrf.mxu0
        %v5537 = vadd.f32 %v5269, %v5536
        %v5538 = vpop.f32.mrf.mxu0
        %5539 = vmatprep.mubr.bf16.mxu0 %v5211
        %5540 = vmatmul.mubr.bf16.gmra.mxu0 %v5083
        %v5541 = vpop.f32.mrf.mxu0
        %v5542 = vadd.f32 %v5269, %v5541
        %v5543 = vpop.f32.mrf.mxu0
        %v5544 = vpop.f32.mrf.mxu0
        %v5545 = vadd.f32 %v5269, %v5544
        %v5546 = vpop.f32.mrf.mxu0
        %5547 = vmatprep.mubr.bf16.mxu0 %v5214
        %5548 = vmatmul.mubr.bf16.gmra.mxu0 %v5086
        %v5549 = vpop.f32.mrf.mxu0
        %v5550 = vadd.f32 %v5269, %v5549
        %v5551 = vpop.f32.mrf.mxu0
        %v5552 = vpop.f32.mrf.mxu0
        %v5553 = vadd.f32 %v5269, %v5552
        %v5554 = vpop.f32.mrf.mxu0
        %5555 = vmatprep.mubr.bf16.mxu0 %v5217
        %5556 = vmatmul.mubr.bf16.gmra.mxu0 %v5089
        %v5557 = vpop.f32.mrf.mxu0
        %v5558 = vadd.f32 %v5269, %v5557
        %v5559 = vpop.f32.mrf.mxu0
        %v5560 = vpop.f32.mrf.mxu0
        %v5561 = vadd.f32 %v5269, %v5560
        %v5562 = vpop.f32.mrf.mxu0
        %5563 = vmatprep.mubr.bf16.mxu0 %v5220
        %5564 = vmatmul.mubr.bf16.gmra.mxu0 %v5092
        %v5565 = vpop.f32.mrf.mxu0
        %v5566 = vadd.f32 %v5269, %v5565
        %v5567 = vpop.f32.mrf.mxu0
        %v5568 = vpop.f32.mrf.mxu0
        %v5569 = vadd.f32 %v5269, %v5568
        %v5570 = vpop.f32.mrf.mxu0
        %5571 = vmatprep.mubr.bf16.mxu0 %v5223
        %5572 = vmatmul.mubr.bf16.gmra.mxu0 %v5095
        %v5573 = vpop.f32.mrf.mxu0
        %v5574 = vadd.f32 %v5269, %v5573
        %v5575 = vpop.f32.mrf.mxu0
        %v5576 = vpop.f32.mrf.mxu0
        %v5577 = vadd.f32 %v5269, %v5576
        %v5578 = vpop.f32.mrf.mxu0
        %5579 = vmatprep.mubr.bf16.mxu0 %v5226
        %5580 = vmatmul.mubr.bf16.gmra.mxu0 %v5098
        %v5581 = vpop.f32.mrf.mxu0
        %v5582 = vadd.f32 %v5269, %v5581
        %v5583 = vpop.f32.mrf.mxu0
        %v5584 = vpop.f32.mrf.mxu0
        %v5585 = vadd.f32 %v5269, %v5584
        %v5586 = vpop.f32.mrf.mxu0
        %5587 = vdwg.mxu0
        %5588 = vmatprep.subr.bf16.mxu0 0
        %5589 = vmatpush1.bf16.msra.mxu0 0
        %5590 = vmatprep.subr.bf16.mxu0 0
        %5591 = vmatpush1.bf16.msra.mxu0 0
        %5592 = vmatprep.subr.bf16.mxu0 0
        %5593 = vmatpush1.bf16.msra.mxu0 0
        %5594 = vmatprep.subr.bf16.mxu0 0
        %5595 = vmatpush1.bf16.msra.mxu0 0
        %5596 = vmatprep.subr.bf16.mxu0 0
        %5597 = vmatpush1.bf16.msra.mxu0 0
        %5598 = vmatprep.subr.bf16.mxu0 0
        %5599 = vmatpush1.bf16.msra.mxu0 0
        %5600 = vmatprep.subr.bf16.mxu0 0
        %5601 = vmatpush1.bf16.msra.mxu0 %v5360
        %5602 = vmatprep.subr.bf16.mxu0 0
        %5603 = vmatpush1.bf16.msra.mxu0 %v5359
        %5604 = vmatprep.subr.bf16.mxu0 0
        %5605 = vmatpush2.bf16.msra.mxu0 0
        %5606 = vmatprep.subr.bf16.mxu0 0
        %5607 = vmatpush2.bf16.msra.mxu0 0
        %5608 = vmatprep.subr.bf16.mxu0 0
        %5609 = vmatpush2.bf16.msra.mxu0 0
        %5610 = vmatprep.subr.bf16.mxu0 0
        %5611 = vmatpush2.bf16.msra.mxu0 0
        %5612 = vmatprep.subr.bf16.mxu0 0
        %5613 = vmatpush2.bf16.msra.mxu0 0
        %5614 = vmatprep.subr.bf16.mxu0 0
        %5615 = vmatpush2.bf16.msra.mxu0 0
        %5616 = vmatprep.subr.bf16.mxu0 0
        %5617 = vmatpush2.bf16.msra.mxu0 0
        %5618 = vmatprep.subr.bf16.mxu0 0
        %5619 = vmatpush2.bf16.msra.mxu0 0
        %5620 = vmatprep.mubr.bf16.mxu0 0
        %5621 = vmatmul.mubr.bf16.gmra.mxu0 %v5380
        %v5622 = vpop.f32.mrf.mxu0
        %v5623 = vadd.f32 %v5462, %v5622
        %v5624 = vpop.f32.mrf.mxu0
        %v5625 = vpop.f32.mrf.mxu0
        %v5626 = vadd.f32 %v5465, %v5625
        %v5627 = vpop.f32.mrf.mxu0
        %5628 = vmatprep.mubr.bf16.mxu0 0
        %5629 = vmatmul.mubr.bf16.gmra.mxu0 %v5383
        %v5630 = vpop.f32.mrf.mxu0
        %v5631 = vadd.f32 %v5470, %v5630
        %v5632 = vpop.f32.mrf.mxu0
        %v5633 = vpop.f32.mrf.mxu0
        %v5634 = vadd.f32 %v5473, %v5633
        %v5635 = vpop.f32.mrf.mxu0
        %5636 = vmatprep.mubr.bf16.mxu0 0
        %5637 = vmatmul.mubr.bf16.gmra.mxu0 %v5386
        %v5638 = vpop.f32.mrf.mxu0
        %v5639 = vadd.f32 %v5478, %v5638
        %v5640 = vpop.f32.mrf.mxu0
        %v5641 = vpop.f32.mrf.mxu0
        %v5642 = vadd.f32 %v5481, %v5641
        %v5643 = vpop.f32.mrf.mxu0
        %5644 = vmatprep.mubr.bf16.mxu0 0
        %5645 = vmatmul.mubr.bf16.gmra.mxu0 %v5389
        %v5646 = vpop.f32.mrf.mxu0
        %v5647 = vadd.f32 %v5486, %v5646
        %v5648 = vpop.f32.mrf.mxu0
        %v5649 = vpop.f32.mrf.mxu0
        %v5650 = vadd.f32 %v5489, %v5649
        %v5651 = vpop.f32.mrf.mxu0
        %5652 = vmatprep.mubr.bf16.mxu0 0
        %5653 = vmatmul.mubr.bf16.gmra.mxu0 %v5392
        %v5654 = vpop.f32.mrf.mxu0
        %v5655 = vadd.f32 %v5494, %v5654
        %v5656 = vpop.f32.mrf.mxu0
        %v5657 = vpop.f32.mrf.mxu0
        %v5658 = vadd.f32 %v5497, %v5657
        %v5659 = vpop.f32.mrf.mxu0
        %5660 = vmatprep.mubr.bf16.mxu0 0
        %5661 = vmatmul.mubr.bf16.gmra.mxu0 %v5395
        %v5662 = vpop.f32.mrf.mxu0
        %v5663 = vadd.f32 %v5502, %v5662
        %v5664 = vpop.f32.mrf.mxu0
        %v5665 = vpop.f32.mrf.mxu0
        %v5666 = vadd.f32 %v5505, %v5665
        %v5667 = vpop.f32.mrf.mxu0
        %5668 = vmatprep.mubr.bf16.mxu0 0
        %5669 = vmatmul.mubr.bf16.gmra.mxu0 %v5398
        %v5670 = vpop.f32.mrf.mxu0
        %v5671 = vadd.f32 %v5510, %v5670
        %v5672 = vpop.f32.mrf.mxu0
        %v5673 = vpop.f32.mrf.mxu0
        %v5674 = vadd.f32 %v5513, %v5673
        %v5675 = vpop.f32.mrf.mxu0
        %5676 = vmatprep.mubr.bf16.mxu0 0
        %5677 = vmatmul.mubr.bf16.gmra.mxu0 %v5401
        %v5678 = vpop.f32.mrf.mxu0
        %v5679 = vadd.f32 %v5518, %v5678
        %v5680 = vpop.f32.mrf.mxu0
        %v5681 = vpop.f32.mrf.mxu0
        %v5682 = vadd.f32 %v5521, %v5681
        %v5683 = vpop.f32.mrf.mxu0
        %5684 = vmatprep.mubr.bf16.mxu0 0
        %5685 = vmatmul.mubr.bf16.gmra.mxu0 %v5404
        %v5686 = vpop.f32.mrf.mxu0
        %v5687 = vadd.f32 %v5526, %v5686
        %v5688 = vpop.f32.mrf.mxu0
        %v5689 = vpop.f32.mrf.mxu0
        %v5690 = vadd.f32 %v5529, %v5689
        %v5691 = vpop.f32.mrf.mxu0
        %5692 = vmatprep.mubr.bf16.mxu0 0
        %5693 = vmatmul.mubr.bf16.gmra.mxu0 %v5407
        %v5694 = vpop.f32.mrf.mxu0
        %v5695 = vadd.f32 %v5534, %v5694
        %v5696 = vpop.f32.mrf.mxu0
        %v5697 = vpop.f32.mrf.mxu0
        %v5698 = vadd.f32 %v5537, %v5697
        %v5699 = vpop.f32.mrf.mxu0
        %5700 = vmatprep.mubr.bf16.mxu0 0
        %5701 = vmatmul.mubr.bf16.gmra.mxu0 %v5410
        %v5702 = vpop.f32.mrf.mxu0
        %v5703 = vadd.f32 %v5542, %v5702
        %v5704 = vpop.f32.mrf.mxu0
        %v5705 = vpop.f32.mrf.mxu0
        %v5706 = vadd.f32 %v5545, %v5705
        %v5707 = vpop.f32.mrf.mxu0
        %5708 = vmatprep.mubr.bf16.mxu0 0
        %5709 = vmatmul.mubr.bf16.gmra.mxu0 %v5413
        %v5710 = vpop.f32.mrf.mxu0
        %v5711 = vadd.f32 %v5550, %v5710
        %v5712 = vpop.f32.mrf.mxu0
        %v5713 = vpop.f32.mrf.mxu0
        %v5714 = vadd.f32 %v5553, %v5713
        %v5715 = vpop.f32.mrf.mxu0
        %5716 = vmatprep.mubr.bf16.mxu0 0
        %5717 = vmatmul.mubr.bf16.gmra.mxu0 %v5416
        %v5718 = vpop.f32.mrf.mxu0
        %v5719 = vadd.f32 %v5558, %v5718
        %v5720 = vpop.f32.mrf.mxu0
        %v5721 = vpop.f32.mrf.mxu0
        %v5722 = vadd.f32 %v5561, %v5721
        %v5723 = vpop.f32.mrf.mxu0
        %5724 = vmatprep.mubr.bf16.mxu0 0
        %5725 = vmatmul.mubr.bf16.gmra.mxu0 %v5419
        %v5726 = vpop.f32.mrf.mxu0
        %v5727 = vadd.f32 %v5566, %v5726
        %v5728 = vpop.f32.mrf.mxu0
        %v5729 = vpop.f32.mrf.mxu0
        %v5730 = vadd.f32 %v5569, %v5729
        %v5731 = vpop.f32.mrf.mxu0
        %5732 = vmatprep.mubr.bf16.mxu0 0
        %5733 = vmatmul.mubr.bf16.gmra.mxu0 %v5422
        %v5734 = vpop.f32.mrf.mxu0
        %v5735 = vadd.f32 %v5574, %v5734
        %v5736 = vpop.f32.mrf.mxu0
        %v5737 = vpop.f32.mrf.mxu0
        %v5738 = vadd.f32 %v5577, %v5737
        %v5739 = vpop.f32.mrf.mxu0
        %5740 = vmatprep.mubr.bf16.mxu0 0
        %5741 = vmatmul.mubr.bf16.gmra.mxu0 %v5425
        %v5742 = vpop.f32.mrf.mxu0
        %v5743 = vadd.f32 %v5582, %v5742
        %v5744 = vpop.f32.mrf.mxu0
        %v5745 = vpop.f32.mrf.mxu0
        %v5746 = vadd.f32 %v5585, %v5745
        %v5747 = vpop.f32.mrf.mxu0
        %5748 = vdwg.mxu0
        %v5749 = vmax.f32 %v5623, 0.0
        %v5750 = vmax.f32 %v5626, 0.0
        %v5751 = vmax.f32 %v5631, 0.0
        %v5752 = vmax.f32 %v5634, 0.0
        %v5753 = vmax.f32 %v5639, 0.0
        %v5754 = vmax.f32 %v5642, 0.0
        %v5755 = vmax.f32 %v5647, 0.0
        %v5756 = vmax.f32 %v5650, 0.0
        %v5757 = vmax.f32 %v5655, 0.0
        %v5758 = vmax.f32 %v5658, 0.0
        %v5759 = vmax.f32 %v5663, 0.0
        %v5760 = vmax.f32 %v5666, 0.0
        %v5761 = vmax.f32 %v5671, 0.0
        %v5762 = vmax.f32 %v5674, 0.0
        %v5763 = vmax.f32 %v5679, 0.0
        %v5764 = vmax.f32 %v5682, 0.0
        %v5765 = vmax.f32 %v5687, 0.0
        %v5766 = vmax.f32 %v5690, 0.0
        %v5767 = vmax.f32 %v5695, 0.0
        %v5768 = vmax.f32 %v5698, 0.0
        %v5769 = vmax.f32 %v5703, 0.0
        %v5770 = vmax.f32 %v5706, 0.0
        %v5771 = vmax.f32 %v5711, 0.0
        %v5772 = vmax.f32 %v5714, 0.0
        %v5773 = vmax.f32 %v5719, 0.0
        %v5774 = vmax.f32 %v5722, 0.0
        %v5775 = vmax.f32 %v5727, 0.0
        %v5776 = vmax.f32 %v5730, 0.0
        %v5777 = vmax.f32 %v5735, 0.0
        %v5778 = vmax.f32 %v5738, 0.0
        %v5779 = vmax.f32 %v5743, 0.0
        %v5780 = vmax.f32 %v5746, 0.0
        %v5781 = vld [vmem:[%s5] sm:$0xff]
        %v5782 = vld [vmem:[%s5 + $0x8] sm:$0xff]
        %v5783 = vld [vmem:[%s5 + $0x10] sm:$0xff]
        %v5784 = vld [vmem:[%s5 + $0x18] sm:$0xff]
        %v5786 = vsel %vm1979, %v5749, 0
        %v5789 = vsel %vm1979, %v5750, 0
        %v5792 = vsel %vm1979, %v5751, 0
        %v5795 = vsel %vm1979, %v5752, 0
        %v5798 = vsel %vm1979, %v5753, 0
        %v5801 = vsel %vm1979, %v5754, 0
        %v5804 = vsel %vm1979, %v5755, 0
        %v5807 = vsel %vm1979, %v5756, 0
        %v5810 = vsel %vm1979, %v5757, 0
        %v5813 = vsel %vm1979, %v5758, 0
        %v5816 = vsel %vm1979, %v5759, 0
        %v5819 = vsel %vm1979, %v5760, 0
        %v5822 = vsel %vm1979, %v5761, 0
        %v5825 = vsel %vm1979, %v5762, 0
        %v5828 = vsel %vm1979, %v5763, 0
        %v5831 = vsel %vm1979, %v5764, 0
        %v5834 = vsel %vm1979, %v5765, 0
        %v5837 = vsel %vm1979, %v5766, 0
        %v5840 = vsel %vm1979, %v5767, 0
        %v5843 = vsel %vm1979, %v5768, 0
        %v5846 = vsel %vm1979, %v5769, 0
        %v5849 = vsel %vm1979, %v5770, 0
        %v5852 = vsel %vm1979, %v5771, 0
        %v5855 = vsel %vm1979, %v5772, 0
        %v5858 = vsel %vm1979, %v5773, 0
        %v5861 = vsel %vm1979, %v5774, 0
        %v5864 = vsel %vm1979, %v5775, 0
        %v5867 = vsel %vm1979, %v5776, 0
        %v5870 = vsel %vm1979, %v5777, 0
        %v5873 = vsel %vm1979, %v5778, 0
        %v5876 = vsel %vm1979, %v5779, 0
        %v5879 = vsel %vm1979, %v5780, 0
        %5881 = vmatprep.subr.mxu0 0.0
        %5882 = vmatpush1.msra.mxu0 0.0
        %5883 = vmatprep.subr.mxu0 0.0
        %5884 = vmatpush1.msra.mxu0 0.0
        %5885 = vmatprep.subr.mxu0 0.0
        %5886 = vmatpush1.msra.mxu0 0.0
        %5887 = vmatprep.subr.mxu0 0.0
        %5888 = vmatpush1.msra.mxu0 0.0
        %5889 = vmatprep.subr.mxu0 0.0
        %5890 = vmatpush1.msra.mxu0 0.0
        %5891 = vmatprep.subr.mxu0 0.0
        %5892 = vmatpush1.msra.mxu0 0.0
        %5893 = vmatprep.subr.mxu0 0.0
        %5894 = vmatpush1.msra.mxu0 0.0
        %5895 = vmatprep.subr.mxu0 0.0
        %5896 = vmatpush1.msra.mxu0 0.0
        %5897 = vmatprep.subr.mxu0 0.0
        %5898 = vmatpush1.msra.mxu0 0.0
        %5899 = vmatprep.subr.mxu0 0.0
        %5900 = vmatpush1.msra.mxu0 0.0
        %5901 = vmatprep.subr.mxu0 0.0
        %5902 = vmatpush1.msra.mxu0 0.0
        %5903 = vmatprep.subr.mxu0 0.0
        %5904 = vmatpush1.msra.mxu0 0.0
        %5905 = vmatprep.subr.mxu0 0.0
        %5906 = vmatpush1.msra.mxu0 %v5784
        %5907 = vmatprep.subr.mxu0 0.0
        %5908 = vmatpush1.msra.mxu0 %v5783
        %5909 = vmatprep.subr.mxu0 0.0
        %5910 = vmatpush1.msra.mxu0 %v5782
        %5911 = vmatprep.subr.mxu0 0.0
        %5912 = vmatpush1.msra.mxu0 %v5781
        %5913 = vmatprep.subr.mxu0 0.0
        %5914 = vmatpush2.msra.mxu0 0.0
        %5915 = vmatprep.subr.mxu0 0.0
        %5916 = vmatpush2.msra.mxu0 0.0
        %5917 = vmatprep.subr.mxu0 0.0
        %5918 = vmatpush2.msra.mxu0 0.0
        %5919 = vmatprep.subr.mxu0 0.0
        %5920 = vmatpush2.msra.mxu0 0.0
        %5921 = vmatprep.subr.mxu0 0.0
        %5922 = vmatpush2.msra.mxu0 0.0
        %5923 = vmatprep.subr.mxu0 0.0
        %5924 = vmatpush2.msra.mxu0 0.0
        %5925 = vmatprep.subr.mxu0 0.0
        %5926 = vmatpush2.msra.mxu0 0.0
        %5927 = vmatprep.subr.mxu0 0.0
        %5928 = vmatpush2.msra.mxu0 0.0
        %5929 = vmatprep.subr.mxu0 0.0
        %5930 = vmatpush2.msra.mxu0 0.0
        %5931 = vmatprep.subr.mxu0 0.0
        %5932 = vmatpush2.msra.mxu0 0.0
        %5933 = vmatprep.subr.mxu0 0.0
        %5934 = vmatpush2.msra.mxu0 0.0
        %5935 = vmatprep.subr.mxu0 0.0
        %5936 = vmatpush2.msra.mxu0 0.0
        %5937 = vmatprep.subr.mxu0 0.0
        %5938 = vmatpush2.msra.mxu0 0.0
        %5939 = vmatprep.subr.mxu0 0.0
        %5940 = vmatpush2.msra.mxu0 0.0
        %5941 = vmatprep.subr.mxu0 0.0
        %5942 = vmatpush2.msra.mxu0 0.0
        %5943 = vmatprep.subr.mxu0 0.0
        %5944 = vmatpush2.msra.mxu0 0.0
        %5945 = vmatprep.mubr.f32.mxu0 0.0
        %5946 = vmatmul.mubr.f32.gmra.mxu0 %v5786
        %v5947 = vpop.f32.mrf.mxu0
        %v5948 = vadd.f32 0.0, %v5947
        %v5949 = vpop.f32.mrf.mxu0
        %5950 = vmatprep.mubr.f32.mxu0 0.0
        %5951 = vmatmul.mubr.f32.gmra.mxu0 %v5789
        %v5952 = vpop.f32.mrf.mxu0
        %v5953 = vadd.f32 0.0, %v5952
        %v5954 = vpop.f32.mrf.mxu0
        %5955 = vmatprep.mubr.f32.mxu0 0.0
        %5956 = vmatmul.mubr.f32.gmra.mxu0 %v5792
        %v5957 = vpop.f32.mrf.mxu0
        %v5958 = vadd.f32 0.0, %v5957
        %v5959 = vpop.f32.mrf.mxu0
        %5960 = vmatprep.mubr.f32.mxu0 0.0
        %5961 = vmatmul.mubr.f32.gmra.mxu0 %v5795
        %v5962 = vpop.f32.mrf.mxu0
        %v5963 = vadd.f32 0.0, %v5962
        %v5964 = vpop.f32.mrf.mxu0
        %5965 = vmatprep.mubr.f32.mxu0 0.0
        %5966 = vmatmul.mubr.f32.gmra.mxu0 %v5798
        %v5967 = vpop.f32.mrf.mxu0
        %v5968 = vadd.f32 0.0, %v5967
        %v5969 = vpop.f32.mrf.mxu0
        %5970 = vmatprep.mubr.f32.mxu0 0.0
        %5971 = vmatmul.mubr.f32.gmra.mxu0 %v5801
        %v5972 = vpop.f32.mrf.mxu0
        %v5973 = vadd.f32 0.0, %v5972
        %v5974 = vpop.f32.mrf.mxu0
        %5975 = vmatprep.mubr.f32.mxu0 0.0
        %5976 = vmatmul.mubr.f32.gmra.mxu0 %v5804
        %v5977 = vpop.f32.mrf.mxu0
        %v5978 = vadd.f32 0.0, %v5977
        %v5979 = vpop.f32.mrf.mxu0
        %5980 = vmatprep.mubr.f32.mxu0 0.0
        %5981 = vmatmul.mubr.f32.gmra.mxu0 %v5807
        %v5982 = vpop.f32.mrf.mxu0
        %v5983 = vadd.f32 0.0, %v5982
        %v5984 = vpop.f32.mrf.mxu0
        %5985 = vmatprep.mubr.f32.mxu0 0.0
        %5986 = vmatmul.mubr.f32.gmra.mxu0 %v5810
        %v5987 = vpop.f32.mrf.mxu0
        %v5988 = vadd.f32 0.0, %v5987
        %v5989 = vpop.f32.mrf.mxu0
        %5990 = vmatprep.mubr.f32.mxu0 0.0
        %5991 = vmatmul.mubr.f32.gmra.mxu0 %v5813
        %v5992 = vpop.f32.mrf.mxu0
        %v5993 = vadd.f32 0.0, %v5992
        %v5994 = vpop.f32.mrf.mxu0
        %5995 = vmatprep.mubr.f32.mxu0 0.0
        %5996 = vmatmul.mubr.f32.gmra.mxu0 %v5816
        %v5997 = vpop.f32.mrf.mxu0
        %v5998 = vadd.f32 0.0, %v5997
        %v5999 = vpop.f32.mrf.mxu0
        %6000 = vmatprep.mubr.f32.mxu0 0.0
        %6001 = vmatmul.mubr.f32.gmra.mxu0 %v5819
        %v6002 = vpop.f32.mrf.mxu0
        %v6003 = vadd.f32 0.0, %v6002
        %v6004 = vpop.f32.mrf.mxu0
        %6005 = vmatprep.mubr.f32.mxu0 0.0
        %6006 = vmatmul.mubr.f32.gmra.mxu0 %v5822
        %v6007 = vpop.f32.mrf.mxu0
        %v6008 = vadd.f32 0.0, %v6007
        %v6009 = vpop.f32.mrf.mxu0
        %6010 = vmatprep.mubr.f32.mxu0 0.0
        %6011 = vmatmul.mubr.f32.gmra.mxu0 %v5825
        %v6012 = vpop.f32.mrf.mxu0
        %v6013 = vadd.f32 0.0, %v6012
        %v6014 = vpop.f32.mrf.mxu0
        %6015 = vmatprep.mubr.f32.mxu0 0.0
        %6016 = vmatmul.mubr.f32.gmra.mxu0 %v5828
        %v6017 = vpop.f32.mrf.mxu0
        %v6018 = vadd.f32 0.0, %v6017
        %v6019 = vpop.f32.mrf.mxu0
        %6020 = vmatprep.mubr.f32.mxu0 0.0
        %6021 = vmatmul.mubr.f32.gmra.mxu0 %v5831
        %v6022 = vpop.f32.mrf.mxu0
        %v6023 = vadd.f32 0.0, %v6022
        %v6024 = vpop.f32.mrf.mxu0
        %6025 = vmatprep.mubr.f32.mxu0 0.0
        %6026 = vmatmul.mubr.f32.gmra.mxu0 %v5834
        %v6027 = vpop.f32.mrf.mxu0
        %v6028 = vadd.f32 0.0, %v6027
        %v6029 = vpop.f32.mrf.mxu0
        %6030 = vmatprep.mubr.f32.mxu0 0.0
        %6031 = vmatmul.mubr.f32.gmra.mxu0 %v5837
        %v6032 = vpop.f32.mrf.mxu0
        %v6033 = vadd.f32 0.0, %v6032
        %v6034 = vpop.f32.mrf.mxu0
        %6035 = vmatprep.mubr.f32.mxu0 0.0
        %6036 = vmatmul.mubr.f32.gmra.mxu0 %v5840
        %v6037 = vpop.f32.mrf.mxu0
        %v6038 = vadd.f32 0.0, %v6037
        %v6039 = vpop.f32.mrf.mxu0
        %6040 = vmatprep.mubr.f32.mxu0 0.0
        %6041 = vmatmul.mubr.f32.gmra.mxu0 %v5843
        %v6042 = vpop.f32.mrf.mxu0
        %v6043 = vadd.f32 0.0, %v6042
        %v6044 = vpop.f32.mrf.mxu0
        %6045 = vmatprep.mubr.f32.mxu0 0.0
        %6046 = vmatmul.mubr.f32.gmra.mxu0 %v5846
        %v6047 = vpop.f32.mrf.mxu0
        %v6048 = vadd.f32 0.0, %v6047
        %v6049 = vpop.f32.mrf.mxu0
        %6050 = vmatprep.mubr.f32.mxu0 0.0
        %6051 = vmatmul.mubr.f32.gmra.mxu0 %v5849
        %v6052 = vpop.f32.mrf.mxu0
        %v6053 = vadd.f32 0.0, %v6052
        %v6054 = vpop.f32.mrf.mxu0
        %6055 = vmatprep.mubr.f32.mxu0 0.0
        %6056 = vmatmul.mubr.f32.gmra.mxu0 %v5852
        %v6057 = vpop.f32.mrf.mxu0
        %v6058 = vadd.f32 0.0, %v6057
        %v6059 = vpop.f32.mrf.mxu0
        %6060 = vmatprep.mubr.f32.mxu0 0.0
        %6061 = vmatmul.mubr.f32.gmra.mxu0 %v5855
        %v6062 = vpop.f32.mrf.mxu0
        %v6063 = vadd.f32 0.0, %v6062
        %v6064 = vpop.f32.mrf.mxu0
        %6065 = vmatprep.mubr.f32.mxu0 0.0
        %6066 = vmatmul.mubr.f32.gmra.mxu0 %v5858
        %v6067 = vpop.f32.mrf.mxu0
        %v6068 = vadd.f32 0.0, %v6067
        %v6069 = vpop.f32.mrf.mxu0
        %6070 = vmatprep.mubr.f32.mxu0 0.0
        %6071 = vmatmul.mubr.f32.gmra.mxu0 %v5861
        %v6072 = vpop.f32.mrf.mxu0
        %v6073 = vadd.f32 0.0, %v6072
        %v6074 = vpop.f32.mrf.mxu0
        %6075 = vmatprep.mubr.f32.mxu0 0.0
        %6076 = vmatmul.mubr.f32.gmra.mxu0 %v5864
        %v6077 = vpop.f32.mrf.mxu0
        %v6078 = vadd.f32 0.0, %v6077
        %v6079 = vpop.f32.mrf.mxu0
        %6080 = vmatprep.mubr.f32.mxu0 0.0
        %6081 = vmatmul.mubr.f32.gmra.mxu0 %v5867
        %v6082 = vpop.f32.mrf.mxu0
        %v6083 = vadd.f32 0.0, %v6082
        %v6084 = vpop.f32.mrf.mxu0
        %6085 = vmatprep.mubr.f32.mxu0 0.0
        %6086 = vmatmul.mubr.f32.gmra.mxu0 %v5870
        %v6087 = vpop.f32.mrf.mxu0
        %v6088 = vadd.f32 0.0, %v6087
        %v6089 = vpop.f32.mrf.mxu0
        %6090 = vmatprep.mubr.f32.mxu0 0.0
        %6091 = vmatmul.mubr.f32.gmra.mxu0 %v5873
        %v6092 = vpop.f32.mrf.mxu0
        %v6093 = vadd.f32 0.0, %v6092
        %v6094 = vpop.f32.mrf.mxu0
        %6095 = vmatprep.mubr.f32.mxu0 0.0
        %6096 = vmatmul.mubr.f32.gmra.mxu0 %v5876
        %v6097 = vpop.f32.mrf.mxu0
        %v6098 = vadd.f32 0.0, %v6097
        %v6099 = vpop.f32.mrf.mxu0
        %6100 = vmatprep.mubr.f32.mxu0 0.0
        %6101 = vmatmul.mubr.f32.gmra.mxu0 %v5879
        %v6102 = vpop.f32.mrf.mxu0
        %v6103 = vadd.f32 0.0, %v6102
        %v6104 = vpop.f32.mrf.mxu0
        %6105 = vdwg.mxu0
        %v6106 = vtanh.pop %v5948
        %v6107 = vtanh.pop %v5953
        %v6108 = vtanh.pop %v5958
        %v6109 = vtanh.pop %v5963
        %v6110 = vtanh.pop %v5968
        %v6111 = vtanh.pop %v5973
        %v6112 = vtanh.pop %v5978
        %v6113 = vtanh.pop %v5983
        %v6114 = vtanh.pop %v5988
        %v6115 = vtanh.pop %v5993
        %v6116 = vtanh.pop %v5998
        %v6117 = vtanh.pop %v6003
        %v6118 = vtanh.pop %v6008
        %v6119 = vtanh.pop %v6013
        %v6120 = vtanh.pop %v6018
        %v6121 = vtanh.pop %v6023
        %v6122 = vtanh.pop %v6028
        %v6123 = vtanh.pop %v6033
        %v6124 = vtanh.pop %v6038
        %v6125 = vtanh.pop %v6043
        %v6126 = vtanh.pop %v6048
        %v6127 = vtanh.pop %v6053
        %v6128 = vtanh.pop %v6058
        %v6129 = vtanh.pop %v6063
        %v6130 = vtanh.pop %v6068
        %v6131 = vtanh.pop %v6073
        %v6132 = vtanh.pop %v6078
        %v6133 = vtanh.pop %v6083
        %v6134 = vtanh.pop %v6088
        %v6135 = vtanh.pop %v6093
        %v6136 = vtanh.pop %v6098
        %v6137 = vtanh.pop %v6103
        %v6138 = vld [vmem:[%s6] sm:$0x1]
        %v6140 = vlaneseq
        %v6141 = vshrl.u32 %v6140, 7
        %v6142 = vsub.s32 0, %v6141
        %v6143 = vrot.slane %v6138, %v6142
        %v6145 = vmul.f32 %v6106, %v6143
        %v6146 = vmul.f32 %v6107, %v6143
        %v6147 = vmul.f32 %v6108, %v6143
        %v6148 = vmul.f32 %v6109, %v6143
        %v6149 = vmul.f32 %v6110, %v6143
        %v6150 = vmul.f32 %v6111, %v6143
        %v6151 = vmul.f32 %v6112, %v6143
        %v6152 = vmul.f32 %v6113, %v6143
        %v6153 = vmul.f32 %v6114, %v6143
        %v6154 = vmul.f32 %v6115, %v6143
        %v6155 = vmul.f32 %v6116, %v6143
        %v6156 = vmul.f32 %v6117, %v6143
        %v6157 = vmul.f32 %v6118, %v6143
        %v6158 = vmul.f32 %v6119, %v6143
        %v6159 = vmul.f32 %v6120, %v6143
        %v6160 = vmul.f32 %v6121, %v6143
        %v6161 = vmul.f32 %v6122, %v6143
        %v6162 = vmul.f32 %v6123, %v6143
        %v6163 = vmul.f32 %v6124, %v6143
        %v6164 = vmul.f32 %v6125, %v6143
        %v6165 = vmul.f32 %v6126, %v6143
        %v6166 = vmul.f32 %v6127, %v6143
        %v6167 = vmul.f32 %v6128, %v6143
        %v6168 = vmul.f32 %v6129, %v6143
        %v6169 = vmul.f32 %v6130, %v6143
        %v6170 = vmul.f32 %v6131, %v6143
        %v6171 = vmul.f32 %v6132, %v6143
        %v6172 = vmul.f32 %v6133, %v6143
        %v6173 = vmul.f32 %v6134, %v6143
        %v6174 = vmul.f32 %v6135, %v6143
        %v6175 = vmul.f32 %v6136, %v6143
        %v6176 = vmul.f32 %v6137, %v6143
        %v6177 = vsel %vm2045, %v6145, 0.0
        %6178 = vadd.xlane.f32.xlu0 %v6177
        %v6179 = vpop.xlane.xlu0 %6178
        %v6180 = vsel %vm2045, %v6146, 0.0
        %6181 = vadd.xlane.f32.xlu0 %v6180
        %v6182 = vpop.xlane.xlu0 %6181
        %v6183 = vsel %vm2045, %v6147, 0.0
        %6184 = vadd.xlane.f32.xlu0 %v6183
        %v6185 = vpop.xlane.xlu0 %6184
        %v6186 = vsel %vm2045, %v6148, 0.0
        %6187 = vadd.xlane.f32.xlu0 %v6186
        %v6188 = vpop.xlane.xlu0 %6187
        %v6189 = vsel %vm2045, %v6149, 0.0
        %6190 = vadd.xlane.f32.xlu0 %v6189
        %v6191 = vpop.xlane.xlu0 %6190
        %v6192 = vsel %vm2045, %v6150, 0.0
        %6193 = vadd.xlane.f32.xlu0 %v6192
        %v6194 = vpop.xlane.xlu0 %6193
        %v6195 = vsel %vm2045, %v6151, 0.0
        %6196 = vadd.xlane.f32.xlu0 %v6195
        %v6197 = vpop.xlane.xlu0 %6196
        %v6198 = vsel %vm2045, %v6152, 0.0
        %6199 = vadd.xlane.f32.xlu0 %v6198
        %v6200 = vpop.xlane.xlu0 %6199
        %v6201 = vsel %vm2045, %v6153, 0.0
        %6202 = vadd.xlane.f32.xlu0 %v6201
        %v6203 = vpop.xlane.xlu0 %6202
        %v6204 = vsel %vm2045, %v6154, 0.0
        %6205 = vadd.xlane.f32.xlu0 %v6204
        %v6206 = vpop.xlane.xlu0 %6205
        %v6207 = vsel %vm2045, %v6155, 0.0
        %6208 = vadd.xlane.f32.xlu0 %v6207
        %v6209 = vpop.xlane.xlu0 %6208
        %v6210 = vsel %vm2045, %v6156, 0.0
        %6211 = vadd.xlane.f32.xlu0 %v6210
        %v6212 = vpop.xlane.xlu0 %6211
        %v6213 = vsel %vm2045, %v6157, 0.0
        %6214 = vadd.xlane.f32.xlu0 %v6213
        %v6215 = vpop.xlane.xlu0 %6214
        %v6216 = vsel %vm2045, %v6158, 0.0
        %6217 = vadd.xlane.f32.xlu0 %v6216
        %v6218 = vpop.xlane.xlu0 %6217
        %v6219 = vsel %vm2045, %v6159, 0.0
        %6220 = vadd.xlane.f32.xlu0 %v6219
        %v6221 = vpop.xlane.xlu0 %6220
        %v6222 = vsel %vm2045, %v6160, 0.0
        %6223 = vadd.xlane.f32.xlu0 %v6222
        %v6224 = vpop.xlane.xlu0 %6223
        %v6225 = vsel %vm2045, %v6161, 0.0
        %6226 = vadd.xlane.f32.xlu0 %v6225
        %v6227 = vpop.xlane.xlu0 %6226
        %v6228 = vsel %vm2045, %v6162, 0.0
        %6229 = vadd.xlane.f32.xlu0 %v6228
        %v6230 = vpop.xlane.xlu0 %6229
        %v6231 = vsel %vm2045, %v6163, 0.0
        %6232 = vadd.xlane.f32.xlu0 %v6231
        %v6233 = vpop.xlane.xlu0 %6232
        %v6234 = vsel %vm2045, %v6164, 0.0
        %6235 = vadd.xlane.f32.xlu0 %v6234
        %v6236 = vpop.xlane.xlu0 %6235
        %v6237 = vsel %vm2045, %v6165, 0.0
        %6238 = vadd.xlane.f32.xlu0 %v6237
        %v6239 = vpop.xlane.xlu0 %6238
        %v6240 = vsel %vm2045, %v6166, 0.0
        %6241 = vadd.xlane.f32.xlu0 %v6240
        %v6242 = vpop.xlane.xlu0 %6241
        %v6243 = vsel %vm2045, %v6167, 0.0
        %6244 = vadd.xlane.f32.xlu0 %v6243
        %v6245 = vpop.xlane.xlu0 %6244
        %v6246 = vsel %vm2045, %v6168, 0.0
        %6247 = vadd.xlane.f32.xlu0 %v6246
        %v6248 = vpop.xlane.xlu0 %6247
        %v6249 = vsel %vm2045, %v6169, 0.0
        %6250 = vadd.xlane.f32.xlu0 %v6249
        %v6251 = vpop.xlane.xlu0 %6250
        %v6252 = vsel %vm2045, %v6170, 0.0
        %6253 = vadd.xlane.f32.xlu0 %v6252
        %v6254 = vpop.xlane.xlu0 %6253
        %v6255 = vsel %vm2045, %v6171, 0.0
        %6256 = vadd.xlane.f32.xlu0 %v6255
        %v6257 = vpop.xlane.xlu0 %6256
        %v6258 = vsel %vm2045, %v6172, 0.0
        %6259 = vadd.xlane.f32.xlu0 %v6258
        %v6260 = vpop.xlane.xlu0 %6259
        %v6261 = vsel %vm2045, %v6173, 0.0
        %6262 = vadd.xlane.f32.xlu0 %v6261
        %v6263 = vpop.xlane.xlu0 %6262
        %v6264 = vsel %vm2045, %v6174, 0.0
        %6265 = vadd.xlane.f32.xlu0 %v6264
        %v6266 = vpop.xlane.xlu0 %6265
        %v6267 = vsel %vm2045, %v6175, 0.0
        %6268 = vadd.xlane.f32.xlu0 %v6267
        %v6269 = vpop.xlane.xlu0 %6268
        %v6270 = vsel %vm2045, %v6176, 0.0
        %6271 = vadd.xlane.f32.xlu0 %v6270
        %v6272 = vpop.xlane.xlu0 %6271
        %v6273 = vxor.u32 %v6179, 2147483648
        %v6274 = vxor.u32 %v6182, 2147483648
        %v6275 = vxor.u32 %v6185, 2147483648
        %v6276 = vxor.u32 %v6188, 2147483648
        %v6277 = vxor.u32 %v6191, 2147483648
        %v6278 = vxor.u32 %v6194, 2147483648
        %v6279 = vxor.u32 %v6197, 2147483648
        %v6280 = vxor.u32 %v6200, 2147483648
        %v6281 = vxor.u32 %v6203, 2147483648
        %v6282 = vxor.u32 %v6206, 2147483648
        %v6283 = vxor.u32 %v6209, 2147483648
        %v6284 = vxor.u32 %v6212, 2147483648
        %v6285 = vxor.u32 %v6215, 2147483648
        %v6286 = vxor.u32 %v6218, 2147483648
        %v6287 = vxor.u32 %v6221, 2147483648
        %v6288 = vxor.u32 %v6224, 2147483648
        %v6289 = vxor.u32 %v6227, 2147483648
        %v6290 = vxor.u32 %v6230, 2147483648
        %v6291 = vxor.u32 %v6233, 2147483648
        %v6292 = vxor.u32 %v6236, 2147483648
        %v6293 = vxor.u32 %v6239, 2147483648
        %v6294 = vxor.u32 %v6242, 2147483648
        %v6295 = vxor.u32 %v6245, 2147483648
        %v6296 = vxor.u32 %v6248, 2147483648
        %v6297 = vxor.u32 %v6251, 2147483648
        %v6298 = vxor.u32 %v6254, 2147483648
        %v6299 = vxor.u32 %v6257, 2147483648
        %v6300 = vxor.u32 %v6260, 2147483648
        %v6301 = vxor.u32 %v6263, 2147483648
        %v6302 = vxor.u32 %v6266, 2147483648
        %v6303 = vxor.u32 %v6269, 2147483648
        %v6304 = vxor.u32 %v6272, 2147483648
        %v6305 = vmul.f32 %v6273, 1.442695
        %v6306 = vpow.pop %v6305
        %v6307 = vmul.f32 %v6274, 1.442695
        %v6308 = vpow.pop %v6307
        %v6309 = vmul.f32 %v6275, 1.442695
        %v6310 = vpow.pop %v6309
        %v6311 = vmul.f32 %v6276, 1.442695
        %v6312 = vpow.pop %v6311
        %v6313 = vmul.f32 %v6277, 1.442695
        %v6314 = vpow.pop %v6313
        %v6315 = vmul.f32 %v6278, 1.442695
        %v6316 = vpow.pop %v6315
        %v6317 = vmul.f32 %v6279, 1.442695
        %v6318 = vpow.pop %v6317
        %v6319 = vmul.f32 %v6280, 1.442695
        %v6320 = vpow.pop %v6319
        %v6321 = vmul.f32 %v6281, 1.442695
        %v6322 = vpow.pop %v6321
        %v6323 = vmul.f32 %v6282, 1.442695
        %v6324 = vpow.pop %v6323
        %v6325 = vmul.f32 %v6283, 1.442695
        %v6326 = vpow.pop %v6325
        %v6327 = vmul.f32 %v6284, 1.442695
        %v6328 = vpow.pop %v6327
        %v6329 = vmul.f32 %v6285, 1.442695
        %v6330 = vpow.pop %v6329
        %v6331 = vmul.f32 %v6286, 1.442695
        %v6332 = vpow.pop %v6331
        %v6333 = vmul.f32 %v6287, 1.442695
        %v6334 = vpow.pop %v6333
        %v6335 = vmul.f32 %v6288, 1.442695
        %v6336 = vpow.pop %v6335
        %v6337 = vmul.f32 %v6289, 1.442695
        %v6338 = vpow.pop %v6337
        %v6339 = vmul.f32 %v6290, 1.442695
        %v6340 = vpow.pop %v6339
        %v6341 = vmul.f32 %v6291, 1.442695
        %v6342 = vpow.pop %v6341
        %v6343 = vmul.f32 %v6292, 1.442695
        %v6344 = vpow.pop %v6343
        %v6345 = vmul.f32 %v6293, 1.442695
        %v6346 = vpow.pop %v6345
        %v6347 = vmul.f32 %v6294, 1.442695
        %v6348 = vpow.pop %v6347
        %v6349 = vmul.f32 %v6295, 1.442695
        %v6350 = vpow.pop %v6349
        %v6351 = vmul.f32 %v6296, 1.442695
        %v6352 = vpow.pop %v6351
        %v6353 = vmul.f32 %v6297, 1.442695
        %v6354 = vpow.pop %v6353
        %v6355 = vmul.f32 %v6298, 1.442695
        %v6356 = vpow.pop %v6355
        %v6357 = vmul.f32 %v6299, 1.442695
        %v6358 = vpow.pop %v6357
        %v6359 = vmul.f32 %v6300, 1.442695
        %v6360 = vpow.pop %v6359
        %v6361 = vmul.f32 %v6301, 1.442695
        %v6362 = vpow.pop %v6361
        %v6363 = vmul.f32 %v6302, 1.442695
        %v6364 = vpow.pop %v6363
        %v6365 = vmul.f32 %v6303, 1.442695
        %v6366 = vpow.pop %v6365
        %v6367 = vmul.f32 %v6304, 1.442695
        %v6368 = vpow.pop %v6367
        %v6369 = vadd.f32 %v6306, 1.0
        %v6370 = vadd.f32 %v6308, 1.0
        %v6371 = vadd.f32 %v6310, 1.0
        %v6372 = vadd.f32 %v6312, 1.0
        %v6373 = vadd.f32 %v6314, 1.0
        %v6374 = vadd.f32 %v6316, 1.0
        %v6375 = vadd.f32 %v6318, 1.0
        %v6376 = vadd.f32 %v6320, 1.0
        %v6377 = vadd.f32 %v6322, 1.0
        %v6378 = vadd.f32 %v6324, 1.0
        %v6379 = vadd.f32 %v6326, 1.0
        %v6380 = vadd.f32 %v6328, 1.0
        %v6381 = vadd.f32 %v6330, 1.0
        %v6382 = vadd.f32 %v6332, 1.0
        %v6383 = vadd.f32 %v6334, 1.0
        %v6384 = vadd.f32 %v6336, 1.0
        %v6385 = vadd.f32 %v6338, 1.0
        %v6386 = vadd.f32 %v6340, 1.0
        %v6387 = vadd.f32 %v6342, 1.0
        %v6388 = vadd.f32 %v6344, 1.0
        %v6389 = vadd.f32 %v6346, 1.0
        %v6390 = vadd.f32 %v6348, 1.0
        %v6391 = vadd.f32 %v6350, 1.0
        %v6392 = vadd.f32 %v6352, 1.0
        %v6393 = vadd.f32 %v6354, 1.0
        %v6394 = vadd.f32 %v6356, 1.0
        %v6395 = vadd.f32 %v6358, 1.0
        %v6396 = vadd.f32 %v6360, 1.0
        %v6397 = vadd.f32 %v6362, 1.0
        %v6398 = vadd.f32 %v6364, 1.0
        %v6399 = vadd.f32 %v6366, 1.0
        %v6400 = vadd.f32 %v6368, 1.0
        %v6401 = vrcp.pop %v6369
        %v6402 = vmul.f32 1.0, %v6401
        %v6403 = vrcp.pop %v6370
        %v6404 = vmul.f32 1.0, %v6403
        %v6405 = vrcp.pop %v6371
        %v6406 = vmul.f32 1.0, %v6405
        %v6407 = vrcp.pop %v6372
        %v6408 = vmul.f32 1.0, %v6407
        %v6409 = vrcp.pop %v6373
        %v6410 = vmul.f32 1.0, %v6409
        %v6411 = vrcp.pop %v6374
        %v6412 = vmul.f32 1.0, %v6411
        %v6413 = vrcp.pop %v6375
        %v6414 = vmul.f32 1.0, %v6413
        %v6415 = vrcp.pop %v6376
        %v6416 = vmul.f32 1.0, %v6415
        %v6417 = vrcp.pop %v6377
        %v6418 = vmul.f32 1.0, %v6417
        %v6419 = vrcp.pop %v6378
        %v6420 = vmul.f32 1.0, %v6419
        %v6421 = vrcp.pop %v6379
        %v6422 = vmul.f32 1.0, %v6421
        %v6423 = vrcp.pop %v6380
        %v6424 = vmul.f32 1.0, %v6423
        %v6425 = vrcp.pop %v6381
        %v6426 = vmul.f32 1.0, %v6425
        %v6427 = vrcp.pop %v6382
        %v6428 = vmul.f32 1.0, %v6427
        %v6429 = vrcp.pop %v6383
        %v6430 = vmul.f32 1.0, %v6429
        %v6431 = vrcp.pop %v6384
        %v6432 = vmul.f32 1.0, %v6431
        %v6433 = vrcp.pop %v6385
        %v6434 = vmul.f32 1.0, %v6433
        %v6435 = vrcp.pop %v6386
        %v6436 = vmul.f32 1.0, %v6435
        %v6437 = vrcp.pop %v6387
        %v6438 = vmul.f32 1.0, %v6437
        %v6439 = vrcp.pop %v6388
        %v6440 = vmul.f32 1.0, %v6439
        %v6441 = vrcp.pop %v6389
        %v6442 = vmul.f32 1.0, %v6441
        %v6443 = vrcp.pop %v6390
        %v6444 = vmul.f32 1.0, %v6443
        %v6445 = vrcp.pop %v6391
        %v6446 = vmul.f32 1.0, %v6445
        %v6447 = vrcp.pop %v6392
        %v6448 = vmul.f32 1.0, %v6447
        %v6449 = vrcp.pop %v6393
        %v6450 = vmul.f32 1.0, %v6449
        %v6451 = vrcp.pop %v6394
        %v6452 = vmul.f32 1.0, %v6451
        %v6453 = vrcp.pop %v6395
        %v6454 = vmul.f32 1.0, %v6453
        %v6455 = vrcp.pop %v6396
        %v6456 = vmul.f32 1.0, %v6455
        %v6457 = vrcp.pop %v6397
        %v6458 = vmul.f32 1.0, %v6457
        %v6459 = vrcp.pop %v6398
        %v6460 = vmul.f32 1.0, %v6459
        %v6461 = vrcp.pop %v6399
        %v6462 = vmul.f32 1.0, %v6461
        %v6463 = vrcp.pop %v6400
        %v6464 = vmul.f32 1.0, %v6463
        %v6497 = vlaneseq
        %v6498 = vand.u32 %v6497, 127
        %v6499 = vlaneseq
        %v6500 = vshrl.u32 %v6499, 7
        %v6501 = vsub.s32 %v6498, %v6500
        %v6502 = vrot.slane %v6402, %v6501
        %v6503 = vadd.s32 %v6498, 4294967288
        %v6504 = vlaneseq
        %v6505 = vshrl.u32 %v6504, 7
        %v6506 = vsub.s32 %v6503, %v6505
        %v6507 = vrot.slane %v6404, %v6506
        %vm6508 = vcmask 130112
        %v6509 = vsel %vm6508, %v6507, %v6502
        %v6510 = vlaneseq
        %v6511 = vshrl.u32 %v6510, 7
        %v6512 = vsub.s32 %v6498, %v6511
        %v6513 = vrot.slane %v6406, %v6512
        %v6514 = vlaneseq
        %v6515 = vshrl.u32 %v6514, 7
        %v6516 = vsub.s32 %v6503, %v6515
        %v6517 = vrot.slane %v6408, %v6516
        %v6518 = vsel %vm6508, %v6517, %v6513
        %v6519 = vlaneseq
        %v6520 = vshrl.u32 %v6519, 7
        %v6521 = vsub.s32 %v6498, %v6520
        %v6522 = vrot.slane %v6410, %v6521
        %v6523 = vlaneseq
        %v6524 = vshrl.u32 %v6523, 7
        %v6525 = vsub.s32 %v6503, %v6524
        %v6526 = vrot.slane %v6412, %v6525
        %v6527 = vsel %vm6508, %v6526, %v6522
        %v6528 = vlaneseq
        %v6529 = vshrl.u32 %v6528, 7
        %v6530 = vsub.s32 %v6498, %v6529
        %v6531 = vrot.slane %v6414, %v6530
        %v6532 = vlaneseq
        %v6533 = vshrl.u32 %v6532, 7
        %v6534 = vsub.s32 %v6503, %v6533
        %v6535 = vrot.slane %v6416, %v6534
        %v6536 = vsel %vm6508, %v6535, %v6531
        %v6537 = vlaneseq
        %v6538 = vshrl.u32 %v6537, 7
        %v6539 = vsub.s32 %v6498, %v6538
        %v6540 = vrot.slane %v6418, %v6539
        %v6541 = vlaneseq
        %v6542 = vshrl.u32 %v6541, 7
        %v6543 = vsub.s32 %v6503, %v6542
        %v6544 = vrot.slane %v6420, %v6543
        %v6545 = vsel %vm6508, %v6544, %v6540
        %v6546 = vlaneseq
        %v6547 = vshrl.u32 %v6546, 7
        %v6548 = vsub.s32 %v6498, %v6547
        %v6549 = vrot.slane %v6422, %v6548
        %v6550 = vlaneseq
        %v6551 = vshrl.u32 %v6550, 7
        %v6552 = vsub.s32 %v6503, %v6551
        %v6553 = vrot.slane %v6424, %v6552
        %v6554 = vsel %vm6508, %v6553, %v6549
        %v6555 = vlaneseq
        %v6556 = vshrl.u32 %v6555, 7
        %v6557 = vsub.s32 %v6498, %v6556
        %v6558 = vrot.slane %v6426, %v6557
        %v6559 = vlaneseq
        %v6560 = vshrl.u32 %v6559, 7
        %v6561 = vsub.s32 %v6503, %v6560
        %v6562 = vrot.slane %v6428, %v6561
        %v6563 = vsel %vm6508, %v6562, %v6558
        %v6564 = vlaneseq
        %v6565 = vshrl.u32 %v6564, 7
        %v6566 = vsub.s32 %v6498, %v6565
        %v6567 = vrot.slane %v6430, %v6566
        %v6568 = vlaneseq
        %v6569 = vshrl.u32 %v6568, 7
        %v6570 = vsub.s32 %v6503, %v6569
        %v6571 = vrot.slane %v6432, %v6570
        %v6572 = vsel %vm6508, %v6571, %v6567
        %v6573 = vlaneseq
        %v6574 = vshrl.u32 %v6573, 7
        %v6575 = vsub.s32 %v6498, %v6574
        %v6576 = vrot.slane %v6434, %v6575
        %v6577 = vlaneseq
        %v6578 = vshrl.u32 %v6577, 7
        %v6579 = vsub.s32 %v6503, %v6578
        %v6580 = vrot.slane %v6436, %v6579
        %v6581 = vsel %vm6508, %v6580, %v6576
        %v6582 = vlaneseq
        %v6583 = vshrl.u32 %v6582, 7
        %v6584 = vsub.s32 %v6498, %v6583
        %v6585 = vrot.slane %v6438, %v6584
        %v6586 = vlaneseq
        %v6587 = vshrl.u32 %v6586, 7
        %v6588 = vsub.s32 %v6503, %v6587
        %v6589 = vrot.slane %v6440, %v6588
        %v6590 = vsel %vm6508, %v6589, %v6585
        %v6591 = vlaneseq
        %v6592 = vshrl.u32 %v6591, 7
        %v6593 = vsub.s32 %v6498, %v6592
        %v6594 = vrot.slane %v6442, %v6593
        %v6595 = vlaneseq
        %v6596 = vshrl.u32 %v6595, 7
        %v6597 = vsub.s32 %v6503, %v6596
        %v6598 = vrot.slane %v6444, %v6597
        %v6599 = vsel %vm6508, %v6598, %v6594
        %v6600 = vlaneseq
        %v6601 = vshrl.u32 %v6600, 7
        %v6602 = vsub.s32 %v6498, %v6601
        %v6603 = vrot.slane %v6446, %v6602
        %v6604 = vlaneseq
        %v6605 = vshrl.u32 %v6604, 7
        %v6606 = vsub.s32 %v6503, %v6605
        %v6607 = vrot.slane %v6448, %v6606
        %v6608 = vsel %vm6508, %v6607, %v6603
        %v6609 = vlaneseq
        %v6610 = vshrl.u32 %v6609, 7
        %v6611 = vsub.s32 %v6498, %v6610
        %v6612 = vrot.slane %v6450, %v6611
        %v6613 = vlaneseq
        %v6614 = vshrl.u32 %v6613, 7
        %v6615 = vsub.s32 %v6503, %v6614
        %v6616 = vrot.slane %v6452, %v6615
        %v6617 = vsel %vm6508, %v6616, %v6612
        %v6618 = vlaneseq
        %v6619 = vshrl.u32 %v6618, 7
        %v6620 = vsub.s32 %v6498, %v6619
        %v6621 = vrot.slane %v6454, %v6620
        %v6622 = vlaneseq
        %v6623 = vshrl.u32 %v6622, 7
        %v6624 = vsub.s32 %v6503, %v6623
        %v6625 = vrot.slane %v6456, %v6624
        %v6626 = vsel %vm6508, %v6625, %v6621
        %v6627 = vlaneseq
        %v6628 = vshrl.u32 %v6627, 7
        %v6629 = vsub.s32 %v6498, %v6628
        %v6630 = vrot.slane %v6458, %v6629
        %v6631 = vlaneseq
        %v6632 = vshrl.u32 %v6631, 7
        %v6633 = vsub.s32 %v6503, %v6632
        %v6634 = vrot.slane %v6460, %v6633
        %v6635 = vsel %vm6508, %v6634, %v6630
        %v6636 = vlaneseq
        %v6637 = vshrl.u32 %v6636, 7
        %v6638 = vsub.s32 %v6498, %v6637
        %v6639 = vrot.slane %v6462, %v6638
        %v6640 = vlaneseq
        %v6641 = vshrl.u32 %v6640, 7
        %v6642 = vsub.s32 %v6503, %v6641
        %v6643 = vrot.slane %v6464, %v6642
        %v6644 = vsel %vm6508, %v6643, %v6639
        %vm6645 = vcmask 1041409
        %v6646 = vsel %vm6645, %v6518, %v6509
        %vm6647 = vcmask 1042434
        %v6648 = vsel %vm6647, %v6527, %v6646
        %vm6649 = vcmask 1043459
        %v6650 = vsel %vm6649, %v6536, %v6648
        %vm6651 = vcmask 1044484
        %v6652 = vsel %vm6651, %v6545, %v6650
        %vm6653 = vcmask 1045509
        %v6654 = vsel %vm6653, %v6554, %v6652
        %vm6655 = vcmask 1046534
        %v6656 = vsel %vm6655, %v6563, %v6654
        %vm6657 = vcmask 1047559
        %v6658 = vsel %vm6657, %v6572, %v6656
        %v6659 = vsel %vm6645, %v6590, %v6581
        %v6660 = vsel %vm6647, %v6599, %v6659
        %v6661 = vsel %vm6649, %v6608, %v6660
        %v6662 = vsel %vm6651, %v6617, %v6661
        %v6663 = vsel %vm6653, %v6626, %v6662
        %v6664 = vsel %vm6655, %v6635, %v6663
        %v6665 = vsel %vm6657, %v6644, %v6664
        %6668 = vst.msk [vmem:[%s271] sm:$0xff] %vm1946, %v6658
        %6669 = vst.msk [vmem:[%s271 + $0x8] sm:$0xff] %vm1946, %v6665
        %s6670 = sand.u32 %s181, 1
        %s6671 = scalar_lea.sflag [#allocation4], %s6670
        %s6672 = sand.u32 %s181, 1
        %s6673 = smul.addr %s6672, 16
        %s6674 = scalar_lea.vmem [#allocation3], %s6673
        // Predicated region
        $region49: #{transit_mask_b_forward.1} parent=47 // pred_check
          %p6675 = pneg %p191
        $region50: #{transit_mask_b_forward.1} parent=47 // pred_check_branch
          %6677 = sbr.rel (%p6675) target = $region52
        $region51: #{transit_mask_b_forward.1} parent=47 // pred_region
          %s6679 = ssub.s32 256, 256
          %6680 = vsyncadd %s6671, %s6679
          %s6681 = smul.addr %s21, 2
          %s6682 = smul.addr %s6681, 128
          %s6683 = scalar_lea.hbm %s7, %s6682
          %s6684 = sshll.u32 %s6674, 4
          %s6685 = int_to_ptr.vmem [resolvable:$true] %s6684
          %6690 = dma.vmem_to_hbm [thread:$0]  %s6685, 256, %s6683, %s6671, 128, 128, 8
        $region52: #{transit_mask_b_forward.1} parent=47 // pred_fallthru
          _
      $region48: #{transit_mask_b_forward.1} parent=5 // pred_fallthru
        _
      %p6691 = scmp.le.s32.totalorder 2, %s16
      // Predicated region
      $region53: #{transit_mask_b_forward.1} parent=5 // pred_check
        %p6692 = pneg %p6691
      $region54: #{transit_mask_b_forward.1} parent=5 // pred_check_branch
        %6694 = sbr.rel (%p6692) target = $region56
      $region55: #{transit_mask_b_forward.1} parent=5 // pred_region
        %s6695 = ssub.s32 %s16, 2
        // Predicated region
        $region57: #{transit_mask_b_forward.1} parent=55 // pred_check
          %p6696 = pneg %p197
        $region58: #{transit_mask_b_forward.1} parent=55 // pred_check_branch
          %6698 = sbr.rel (%p6696) target = $region60
        $region59: #{transit_mask_b_forward.1} parent=55 // pred_region
          %s6699 = sand.u32 %s182, 1
          %s6700 = scalar_lea.sflag [#allocation4], %s6699
          %s6701 = sand.u32 %s182, 1
          %s6702 = smul.addr %s6701, 16
          %s6703 = scalar_lea.vmem [#allocation3], %s6702
          %6704 = dma.done %s6700, 256
        $region60: #{transit_mask_b_forward.1} parent=55 // pred_fallthru
          _
      $region56: #{transit_mask_b_forward.1} parent=5 // pred_fallthru
        _
    $region6: #{transit_mask_b_forward.1} parent=1 // loop_footer
      %s20 = sadd.s32 1, %s16
    $region7: #{transit_mask_b_forward.1} parent=1 // loop_footer_branch
      %15 = sbr.rel target = $region3
    $region8: #{transit_mask_b_forward.1} parent=1 // loop_exit
      _
    %6705 = vsyncpa [#allocation4], 1
    %s6706 = scalar_lea.sflag [#allocation4], 1
    %6707 = vsyncpa %s6706, 1

</llo_original>
